<compile_context>
chip_gen: v7x
topology: tpu7x:2x2x1
jax: 0.10.0
libtpu: 0.0.40
codegen_flags: <defaults>
</compile_context>

<pallas_src>
import numpy as np
import jax
import jax.numpy as jnp
from jax import lax
from jax.experimental import pallas as pl
from jax.experimental.pallas import tpu as pltpu


# ----------------------------- fused Pallas kernel -----------------------------

def _fused_block_kernel(x_ref, w1_ref, b1_ref, w2_ref, b2_ref, o_ref,
                        xpad_ref, hpad_ref, acc1_ref, acc2_ref):
    """Fused conv1+bn1+relu+conv2+bn2 for a block of Nb batch elements.

    x_ref : (Nb, H, W*Cin)        f32 lane-dense input slabs
    w1_ref: (3, W*Cin, W*Chid)    bf16 banded conv1 weights (BN1 scale folded in)
    b1_ref: (1, W*Chid)           f32 BN1 bias row (bias tiled per w position)
    w2_ref: (3, W*Chid, W*Cout)   bf16 banded conv2 weights (BN2 scale folded in)
    b2_ref: (1, W*Cout)           f32 BN2 bias row
    o_ref : (Nb, H, W*Cout)       f32 lane-dense output slabs
    xpad_ref: (Nb*(H+2), W*Cin)   bf16 scratch, stacked row-padded conv1 inputs
    hpad_ref: (Nb*(H+2), W*Chid)  bf16 scratch, stacked row-padded conv2 inputs
    acc1_ref: (Nb*(H+2)-2, W*Chid) f32 scratch, conv1 accumulator
    acc2_ref: (Nb*(H+2)-2, W*Cout) f32 scratch, conv2 accumulator
    """
    nb, H, wc_in = x_ref.shape
    wc_hid = hpad_ref.shape[1]
    wc_out = o_ref.shape[2]
    hp = H + 2                  # per-element padded height
    m = nb * hp - 2             # rows produced by the stacked shifted matmuls

    zin = jnp.zeros((1, wc_in), xpad_ref.dtype)
    zhid = jnp.zeros((1, wc_hid), hpad_ref.dtype)
    b1 = b1_ref[...]            # (1, wc_hid) f32
    b2 = b2_ref[...]            # (1, wc_out) f32

    # ---- stage conv1 input: per-element copy into the stacked padded bf16 slab ----
    # (kh/row SAME-padding is done here; kw padding is baked into the banded weights)
    for k in range(nb):
        r0 = k * hp
        xpad_ref[r0:r0 + 1, :] = zin                                    # top pad row
        xpad_ref[r0 + 1:r0 + 1 + H, :] = x_ref[k].astype(xpad_ref.dtype)
        xpad_ref[r0 + H + 1:r0 + hp, :] = zin                           # bottom pad row

    # ---- conv1 (+ folded BN1 scale): 3 stacked shifted bf16 matmuls, f32 VMEM accum ----
    acc1_ref[...] = jnp.dot(xpad_ref[0:m, :], w1_ref[0],
                            preferred_element_type=jnp.float32)
    acc1_ref[...] += jnp.dot(xpad_ref[1:1 + m, :], w1_ref[1],
                             preferred_element_type=jnp.float32)
    acc1_ref[...] += jnp.dot(xpad_ref[2:2 + m, :], w1_ref[2],
                             preferred_element_type=jnp.float32)

    # ---- BN1 bias + ReLU (f32) and staging of the conv2 padded bf16 slab ----
    # Only the H valid rows per element are taken from acc1 (junk boundary rows skipped).
    # Offset-1 slices are sublane-misaligned but cheap at H=16 (see review; a
    # pltpu.roll-based formulation would avoid them if M grows much further).
    for k in range(nb):
        r0 = k * hp
        hpad_ref[r0:r0 + 1, :] = zhid
        h = jnp.maximum(acc1_ref[r0:r0 + H, :] + b1, 0.0)
        hpad_ref[r0 + 1:r0 + 1 + H, :] = h.astype(hpad_ref.dtype)
        hpad_ref[r0 + H + 1:r0 + hp, :] = zhid

    # ---- conv2 (+ folded BN2 scale): same stacked shifted matmuls ----
    acc2_ref[...] = jnp.dot(hpad_ref[0:m, :], w2_ref[0],
                            preferred_element_type=jnp.float32)
    acc2_ref[...] += jnp.dot(hpad_ref[1:1 + m, :], w2_ref[1],
                             preferred_element_type=jnp.float32)
    acc2_ref[...] += jnp.dot(hpad_ref[2:2 + m, :], w2_ref[2],
                             preferred_element_type=jnp.float32)

    # ---- BN2 bias epilogue (f32), drop the 2 junk rows per element, lane-dense store ----
    for k in range(nb):
        r0 = k * hp
        o_ref[k] = acc2_ref[r0:r0 + H, :] + b2


# ----------------------- host-side weight preparation -----------------------

def _banded_conv_weight(w_hwio, bn_scale, W):
    """Fold the BN scale into the conv weight and lay it out as 3 banded
    (W*Cin, W*Cout) matrices (one per kernel row kh) that encode the kw shift,
    the channel contraction, and the left/right SAME zero padding."""
    w = np.asarray(w_hwio, np.float32) * np.asarray(bn_scale, np.float32)[None, None, None, :]
    KH, KW, Cin, Cout = w.shape
    B = np.zeros((KH, W * Cin, W * Cout), np.float32)
    for kh in range(KH):
        for kw in range(KW):
            for wi in range(W):            # output column position
                src = wi + kw - 1          # input column feeding it
                if 0 <= src < W:           # out-of-range -> zero padding -> omit
                    B[kh, src * Cin:(src + 1) * Cin, wi * Cout:(wi + 1) * Cout] = w[kh, kw]
    return B


def prepare_block_params(w1, s1, b1, w2, s2, b2, W, weight_dtype=jnp.bfloat16):
    """w*: HWIO conv weights; s*/b*: folded eval-mode BN scale/bias per channel.

    Weights are stored banded + bf16 (MXU-native; halves weight HBM/VMEM vs f32).
    Biases stay f32 (epilogue is f32)."""
    chid = w1.shape[-1]
    cout = w2.shape[-1]
    return {
        "w1": jnp.asarray(_banded_conv_weight(w1, s1, W), dtype=weight_dtype),
        "b1": jnp.asarray(np.tile(np.asarray(b1, np.float32), W)).reshape(1, W * chid),
        "w2": jnp.asarray(_banded_conv_weight(w2, s2, W), dtype=weight_dtype),
        "b2": jnp.asarray(np.tile(np.asarray(b2, np.float32), W)).reshape(1, W * cout),
    }


# ------------------------------- forward wrappers -------------------------------

def block_forward_lane_dense(x_lane, prep, batch_block=None):
    """Block.forward on lane-dense activations: (N, H, W*Cin) f32 -> (N, H, W*Cout) f32."""
    N, H, wc_in = x_lane.shape
    w1, b1, w2, b2 = prep["w1"], prep["b1"], prep["w2"], prep["b2"]
    wc_hid = w1.shape[-1]
    wc_out = w2.shape[-1]

    if batch_block is None:
        batch_block = max(1, min(N, 128 // H))   # target M ~= 128 stacked matmul rows
        while N % batch_block:
            batch_block -= 1
    nb = batch_block
    assert N % nb == 0, (N, nb)
    hp = H + 2

    return pl.pallas_call(
        _fused_block_kernel,
        out_shape=jax.ShapeDtypeStruct((N, H, wc_out), jnp.float32),
        grid_spec=pltpu.PrefetchScalarGridSpec(
            num_scalar_prefetch=0,
            grid=(N // nb,),
            in_specs=[
                pl.BlockSpec((nb, H, wc_in), lambda n: (n, 0, 0)),
                # Resident weights/biases: constant index_map -> DMA'd once across the
                # grid.  (At larger W*C, single-buffer these or build the banded
                # matrices in VMEM from the 9KB dense weights instead.)
                pl.BlockSpec((3, wc_in, wc_hid), lambda n: (0, 0, 0)),
                pl.BlockSpec((1, wc_hid), lambda n: (0, 0)),
                pl.BlockSpec((3, wc_hid, wc_out), lambda n: (0, 0, 0)),
                pl.BlockSpec((1, wc_out), lambda n: (0, 0)),
            ],
            out_specs=pl.BlockSpec((nb, H, wc_out), lambda n: (n, 0, 0)),
            scratch_shapes=[
                pltpu.VMEM((nb * hp, wc_in), jnp.bfloat16),       # xpad (conv1 LHS)
                pltpu.VMEM((nb * hp, wc_hid), jnp.bfloat16),      # hpad (conv2 LHS)
                pltpu.VMEM((nb * hp - 2, wc_hid), jnp.float32),   # acc1 (f32 accum)
                pltpu.VMEM((nb * hp - 2, wc_out), jnp.float32),   # acc2 (f32 accum)
            ],
        ),
        compiler_params=pltpu.CompilerParams(
            dimension_semantics=("parallel",)),
    )(x_lane, w1, b1, w2, b2)


def block_forward_nchw(x_nchw, prep, batch_block=None):
    """PyTorch-interface wrapper (NCHW in / NCHW out).

    TODO(synk): in a full network keep activations lane-dense NHWC end-to-end and call
    block_forward_lane_dense directly; these transposes exist only to match the
    module's NCHW interface for this standalone test."""
    N, Cin, H, W = x_nchw.shape
    cout = prep["w2"].shape[-1] // W
    x_lane = jnp.transpose(x_nchw, (0, 2, 3, 1)).reshape(N, H, W * Cin)
    out_lane = block_forward_lane_dense(x_lane, prep, batch_block)
    return jnp.transpose(out_lane.reshape(N, H, W, cout), (0, 3, 1, 2))


# ----------------------------- reference (pure JAX, f32) -----------------------------

def _ref_conv_bn(x_nhwc, w_hwio, scale, bias, relu):
    y = lax.conv_general_dilated(
        x_nhwc, w_hwio, window_strides=(1, 1), padding="SAME",
        dimension_numbers=("NHWC", "HWIO", "NHWC"))
    y = y * scale[None, None, None, :] + bias[None, None, None, :]
    if relu:
        y = jnp.maximum(y, 0.0)
    return y


def block_forward_ref(x_nchw, params):
    x = jnp.transpose(x_nchw, (0, 2, 3, 1))
    h = _ref_conv_bn(x, params["w1"], params["s1"], params["b1"], True)
    o = _ref_conv_bn(h, params["w2"], params["s2"], params["b2"], False)
    return jnp.transpose(o, (0, 3, 1, 2))


# ------------------------------------ main ---------------------------------------

if __name__ == "__main__":
    # Module config: in_channels = out_channels = 16, d = 16
    #   base_width = 16 -> hidden_channels = d * (out_channels // 16) = 16, stride = 1
    in_channels = 16
    out_channels = 16
    d = 16
    hidden_channels = d * (out_channels // 16)

    # N=16 with batch_block=8 -> stacked matmul M ~= 128 rows and grid=(2,)
    # (even -> both v7x TensorCores get an equal shard).
    N, H, W = 16, 16, 16
    eps = 1e-5

    key = jax.random.PRNGKey(0)
    k = jax.random.split(key, 12)

    # conv weights, kaiming_normal_ style (fan_in mode, gain sqrt(2)), stored HWIO
    std1 = (2.0 / (in_channels * 9)) ** 0.5
    std2 = (2.0 / (hidden_channels * 9)) ** 0.5
    w1 = jax.random.normal(k[0], (3, 3, in_channels, hidden_channels), jnp.float32) * std1
    w2 = jax.random.normal(k[1], (3, 3, hidden_channels, out_channels), jnp.float32) * std2

    # BatchNorm (eval-mode) parameters, deterministic synthetic init
    g1 = jax.random.uniform(k[2], (hidden_channels,), jnp.float32, 0.5, 1.5)
    be1 = 0.1 * jax.random.normal(k[3], (hidden_channels,), jnp.float32)
    m1 = 0.1 * jax.random.normal(k[4], (hidden_channels,), jnp.float32)
    v1 = jax.random.uniform(k[5], (hidden_channels,), jnp.float32, 0.5, 1.5)
    g2 = jax.random.uniform(k[6], (out_channels,), jnp.float32, 0.5, 1.5)
    be2 = 0.1 * jax.random.normal(k[7], (out_channels,), jnp.float32)
    m2 = 0.1 * jax.random.normal(k[8], (out_channels,), jnp.float32)
    v2 = jax.random.uniform(k[9], (out_channels,), jnp.float32, 0.5, 1.5)

    # fold BN: y = gamma*(x-mean)/sqrt(var+eps)+beta  ==  x*scale + bias
    s1 = g1 / jnp.sqrt(v1 + eps)
    b1 = be1 - m1 * s1
    s2 = g2 / jnp.sqrt(v2 + eps)
    b2 = be2 - m2 * s2

    ref_params = {"w1": w1, "s1": s1, "b1": b1, "w2": w2, "s2": s2, "b2": b2}
    prep = prepare_block_params(w1, s1, b1, w2, s2, b2, W)

    x = jax.random.normal(k[10], (N, in_channels, H, W), jnp.float32)  # NCHW, like PyTorch

    fwd = jax.jit(lambda xx: block_forward_nchw(xx, prep, batch_block=8))
    out = jax.block_until_ready(fwd(x))
    ref = jax.block_until_ready(block_forward_ref(x, ref_params))

    assert out.shape == (N, out_channels, H, W), out.shape
    # bf16 matmul operands (f32 accumulate/epilogue) vs the f32 reference: expect
    # max-abs error O(1e-2); real structural bugs would show up as O(1) errors.
    max_err = float(jnp.max(jnp.abs(out - ref)))
    rms_err = float(jnp.sqrt(jnp.mean((out - ref) ** 2)))
    assert max_err < 1e-1, f"max abs diff vs reference: {max_err}"
    assert rms_err < 2e-2, f"rms diff vs reference: {rms_err}"

    print("KERNEL_OK")
</pallas_src>

<mosaic_0001>
module attributes {stable_mosaic.version = 11 : i64} {
  func.func @_fused_block_kernel(%arg0: i32, %arg1: memref<8x16x256xf32, #tpu.memory_space<vmem>>, %arg2: memref<3x256x256xbf16, #tpu.memory_space<vmem>>, %arg3: memref<1x256xf32, #tpu.memory_space<vmem>>, %arg4: memref<3x256x256xbf16, #tpu.memory_space<vmem>>, %arg5: memref<1x256xf32, #tpu.memory_space<vmem>>, %arg6: memref<8x16x256xf32, #tpu.memory_space<vmem>>, %arg7: memref<144x256xbf16, #tpu.memory_space<vmem>>, %arg8: memref<144x256xbf16, #tpu.memory_space<vmem>>, %arg9: memref<142x256xf32, #tpu.memory_space<vmem>>, %arg10: memref<142x256xf32, #tpu.memory_space<vmem>>) attributes {dimension_semantics = [#tpu.dimension_semantics<parallel>], iteration_bounds = array<i64: 2>, scalar_prefetch = 0 : i64, scratch_operands = 4 : i64, tpu.core_type = #tpu.core_type<tc>, window_params = [{transform_indices = @transform_0, window_bounds = array<i64: 8, 16, 256>}, {pipeline_mode = #tpu.pipeline_mode<synchronous>, transform_indices = @transform_1, window_bounds = array<i64: 3, 256, 256>}, {pipeline_mode = #tpu.pipeline_mode<synchronous>, transform_indices = @transform_2, window_bounds = array<i64: 1, 256>}, {pipeline_mode = #tpu.pipeline_mode<synchronous>, transform_indices = @transform_3, window_bounds = array<i64: 3, 256, 256>}, {pipeline_mode = #tpu.pipeline_mode<synchronous>, transform_indices = @transform_4, window_bounds = array<i64: 1, 256>}, {transform_indices = @transform_5, window_bounds = array<i64: 8, 16, 256>}]} {
    %cst = arith.constant 0.000000e+00 : bf16
    %0 = vector.broadcast %cst : bf16 to vector<1x256xbf16>
    %cst_0 = arith.constant 0.000000e+00 : bf16
    %1 = vector.broadcast %cst_0 : bf16 to vector<1x256xbf16>
    %c0 = arith.constant 0 : index
    %c0_1 = arith.constant 0 : index
    %2 = vector.load %arg3[%c0, %c0_1] : memref<1x256xf32, #tpu.memory_space<vmem>>, vector<1x256xf32>
    %c0_2 = arith.constant 0 : index
    %c0_3 = arith.constant 0 : index
    %3 = vector.load %arg5[%c0_2, %c0_3] : memref<1x256xf32, #tpu.memory_space<vmem>>, vector<1x256xf32>
    %c0_4 = arith.constant 0 : index
    %c0_5 = arith.constant 0 : index
    %4 = vector.load %arg7[%c0_4, %c0_5] : memref<144x256xbf16, #tpu.memory_space<vmem>>, vector<1x256xbf16>
    tpu.vector_store %arg7[%c0_4, %c0_5], %0 {strides = array<i32>} : memref<144x256xbf16, #tpu.memory_space<vmem>>, vector<1x256xbf16>,
    %c0_6 = arith.constant 0 : index
    %c0_7 = arith.constant 0 : index
    %c0_8 = arith.constant 0 : index
    %5 = vector.load %arg1[%c0_6, %c0_7, %c0_8] : memref<8x16x256xf32, #tpu.memory_space<vmem>>, vector<1x16x256xf32>
    %6 = vector.shape_cast %5 : vector<1x16x256xf32> to vector<16x256xf32>
    %7 = arith.truncf %6 : vector<16x256xf32> to vector<16x256xbf16>
    %c1 = arith.constant 1 : index
    %c0_9 = arith.constant 0 : index
    %8 = vector.load %arg7[%c1, %c0_9] : memref<144x256xbf16, #tpu.memory_space<vmem>>, vector<16x256xbf16>
    tpu.vector_store %arg7[%c1, %c0_9], %7 {strides = array<i32>} : memref<144x256xbf16, #tpu.memory_space<vmem>>, vector<16x256xbf16>,
    %c17 = arith.constant 17 : index
    %c0_10 = arith.constant 0 : index
    %9 = vector.load %arg7[%c17, %c0_10] : memref<144x256xbf16, #tpu.memory_space<vmem>>, vector<1x256xbf16>
    tpu.vector_store %arg7[%c17, %c0_10], %0 {strides = array<i32>} : memref<144x256xbf16, #tpu.memory_space<vmem>>, vector<1x256xbf16>,
    %c18 = arith.constant 18 : index
    %c0_11 = arith.constant 0 : index
    %10 = vector.load %arg7[%c18, %c0_11] : memref<144x256xbf16, #tpu.memory_space<vmem>>, vector<1x256xbf16>
    tpu.vector_store %arg7[%c18, %c0_11], %0 {strides = array<i32>} : memref<144x256xbf16, #tpu.memory_space<vmem>>, vector<1x256xbf16>,
    %c1_12 = arith.constant 1 : index
    %c0_13 = arith.constant 0 : index
    %c0_14 = arith.constant 0 : index
    %11 = vector.load %arg1[%c1_12, %c0_13, %c0_14] : memref<8x16x256xf32, #tpu.memory_space<vmem>>, vector<1x16x256xf32>
    %12 = vector.shape_cast %11 : vector<1x16x256xf32> to vector<16x256xf32>
    %13 = arith.truncf %12 : vector<16x256xf32> to vector<16x256xbf16>
    %c19 = arith.constant 19 : index
    %c0_15 = arith.constant 0 : index
    %14 = vector.load %arg7[%c19, %c0_15] : memref<144x256xbf16, #tpu.memory_space<vmem>>, vector<16x256xbf16>
    tpu.vector_store %arg7[%c19, %c0_15], %13 {strides = array<i32>} : memref<144x256xbf16, #tpu.memory_space<vmem>>, vector<16x256xbf16>,
    %c35 = arith.constant 35 : index
    %c0_16 = arith.constant 0 : index
    %15 = vector.load %arg7[%c35, %c0_16] : memref<144x256xbf16, #tpu.memory_space<vmem>>, vector<1x256xbf16>
    tpu.vector_store %arg7[%c35, %c0_16], %0 {strides = array<i32>} : memref<144x256xbf16, #tpu.memory_space<vmem>>, vector<1x256xbf16>,
    %c36 = arith.constant 36 : index
    %c0_17 = arith.constant 0 : index
    %16 = vector.load %arg7[%c36, %c0_17] : memref<144x256xbf16, #tpu.memory_space<vmem>>, vector<1x256xbf16>
    tpu.vector_store %arg7[%c36, %c0_17], %0 {strides = array<i32>} : memref<144x256xbf16, #tpu.memory_space<vmem>>, vector<1x256xbf16>,
    %c2 = arith.constant 2 : index
    %c0_18 = arith.constant 0 : index
    %c0_19 = arith.constant 0 : index
    %17 = vector.load %arg1[%c2, %c0_18, %c0_19] : memref<8x16x256xf32, #tpu.memory_space<vmem>>, vector<1x16x256xf32>
    %18 = vector.shape_cast %17 : vector<1x16x256xf32> to vector<16x256xf32>
    %19 = arith.truncf %18 : vector<16x256xf32> to vector<16x256xbf16>
    %c37 = arith.constant 37 : index
    %c0_20 = arith.constant 0 : index
    %20 = vector.load %arg7[%c37, %c0_20] : memref<144x256xbf16, #tpu.memory_space<vmem>>, vector<16x256xbf16>
    tpu.vector_store %arg7[%c37, %c0_20], %19 {strides = array<i32>} : memref<144x256xbf16, #tpu.memory_space<vmem>>, vector<16x256xbf16>,
    %c53 = arith.constant 53 : index
    %c0_21 = arith.constant 0 : index
    %21 = vector.load %arg7[%c53, %c0_21] : memref<144x256xbf16, #tpu.memory_space<vmem>>, vector<1x256xbf16>
    tpu.vector_store %arg7[%c53, %c0_21], %0 {strides = array<i32>} : memref<144x256xbf16, #tpu.memory_space<vmem>>, vector<1x256xbf16>,
    %c54 = arith.constant 54 : index
    %c0_22 = arith.constant 0 : index
    %22 = vector.load %arg7[%c54, %c0_22] : memref<144x256xbf16, #tpu.memory_space<vmem>>, vector<1x256xbf16>
    tpu.vector_store %arg7[%c54, %c0_22], %0 {strides = array<i32>} : memref<144x256xbf16, #tpu.memory_space<vmem>>, vector<1x256xbf16>,
    %c3 = arith.constant 3 : index
    %c0_23 = arith.constant 0 : index
    %c0_24 = arith.constant 0 : index
    %23 = vector.load %arg1[%c3, %c0_23, %c0_24] : memref<8x16x256xf32, #tpu.memory_space<vmem>>, vector<1x16x256xf32>
    %24 = vector.shape_cast %23 : vector<1x16x256xf32> to vector<16x256xf32>
    %25 = arith.truncf %24 : vector<16x256xf32> to vector<16x256xbf16>
    %c55 = arith.constant 55 : index
    %c0_25 = arith.constant 0 : index
    %26 = vector.load %arg7[%c55, %c0_25] : memref<144x256xbf16, #tpu.memory_space<vmem>>, vector<16x256xbf16>
    tpu.vector_store %arg7[%c55, %c0_25], %25 {strides = array<i32>} : memref<144x256xbf16, #tpu.memory_space<vmem>>, vector<16x256xbf16>,
    %c71 = arith.constant 71 : index
    %c0_26 = arith.constant 0 : index
    %27 = vector.load %arg7[%c71, %c0_26] : memref<144x256xbf16, #tpu.memory_space<vmem>>, vector<1x256xbf16>
    tpu.vector_store %arg7[%c71, %c0_26], %0 {strides = array<i32>} : memref<144x256xbf16, #tpu.memory_space<vmem>>, vector<1x256xbf16>,
    %c72 = arith.constant 72 : index
    %c0_27 = arith.constant 0 : index
    %28 = vector.load %arg7[%c72, %c0_27] : memref<144x256xbf16, #tpu.memory_space<vmem>>, vector<1x256xbf16>
    tpu.vector_store %arg7[%c72, %c0_27], %0 {strides = array<i32>} : memref<144x256xbf16, #tpu.memory_space<vmem>>, vector<1x256xbf16>,
    %c4 = arith.constant 4 : index
    %c0_28 = arith.constant 0 : index
    %c0_29 = arith.constant 0 : index
    %29 = vector.load %arg1[%c4, %c0_28, %c0_29] : memref<8x16x256xf32, #tpu.memory_space<vmem>>, vector<1x16x256xf32>
    %30 = vector.shape_cast %29 : vector<1x16x256xf32> to vector<16x256xf32>
    %31 = arith.truncf %30 : vector<16x256xf32> to vector<16x256xbf16>
    %c73 = arith.constant 73 : index
    %c0_30 = arith.constant 0 : index
    %32 = vector.load %arg7[%c73, %c0_30] : memref<144x256xbf16, #tpu.memory_space<vmem>>, vector<16x256xbf16>
    tpu.vector_store %arg7[%c73, %c0_30], %31 {strides = array<i32>} : memref<144x256xbf16, #tpu.memory_space<vmem>>, vector<16x256xbf16>,
    %c89 = arith.constant 89 : index
    %c0_31 = arith.constant 0 : index
    %33 = vector.load %arg7[%c89, %c0_31] : memref<144x256xbf16, #tpu.memory_space<vmem>>, vector<1x256xbf16>
    tpu.vector_store %arg7[%c89, %c0_31], %0 {strides = array<i32>} : memref<144x256xbf16, #tpu.memory_space<vmem>>, vector<1x256xbf16>,
    %c90 = arith.constant 90 : index
    %c0_32 = arith.constant 0 : index
    %34 = vector.load %arg7[%c90, %c0_32] : memref<144x256xbf16, #tpu.memory_space<vmem>>, vector<1x256xbf16>
    tpu.vector_store %arg7[%c90, %c0_32], %0 {strides = array<i32>} : memref<144x256xbf16, #tpu.memory_space<vmem>>, vector<1x256xbf16>,
    %c5 = arith.constant 5 : index
    %c0_33 = arith.constant 0 : index
    %c0_34 = arith.constant 0 : index
    %35 = vector.load %arg1[%c5, %c0_33, %c0_34] : memref<8x16x256xf32, #tpu.memory_space<vmem>>, vector<1x16x256xf32>
    %36 = vector.shape_cast %35 : vector<1x16x256xf32> to vector<16x256xf32>
    %37 = arith.truncf %36 : vector<16x256xf32> to vector<16x256xbf16>
    %c91 = arith.constant 91 : index
    %c0_35 = arith.constant 0 : index
    %38 = vector.load %arg7[%c91, %c0_35] : memref<144x256xbf16, #tpu.memory_space<vmem>>, vector<16x256xbf16>
    tpu.vector_store %arg7[%c91, %c0_35], %37 {strides = array<i32>} : memref<144x256xbf16, #tpu.memory_space<vmem>>, vector<16x256xbf16>,
    %c107 = arith.constant 107 : index
    %c0_36 = arith.constant 0 : index
    %39 = vector.load %arg7[%c107, %c0_36] : memref<144x256xbf16, #tpu.memory_space<vmem>>, vector<1x256xbf16>
    tpu.vector_store %arg7[%c107, %c0_36], %0 {strides = array<i32>} : memref<144x256xbf16, #tpu.memory_space<vmem>>, vector<1x256xbf16>,
    %c108 = arith.constant 108 : index
    %c0_37 = arith.constant 0 : index
    %40 = vector.load %arg7[%c108, %c0_37] : memref<144x256xbf16, #tpu.memory_space<vmem>>, vector<1x256xbf16>
    tpu.vector_store %arg7[%c108, %c0_37], %0 {strides = array<i32>} : memref<144x256xbf16, #tpu.memory_space<vmem>>, vector<1x256xbf16>,
    %c6 = arith.constant 6 : index
    %c0_38 = arith.constant 0 : index
    %c0_39 = arith.constant 0 : index
    %41 = vector.load %arg1[%c6, %c0_38, %c0_39] : memref<8x16x256xf32, #tpu.memory_space<vmem>>, vector<1x16x256xf32>
    %42 = vector.shape_cast %41 : vector<1x16x256xf32> to vector<16x256xf32>
    %43 = arith.truncf %42 : vector<16x256xf32> to vector<16x256xbf16>
    %c109 = arith.constant 109 : index
    %c0_40 = arith.constant 0 : index
    %44 = vector.load %arg7[%c109, %c0_40] : memref<144x256xbf16, #tpu.memory_space<vmem>>, vector<16x256xbf16>
    tpu.vector_store %arg7[%c109, %c0_40], %43 {strides = array<i32>} : memref<144x256xbf16, #tpu.memory_space<vmem>>, vector<16x256xbf16>,
    %c125 = arith.constant 125 : index
    %c0_41 = arith.constant 0 : index
    %45 = vector.load %arg7[%c125, %c0_41] : memref<144x256xbf16, #tpu.memory_space<vmem>>, vector<1x256xbf16>
    tpu.vector_store %arg7[%c125, %c0_41], %0 {strides = array<i32>} : memref<144x256xbf16, #tpu.memory_space<vmem>>, vector<1x256xbf16>,
    %c126 = arith.constant 126 : index
    %c0_42 = arith.constant 0 : index
    %46 = vector.load %arg7[%c126, %c0_42] : memref<144x256xbf16, #tpu.memory_space<vmem>>, vector<1x256xbf16>
    tpu.vector_store %arg7[%c126, %c0_42], %0 {strides = array<i32>} : memref<144x256xbf16, #tpu.memory_space<vmem>>, vector<1x256xbf16>,
    %c7 = arith.constant 7 : index
    %c0_43 = arith.constant 0 : index
    %c0_44 = arith.constant 0 : index
    %47 = vector.load %arg1[%c7, %c0_43, %c0_44] : memref<8x16x256xf32, #tpu.memory_space<vmem>>, vector<1x16x256xf32>
    %48 = vector.shape_cast %47 : vector<1x16x256xf32> to vector<16x256xf32>
    %49 = arith.truncf %48 : vector<16x256xf32> to vector<16x256xbf16>
    %c127 = arith.constant 127 : index
    %c0_45 = arith.constant 0 : index
    %50 = vector.load %arg7[%c127, %c0_45] : memref<144x256xbf16, #tpu.memory_space<vmem>>, vector<16x256xbf16>
    tpu.vector_store %arg7[%c127, %c0_45], %49 {strides = array<i32>} : memref<144x256xbf16, #tpu.memory_space<vmem>>, vector<16x256xbf16>,
    %c143 = arith.constant 143 : index
    %c0_46 = arith.constant 0 : index
    %51 = vector.load %arg7[%c143, %c0_46] : memref<144x256xbf16, #tpu.memory_space<vmem>>, vector<1x256xbf16>
    tpu.vector_store %arg7[%c143, %c0_46], %0 {strides = array<i32>} : memref<144x256xbf16, #tpu.memory_space<vmem>>, vector<1x256xbf16>,
    %c0_47 = arith.constant 0 : index
    %c0_48 = arith.constant 0 : index
    %52 = vector.load %arg7[%c0_47, %c0_48] : memref<144x256xbf16, #tpu.memory_space<vmem>>, vector<142x256xbf16>
    %c0_49 = arith.constant 0 : index
    %c0_50 = arith.constant 0 : index
    %c0_51 = arith.constant 0 : index
    %53 = vector.load %arg2[%c0_49, %c0_50, %c0_51] : memref<3x256x256xbf16, #tpu.memory_space<vmem>>, vector<1x256x256xbf16>
    %54 = vector.shape_cast %53 : vector<1x256x256xbf16> to vector<256x256xbf16>
    %cst_52 = arith.constant dense<0.000000e+00> : vector<142x256xf32>
    %55 = tpu.matmul %52, %54, %cst_52 {dimension_numbers = #tpu.dot_dimension_numbers<[1], [0], [0], [1], [0, 0, 1, 1], [], []>} : vector<142x256xbf16>, vector<256x256xbf16>, vector<142x256xf32> -> vector<142x256xf32>
    %c0_53 = arith.constant 0 : index
    %c0_54 = arith.constant 0 : index
    %56 = vector.load %arg9[%c0_53, %c0_54] : memref<142x256xf32, #tpu.memory_space<vmem>>, vector<142x256xf32>
    tpu.vector_store %arg9[%c0_53, %c0_54], %55 {strides = array<i32>} : memref<142x256xf32, #tpu.memory_space<vmem>>, vector<142x256xf32>,
    %c0_55 = arith.constant 0 : index
    %c0_56 = arith.constant 0 : index
    %57 = vector.load %arg9[%c0_55, %c0_56] : memref<142x256xf32, #tpu.memory_space<vmem>>, vector<142x256xf32>
    %c1_57 = arith.constant 1 : index
    %c0_58 = arith.constant 0 : index
    %58 = vector.load %arg7[%c1_57, %c0_58] : memref<144x256xbf16, #tpu.memory_space<vmem>>, vector<142x256xbf16>
    %c1_59 = arith.constant 1 : index
    %c0_60 = arith.constant 0 : index
    %c0_61 = arith.constant 0 : index
    %59 = vector.load %arg2[%c1_59, %c0_60, %c0_61] : memref<3x256x256xbf16, #tpu.memory_space<vmem>>, vector<1x256x256xbf16>
    %60 = vector.shape_cast %59 : vector<1x256x256xbf16> to vector<256x256xbf16>
    %cst_62 = arith.constant dense<0.000000e+00> : vector<142x256xf32>
    %61 = tpu.matmul %58, %60, %cst_62 {dimension_numbers = #tpu.dot_dimension_numbers<[1], [0], [0], [1], [0, 0, 1, 1], [], []>} : vector<142x256xbf16>, vector<256x256xbf16>, vector<142x256xf32> -> vector<142x256xf32>
    %62 = arith.addf %57, %61 : vector<142x256xf32>
    %c0_63 = arith.constant 0 : index
    %c0_64 = arith.constant 0 : index
    %63 = vector.load %arg9[%c0_63, %c0_64] : memref<142x256xf32, #tpu.memory_space<vmem>>, vector<142x256xf32>
    tpu.vector_store %arg9[%c0_63, %c0_64], %62 {strides = array<i32>} : memref<142x256xf32, #tpu.memory_space<vmem>>, vector<142x256xf32>,
    %c0_65 = arith.constant 0 : index
    %c0_66 = arith.constant 0 : index
    %64 = vector.load %arg9[%c0_65, %c0_66] : memref<142x256xf32, #tpu.memory_space<vmem>>, vector<142x256xf32>
    %c2_67 = arith.constant 2 : index
    %c0_68 = arith.constant 0 : index
    %65 = vector.load %arg7[%c2_67, %c0_68] : memref<144x256xbf16, #tpu.memory_space<vmem>>, vector<142x256xbf16>
    %c2_69 = arith.constant 2 : index
    %c0_70 = arith.constant 0 : index
    %c0_71 = arith.constant 0 : index
    %66 = vector.load %arg2[%c2_69, %c0_70, %c0_71] : memref<3x256x256xbf16, #tpu.memory_space<vmem>>, vector<1x256x256xbf16>
    %67 = vector.shape_cast %66 : vector<1x256x256xbf16> to vector<256x256xbf16>
    %cst_72 = arith.constant dense<0.000000e+00> : vector<142x256xf32>
    %68 = tpu.matmul %65, %67, %cst_72 {dimension_numbers = #tpu.dot_dimension_numbers<[1], [0], [0], [1], [0, 0, 1, 1], [], []>} : vector<142x256xbf16>, vector<256x256xbf16>, vector<142x256xf32> -> vector<142x256xf32>
    %69 = arith.addf %64, %68 : vector<142x256xf32>
    %c0_73 = arith.constant 0 : index
    %c0_74 = arith.constant 0 : index
    %70 = vector.load %arg9[%c0_73, %c0_74] : memref<142x256xf32, #tpu.memory_space<vmem>>, vector<142x256xf32>
    tpu.vector_store %arg9[%c0_73, %c0_74], %69 {strides = array<i32>} : memref<142x256xf32, #tpu.memory_space<vmem>>, vector<142x256xf32>,
    %c0_75 = arith.constant 0 : index
    %c0_76 = arith.constant 0 : index
    %71 = vector.load %arg8[%c0_75, %c0_76] : memref<144x256xbf16, #tpu.memory_space<vmem>>, vector<1x256xbf16>
    tpu.vector_store %arg8[%c0_75, %c0_76], %1 {strides = array<i32>} : memref<144x256xbf16, #tpu.memory_space<vmem>>, vector<1x256xbf16>,
    %c0_77 = arith.constant 0 : index
    %c0_78 = arith.constant 0 : index
    %72 = vector.load %arg9[%c0_77, %c0_78] : memref<142x256xf32, #tpu.memory_space<vmem>>, vector<16x256xf32>
    %73 = vector.broadcast %2 : vector<1x256xf32> to vector<16x256xf32>
    %74 = arith.addf %72, %73 : vector<16x256xf32>
    %cst_79 = arith.constant 0.000000e+00 : f32
    %75 = vector.broadcast %cst_79 : f32 to vector<16x256xf32>
    %76 = arith.maximumf %74, %75 : vector<16x256xf32>
    %77 = arith.truncf %76 : vector<16x256xf32> to vector<16x256xbf16>
    %c1_80 = arith.constant 1 : index
    %c0_81 = arith.constant 0 : index
    %78 = vector.load %arg8[%c1_80, %c0_81] : memref<144x256xbf16, #tpu.memory_space<vmem>>, vector<16x256xbf16>
    tpu.vector_store %arg8[%c1_80, %c0_81], %77 {strides = array<i32>} : memref<144x256xbf16, #tpu.memory_space<vmem>>, vector<16x256xbf16>,
    %c17_82 = arith.constant 17 : index
    %c0_83 = arith.constant 0 : index
    %79 = vector.load %arg8[%c17_82, %c0_83] : memref<144x256xbf16, #tpu.memory_space<vmem>>, vector<1x256xbf16>
    tpu.vector_store %arg8[%c17_82, %c0_83], %1 {strides = array<i32>} : memref<144x256xbf16, #tpu.memory_space<vmem>>, vector<1x256xbf16>,
    %c18_84 = arith.constant 18 : index
    %c0_85 = arith.constant 0 : index
    %80 = vector.load %arg8[%c18_84, %c0_85] : memref<144x256xbf16, #tpu.memory_space<vmem>>, vector<1x256xbf16>
    tpu.vector_store %arg8[%c18_84, %c0_85], %1 {strides = array<i32>} : memref<144x256xbf16, #tpu.memory_space<vmem>>, vector<1x256xbf16>,
    %c18_86 = arith.constant 18 : index
    %c0_87 = arith.constant 0 : index
    %81 = vector.load %arg9[%c18_86, %c0_87] : memref<142x256xf32, #tpu.memory_space<vmem>>, vector<16x256xf32>
    %82 = vector.broadcast %2 : vector<1x256xf32> to vector<16x256xf32>
    %83 = arith.addf %81, %82 : vector<16x256xf32>
    %cst_88 = arith.constant 0.000000e+00 : f32
    %84 = vector.broadcast %cst_88 : f32 to vector<16x256xf32>
    %85 = arith.maximumf %83, %84 : vector<16x256xf32>
    %86 = arith.truncf %85 : vector<16x256xf32> to vector<16x256xbf16>
    %c19_89 = arith.constant 19 : index
    %c0_90 = arith.constant 0 : index
    %87 = vector.load %arg8[%c19_89, %c0_90] : memref<144x256xbf16, #tpu.memory_space<vmem>>, vector<16x256xbf16>
    tpu.vector_store %arg8[%c19_89, %c0_90], %86 {strides = array<i32>} : memref<144x256xbf16, #tpu.memory_space<vmem>>, vector<16x256xbf16>,
    %c35_91 = arith.constant 35 : index
    %c0_92 = arith.constant 0 : index
    %88 = vector.load %arg8[%c35_91, %c0_92] : memref<144x256xbf16, #tpu.memory_space<vmem>>, vector<1x256xbf16>
    tpu.vector_store %arg8[%c35_91, %c0_92], %1 {strides = array<i32>} : memref<144x256xbf16, #tpu.memory_space<vmem>>, vector<1x256xbf16>,
    %c36_93 = arith.constant 36 : index
    %c0_94 = arith.constant 0 : index
    %89 = vector.load %arg8[%c36_93, %c0_94] : memref<144x256xbf16, #tpu.memory_space<vmem>>, vector<1x256xbf16>
    tpu.vector_store %arg8[%c36_93, %c0_94], %1 {strides = array<i32>} : memref<144x256xbf16, #tpu.memory_space<vmem>>, vector<1x256xbf16>,
    %c36_95 = arith.constant 36 : index
    %c0_96 = arith.constant 0 : index
    %90 = vector.load %arg9[%c36_95, %c0_96] : memref<142x256xf32, #tpu.memory_space<vmem>>, vector<16x256xf32>
    %91 = vector.broadcast %2 : vector<1x256xf32> to vector<16x256xf32>
    %92 = arith.addf %90, %91 : vector<16x256xf32>
    %cst_97 = arith.constant 0.000000e+00 : f32
    %93 = vector.broadcast %cst_97 : f32 to vector<16x256xf32>
    %94 = arith.maximumf %92, %93 : vector<16x256xf32>
    %95 = arith.truncf %94 : vector<16x256xf32> to vector<16x256xbf16>
    %c37_98 = arith.constant 37 : index
    %c0_99 = arith.constant 0 : index
    %96 = vector.load %arg8[%c37_98, %c0_99] : memref<144x256xbf16, #tpu.memory_space<vmem>>, vector<16x256xbf16>
    tpu.vector_store %arg8[%c37_98, %c0_99], %95 {strides = array<i32>} : memref<144x256xbf16, #tpu.memory_space<vmem>>, vector<16x256xbf16>,
    %c53_100 = arith.constant 53 : index
    %c0_101 = arith.constant 0 : index
    %97 = vector.load %arg8[%c53_100, %c0_101] : memref<144x256xbf16, #tpu.memory_space<vmem>>, vector<1x256xbf16>
    tpu.vector_store %arg8[%c53_100, %c0_101], %1 {strides = array<i32>} : memref<144x256xbf16, #tpu.memory_space<vmem>>, vector<1x256xbf16>,
    %c54_102 = arith.constant 54 : index
    %c0_103 = arith.constant 0 : index
    %98 = vector.load %arg8[%c54_102, %c0_103] : memref<144x256xbf16, #tpu.memory_space<vmem>>, vector<1x256xbf16>
    tpu.vector_store %arg8[%c54_102, %c0_103], %1 {strides = array<i32>} : memref<144x256xbf16, #tpu.memory_space<vmem>>, vector<1x256xbf16>,
    %c54_104 = arith.constant 54 : index
    %c0_105 = arith.constant 0 : index
    %99 = vector.load %arg9[%c54_104, %c0_105] : memref<142x256xf32, #tpu.memory_space<vmem>>, vector<16x256xf32>
    %100 = vector.broadcast %2 : vector<1x256xf32> to vector<16x256xf32>
    %101 = arith.addf %99, %100 : vector<16x256xf32>
    %cst_106 = arith.constant 0.000000e+00 : f32
    %102 = vector.broadcast %cst_106 : f32 to vector<16x256xf32>
    %103 = arith.maximumf %101, %102 : vector<16x256xf32>
    %104 = arith.truncf %103 : vector<16x256xf32> to vector<16x256xbf16>
    %c55_107 = arith.constant 55 : index
    %c0_108 = arith.constant 0 : index
    %105 = vector.load %arg8[%c55_107, %c0_108] : memref<144x256xbf16, #tpu.memory_space<vmem>>, vector<16x256xbf16>
    tpu.vector_store %arg8[%c55_107, %c0_108], %104 {strides = array<i32>} : memref<144x256xbf16, #tpu.memory_space<vmem>>, vector<16x256xbf16>,
    %c71_109 = arith.constant 71 : index
    %c0_110 = arith.constant 0 : index
    %106 = vector.load %arg8[%c71_109, %c0_110] : memref<144x256xbf16, #tpu.memory_space<vmem>>, vector<1x256xbf16>
    tpu.vector_store %arg8[%c71_109, %c0_110], %1 {strides = array<i32>} : memref<144x256xbf16, #tpu.memory_space<vmem>>, vector<1x256xbf16>,
    %c72_111 = arith.constant 72 : index
    %c0_112 = arith.constant 0 : index
    %107 = vector.load %arg8[%c72_111, %c0_112] : memref<144x256xbf16, #tpu.memory_space<vmem>>, vector<1x256xbf16>
    tpu.vector_store %arg8[%c72_111, %c0_112], %1 {strides = array<i32>} : memref<144x256xbf16, #tpu.memory_space<vmem>>, vector<1x256xbf16>,
    %c72_113 = arith.constant 72 : index
    %c0_114 = arith.constant 0 : index
    %108 = vector.load %arg9[%c72_113, %c0_114] : memref<142x256xf32, #tpu.memory_space<vmem>>, vector<16x256xf32>
    %109 = vector.broadcast %2 : vector<1x256xf32> to vector<16x256xf32>
    %110 = arith.addf %108, %109 : vector<16x256xf32>
    %cst_115 = arith.constant 0.000000e+00 : f32
    %111 = vector.broadcast %cst_115 : f32 to vector<16x256xf32>
    %112 = arith.maximumf %110, %111 : vector<16x256xf32>
    %113 = arith.truncf %112 : vector<16x256xf32> to vector<16x256xbf16>
    %c73_116 = arith.constant 73 : index
    %c0_117 = arith.constant 0 : index
    %114 = vector.load %arg8[%c73_116, %c0_117] : memref<144x256xbf16, #tpu.memory_space<vmem>>, vector<16x256xbf16>
    tpu.vector_store %arg8[%c73_116, %c0_117], %113 {strides = array<i32>} : memref<144x256xbf16, #tpu.memory_space<vmem>>, vector<16x256xbf16>,
    %c89_118 = arith.constant 89 : index
    %c0_119 = arith.constant 0 : index
    %115 = vector.load %arg8[%c89_118, %c0_119] : memref<144x256xbf16, #tpu.memory_space<vmem>>, vector<1x256xbf16>
    tpu.vector_store %arg8[%c89_118, %c0_119], %1 {strides = array<i32>} : memref<144x256xbf16, #tpu.memory_space<vmem>>, vector<1x256xbf16>,
    %c90_120 = arith.constant 90 : index
    %c0_121 = arith.constant 0 : index
    %116 = vector.load %arg8[%c90_120, %c0_121] : memref<144x256xbf16, #tpu.memory_space<vmem>>, vector<1x256xbf16>
    tpu.vector_store %arg8[%c90_120, %c0_121], %1 {strides = array<i32>} : memref<144x256xbf16, #tpu.memory_space<vmem>>, vector<1x256xbf16>,
    %c90_122 = arith.constant 90 : index
    %c0_123 = arith.constant 0 : index
    %117 = vector.load %arg9[%c90_122, %c0_123] : memref<142x256xf32, #tpu.memory_space<vmem>>, vector<16x256xf32>
    %118 = vector.broadcast %2 : vector<1x256xf32> to vector<16x256xf32>
    %119 = arith.addf %117, %118 : vector<16x256xf32>
    %cst_124 = arith.constant 0.000000e+00 : f32
    %120 = vector.broadcast %cst_124 : f32 to vector<16x256xf32>
    %121 = arith.maximumf %119, %120 : vector<16x256xf32>
    %122 = arith.truncf %121 : vector<16x256xf32> to vector<16x256xbf16>
    %c91_125 = arith.constant 91 : index
    %c0_126 = arith.constant 0 : index
    %123 = vector.load %arg8[%c91_125, %c0_126] : memref<144x256xbf16, #tpu.memory_space<vmem>>, vector<16x256xbf16>
    tpu.vector_store %arg8[%c91_125, %c0_126], %122 {strides = array<i32>} : memref<144x256xbf16, #tpu.memory_space<vmem>>, vector<16x256xbf16>,
    %c107_127 = arith.constant 107 : index
    %c0_128 = arith.constant 0 : index
    %124 = vector.load %arg8[%c107_127, %c0_128] : memref<144x256xbf16, #tpu.memory_space<vmem>>, vector<1x256xbf16>
    tpu.vector_store %arg8[%c107_127, %c0_128], %1 {strides = array<i32>} : memref<144x256xbf16, #tpu.memory_space<vmem>>, vector<1x256xbf16>,
    %c108_129 = arith.constant 108 : index
    %c0_130 = arith.constant 0 : index
    %125 = vector.load %arg8[%c108_129, %c0_130] : memref<144x256xbf16, #tpu.memory_space<vmem>>, vector<1x256xbf16>
    tpu.vector_store %arg8[%c108_129, %c0_130], %1 {strides = array<i32>} : memref<144x256xbf16, #tpu.memory_space<vmem>>, vector<1x256xbf16>,
    %c108_131 = arith.constant 108 : index
    %c0_132 = arith.constant 0 : index
    %126 = vector.load %arg9[%c108_131, %c0_132] : memref<142x256xf32, #tpu.memory_space<vmem>>, vector<16x256xf32>
    %127 = vector.broadcast %2 : vector<1x256xf32> to vector<16x256xf32>
    %128 = arith.addf %126, %127 : vector<16x256xf32>
    %cst_133 = arith.constant 0.000000e+00 : f32
    %129 = vector.broadcast %cst_133 : f32 to vector<16x256xf32>
    %130 = arith.maximumf %128, %129 : vector<16x256xf32>
    %131 = arith.truncf %130 : vector<16x256xf32> to vector<16x256xbf16>
    %c109_134 = arith.constant 109 : index
    %c0_135 = arith.constant 0 : index
    %132 = vector.load %arg8[%c109_134, %c0_135] : memref<144x256xbf16, #tpu.memory_space<vmem>>, vector<16x256xbf16>
    tpu.vector_store %arg8[%c109_134, %c0_135], %131 {strides = array<i32>} : memref<144x256xbf16, #tpu.memory_space<vmem>>, vector<16x256xbf16>,
    %c125_136 = arith.constant 125 : index
    %c0_137 = arith.constant 0 : index
    %133 = vector.load %arg8[%c125_136, %c0_137] : memref<144x256xbf16, #tpu.memory_space<vmem>>, vector<1x256xbf16>
    tpu.vector_store %arg8[%c125_136, %c0_137], %1 {strides = array<i32>} : memref<144x256xbf16, #tpu.memory_space<vmem>>, vector<1x256xbf16>,
    %c126_138 = arith.constant 126 : index
    %c0_139 = arith.constant 0 : index
    %134 = vector.load %arg8[%c126_138, %c0_139] : memref<144x256xbf16, #tpu.memory_space<vmem>>, vector<1x256xbf16>
    tpu.vector_store %arg8[%c126_138, %c0_139], %1 {strides = array<i32>} : memref<144x256xbf16, #tpu.memory_space<vmem>>, vector<1x256xbf16>,
    %c126_140 = arith.constant 126 : index
    %c0_141 = arith.constant 0 : index
    %135 = vector.load %arg9[%c126_140, %c0_141] : memref<142x256xf32, #tpu.memory_space<vmem>>, vector<16x256xf32>
    %136 = vector.broadcast %2 : vector<1x256xf32> to vector<16x256xf32>
    %137 = arith.addf %135, %136 : vector<16x256xf32>
    %cst_142 = arith.constant 0.000000e+00 : f32
    %138 = vector.broadcast %cst_142 : f32 to vector<16x256xf32>
    %139 = arith.maximumf %137, %138 : vector<16x256xf32>
    %140 = arith.truncf %139 : vector<16x256xf32> to vector<16x256xbf16>
    %c127_143 = arith.constant 127 : index
    %c0_144 = arith.constant 0 : index
    %141 = vector.load %arg8[%c127_143, %c0_144] : memref<144x256xbf16, #tpu.memory_space<vmem>>, vector<16x256xbf16>
    tpu.vector_store %arg8[%c127_143, %c0_144], %140 {strides = array<i32>} : memref<144x256xbf16, #tpu.memory_space<vmem>>, vector<16x256xbf16>,
    %c143_145 = arith.constant 143 : index
    %c0_146 = arith.constant 0 : index
    %142 = vector.load %arg8[%c143_145, %c0_146] : memref<144x256xbf16, #tpu.memory_space<vmem>>, vector<1x256xbf16>
    tpu.vector_store %arg8[%c143_145, %c0_146], %1 {strides = array<i32>} : memref<144x256xbf16, #tpu.memory_space<vmem>>, vector<1x256xbf16>,
    %c0_147 = arith.constant 0 : index
    %c0_148 = arith.constant 0 : index
    %143 = vector.load %arg8[%c0_147, %c0_148] : memref<144x256xbf16, #tpu.memory_space<vmem>>, vector<142x256xbf16>
    %c0_149 = arith.constant 0 : index
    %c0_150 = arith.constant 0 : index
    %c0_151 = arith.constant 0 : index
    %144 = vector.load %arg4[%c0_149, %c0_150, %c0_151] : memref<3x256x256xbf16, #tpu.memory_space<vmem>>, vector<1x256x256xbf16>
    %145 = vector.shape_cast %144 : vector<1x256x256xbf16> to vector<256x256xbf16>
    %cst_152 = arith.constant dense<0.000000e+00> : vector<142x256xf32>
    %146 = tpu.matmul %143, %145, %cst_152 {dimension_numbers = #tpu.dot_dimension_numbers<[1], [0], [0], [1], [0, 0, 1, 1], [], []>} : vector<142x256xbf16>, vector<256x256xbf16>, vector<142x256xf32> -> vector<142x256xf32>
    %c0_153 = arith.constant 0 : index
    %c0_154 = arith.constant 0 : index
    %147 = vector.load %arg10[%c0_153, %c0_154] : memref<142x256xf32, #tpu.memory_space<vmem>>, vector<142x256xf32>
    tpu.vector_store %arg10[%c0_153, %c0_154], %146 {strides = array<i32>} : memref<142x256xf32, #tpu.memory_space<vmem>>, vector<142x256xf32>,
    %c0_155 = arith.constant 0 : index
    %c0_156 = arith.constant 0 : index
    %148 = vector.load %arg10[%c0_155, %c0_156] : memref<142x256xf32, #tpu.memory_space<vmem>>, vector<142x256xf32>
    %c1_157 = arith.constant 1 : index
    %c0_158 = arith.constant 0 : index
    %149 = vector.load %arg8[%c1_157, %c0_158] : memref<144x256xbf16, #tpu.memory_space<vmem>>, vector<142x256xbf16>
    %c1_159 = arith.constant 1 : index
    %c0_160 = arith.constant 0 : index
    %c0_161 = arith.constant 0 : index
    %150 = vector.load %arg4[%c1_159, %c0_160, %c0_161] : memref<3x256x256xbf16, #tpu.memory_space<vmem>>, vector<1x256x256xbf16>
    %151 = vector.shape_cast %150 : vector<1x256x256xbf16> to vector<256x256xbf16>
    %cst_162 = arith.constant dense<0.000000e+00> : vector<142x256xf32>
    %152 = tpu.matmul %149, %151, %cst_162 {dimension_numbers = #tpu.dot_dimension_numbers<[1], [0], [0], [1], [0, 0, 1, 1], [], []>} : vector<142x256xbf16>, vector<256x256xbf16>, vector<142x256xf32> -> vector<142x256xf32>
    %153 = arith.addf %148, %152 : vector<142x256xf32>
    %c0_163 = arith.constant 0 : index
    %c0_164 = arith.constant 0 : index
    %154 = vector.load %arg10[%c0_163, %c0_164] : memref<142x256xf32, #tpu.memory_space<vmem>>, vector<142x256xf32>
    tpu.vector_store %arg10[%c0_163, %c0_164], %153 {strides = array<i32>} : memref<142x256xf32, #tpu.memory_space<vmem>>, vector<142x256xf32>,
    %c0_165 = arith.constant 0 : index
    %c0_166 = arith.constant 0 : index
    %155 = vector.load %arg10[%c0_165, %c0_166] : memref<142x256xf32, #tpu.memory_space<vmem>>, vector<142x256xf32>
    %c2_167 = arith.constant 2 : index
    %c0_168 = arith.constant 0 : index
    %156 = vector.load %arg8[%c2_167, %c0_168] : memref<144x256xbf16, #tpu.memory_space<vmem>>, vector<142x256xbf16>
    %c2_169 = arith.constant 2 : index
    %c0_170 = arith.constant 0 : index
    %c0_171 = arith.constant 0 : index
    %157 = vector.load %arg4[%c2_169, %c0_170, %c0_171] : memref<3x256x256xbf16, #tpu.memory_space<vmem>>, vector<1x256x256xbf16>
    %158 = vector.shape_cast %157 : vector<1x256x256xbf16> to vector<256x256xbf16>
    %cst_172 = arith.constant dense<0.000000e+00> : vector<142x256xf32>
    %159 = tpu.matmul %156, %158, %cst_172 {dimension_numbers = #tpu.dot_dimension_numbers<[1], [0], [0], [1], [0, 0, 1, 1], [], []>} : vector<142x256xbf16>, vector<256x256xbf16>, vector<142x256xf32> -> vector<142x256xf32>
    %160 = arith.addf %155, %159 : vector<142x256xf32>
    %c0_173 = arith.constant 0 : index
    %c0_174 = arith.constant 0 : index
    %161 = vector.load %arg10[%c0_173, %c0_174] : memref<142x256xf32, #tpu.memory_space<vmem>>, vector<142x256xf32>
    tpu.vector_store %arg10[%c0_173, %c0_174], %160 {strides = array<i32>} : memref<142x256xf32, #tpu.memory_space<vmem>>, vector<142x256xf32>,
    %c0_175 = arith.constant 0 : index
    %c0_176 = arith.constant 0 : index
    %162 = vector.load %arg10[%c0_175, %c0_176] : memref<142x256xf32, #tpu.memory_space<vmem>>, vector<16x256xf32>
    %163 = vector.broadcast %3 : vector<1x256xf32> to vector<16x256xf32>
    %164 = arith.addf %162, %163 : vector<16x256xf32>
    %c0_177 = arith.constant 0 : index
    %c0_178 = arith.constant 0 : index
    %c0_179 = arith.constant 0 : index
    %165 = vector.load %arg6[%c0_177, %c0_178, %c0_179] : memref<8x16x256xf32, #tpu.memory_space<vmem>>, vector<1x16x256xf32>
    %166 = vector.shape_cast %165 : vector<1x16x256xf32> to vector<16x256xf32>
    %167 = vector.shape_cast %164 : vector<16x256xf32> to vector<1x16x256xf32>
    tpu.vector_store %arg6[%c0_177, %c0_178, %c0_179], %167 {strides = array<i32>} : memref<8x16x256xf32, #tpu.memory_space<vmem>>, vector<1x16x256xf32>,
    %c18_180 = arith.constant 18 : index
    %c0_181 = arith.constant 0 : index
    %168 = vector.load %arg10[%c18_180, %c0_181] : memref<142x256xf32, #tpu.memory_space<vmem>>, vector<16x256xf32>
    %169 = vector.broadcast %3 : vector<1x256xf32> to vector<16x256xf32>
    %170 = arith.addf %168, %169 : vector<16x256xf32>
    %c1_182 = arith.constant 1 : index
    %c0_183 = arith.constant 0 : index
    %c0_184 = arith.constant 0 : index
    %171 = vector.load %arg6[%c1_182, %c0_183, %c0_184] : memref<8x16x256xf32, #tpu.memory_space<vmem>>, vector<1x16x256xf32>
    %172 = vector.shape_cast %171 : vector<1x16x256xf32> to vector<16x256xf32>
    %173 = vector.shape_cast %170 : vector<16x256xf32> to vector<1x16x256xf32>
    tpu.vector_store %arg6[%c1_182, %c0_183, %c0_184], %173 {strides = array<i32>} : memref<8x16x256xf32, #tpu.memory_space<vmem>>, vector<1x16x256xf32>,
    %c36_185 = arith.constant 36 : index
    %c0_186 = arith.constant 0 : index
    %174 = vector.load %arg10[%c36_185, %c0_186] : memref<142x256xf32, #tpu.memory_space<vmem>>, vector<16x256xf32>
    %175 = vector.broadcast %3 : vector<1x256xf32> to vector<16x256xf32>
    %176 = arith.addf %174, %175 : vector<16x256xf32>
    %c2_187 = arith.constant 2 : index
    %c0_188 = arith.constant 0 : index
    %c0_189 = arith.constant 0 : index
    %177 = vector.load %arg6[%c2_187, %c0_188, %c0_189] : memref<8x16x256xf32, #tpu.memory_space<vmem>>, vector<1x16x256xf32>
    %178 = vector.shape_cast %177 : vector<1x16x256xf32> to vector<16x256xf32>
    %179 = vector.shape_cast %176 : vector<16x256xf32> to vector<1x16x256xf32>
    tpu.vector_store %arg6[%c2_187, %c0_188, %c0_189], %179 {strides = array<i32>} : memref<8x16x256xf32, #tpu.memory_space<vmem>>, vector<1x16x256xf32>,
    %c54_190 = arith.constant 54 : index
    %c0_191 = arith.constant 0 : index
    %180 = vector.load %arg10[%c54_190, %c0_191] : memref<142x256xf32, #tpu.memory_space<vmem>>, vector<16x256xf32>
    %181 = vector.broadcast %3 : vector<1x256xf32> to vector<16x256xf32>
    %182 = arith.addf %180, %181 : vector<16x256xf32>
    %c3_192 = arith.constant 3 : index
    %c0_193 = arith.constant 0 : index
    %c0_194 = arith.constant 0 : index
    %183 = vector.load %arg6[%c3_192, %c0_193, %c0_194] : memref<8x16x256xf32, #tpu.memory_space<vmem>>, vector<1x16x256xf32>
    %184 = vector.shape_cast %183 : vector<1x16x256xf32> to vector<16x256xf32>
    %185 = vector.shape_cast %182 : vector<16x256xf32> to vector<1x16x256xf32>
    tpu.vector_store %arg6[%c3_192, %c0_193, %c0_194], %185 {strides = array<i32>} : memref<8x16x256xf32, #tpu.memory_space<vmem>>, vector<1x16x256xf32>,
    %c72_195 = arith.constant 72 : index
    %c0_196 = arith.constant 0 : index
    %186 = vector.load %arg10[%c72_195, %c0_196] : memref<142x256xf32, #tpu.memory_space<vmem>>, vector<16x256xf32>
    %187 = vector.broadcast %3 : vector<1x256xf32> to vector<16x256xf32>
    %188 = arith.addf %186, %187 : vector<16x256xf32>
    %c4_197 = arith.constant 4 : index
    %c0_198 = arith.constant 0 : index
    %c0_199 = arith.constant 0 : index
    %189 = vector.load %arg6[%c4_197, %c0_198, %c0_199] : memref<8x16x256xf32, #tpu.memory_space<vmem>>, vector<1x16x256xf32>
    %190 = vector.shape_cast %189 : vector<1x16x256xf32> to vector<16x256xf32>
    %191 = vector.shape_cast %188 : vector<16x256xf32> to vector<1x16x256xf32>
    tpu.vector_store %arg6[%c4_197, %c0_198, %c0_199], %191 {strides = array<i32>} : memref<8x16x256xf32, #tpu.memory_space<vmem>>, vector<1x16x256xf32>,
    %c90_200 = arith.constant 90 : index
    %c0_201 = arith.constant 0 : index
    %192 = vector.load %arg10[%c90_200, %c0_201] : memref<142x256xf32, #tpu.memory_space<vmem>>, vector<16x256xf32>
    %193 = vector.broadcast %3 : vector<1x256xf32> to vector<16x256xf32>
    %194 = arith.addf %192, %193 : vector<16x256xf32>
    %c5_202 = arith.constant 5 : index
    %c0_203 = arith.constant 0 : index
    %c0_204 = arith.constant 0 : index
    %195 = vector.load %arg6[%c5_202, %c0_203, %c0_204] : memref<8x16x256xf32, #tpu.memory_space<vmem>>, vector<1x16x256xf32>
    %196 = vector.shape_cast %195 : vector<1x16x256xf32> to vector<16x256xf32>
    %197 = vector.shape_cast %194 : vector<16x256xf32> to vector<1x16x256xf32>
    tpu.vector_store %arg6[%c5_202, %c0_203, %c0_204], %197 {strides = array<i32>} : memref<8x16x256xf32, #tpu.memory_space<vmem>>, vector<1x16x256xf32>,
    %c108_205 = arith.constant 108 : index
    %c0_206 = arith.constant 0 : index
    %198 = vector.load %arg10[%c108_205, %c0_206] : memref<142x256xf32, #tpu.memory_space<vmem>>, vector<16x256xf32>
    %199 = vector.broadcast %3 : vector<1x256xf32> to vector<16x256xf32>
    %200 = arith.addf %198, %199 : vector<16x256xf32>
    %c6_207 = arith.constant 6 : index
    %c0_208 = arith.constant 0 : index
    %c0_209 = arith.constant 0 : index
    %201 = vector.load %arg6[%c6_207, %c0_208, %c0_209] : memref<8x16x256xf32, #tpu.memory_space<vmem>>, vector<1x16x256xf32>
    %202 = vector.shape_cast %201 : vector<1x16x256xf32> to vector<16x256xf32>
    %203 = vector.shape_cast %200 : vector<16x256xf32> to vector<1x16x256xf32>
    tpu.vector_store %arg6[%c6_207, %c0_208, %c0_209], %203 {strides = array<i32>} : memref<8x16x256xf32, #tpu.memory_space<vmem>>, vector<1x16x256xf32>,
    %c126_210 = arith.constant 126 : index
    %c0_211 = arith.constant 0 : index
    %204 = vector.load %arg10[%c126_210, %c0_211] : memref<142x256xf32, #tpu.memory_space<vmem>>, vector<16x256xf32>
    %205 = vector.broadcast %3 : vector<1x256xf32> to vector<16x256xf32>
    %206 = arith.addf %204, %205 : vector<16x256xf32>
    %c7_212 = arith.constant 7 : index
    %c0_213 = arith.constant 0 : index
    %c0_214 = arith.constant 0 : index
    %207 = vector.load %arg6[%c7_212, %c0_213, %c0_214] : memref<8x16x256xf32, #tpu.memory_space<vmem>>, vector<1x16x256xf32>
    %208 = vector.shape_cast %207 : vector<1x16x256xf32> to vector<16x256xf32>
    %209 = vector.shape_cast %206 : vector<16x256xf32> to vector<1x16x256xf32>
    tpu.vector_store %arg6[%c7_212, %c0_213, %c0_214], %209 {strides = array<i32>} : memref<8x16x256xf32, #tpu.memory_space<vmem>>, vector<1x16x256xf32>,
    return
  }
  func.func @transform_0(%arg0: i32) -> (i32, i32, i32) {
    %c0_i32 = arith.constant 0 : i32
    %c0_i32_0 = arith.constant 0 : i32
    %c0_i32_1 = arith.constant 0 : i32
    return %arg0, %c0_i32, %c0_i32_0 : i32, i32, i32
  }
  func.func @transform_1(%arg0: i32) -> (i32, i32, i32) {
    %c0_i32 = arith.constant 0 : i32
    %c0_i32_0 = arith.constant 0 : i32
    %c0_i32_1 = arith.constant 0 : i32
    %c0_i32_2 = arith.constant 0 : i32
    return %c0_i32, %c0_i32_0, %c0_i32_1 : i32, i32, i32
  }
  func.func @transform_2(%arg0: i32) -> (i32, i32) {
    %c0_i32 = arith.constant 0 : i32
    %c0_i32_0 = arith.constant 0 : i32
    %c0_i32_1 = arith.constant 0 : i32
    return %c0_i32, %c0_i32_0 : i32, i32
  }
  func.func @transform_3(%arg0: i32) -> (i32, i32, i32) {
    %c0_i32 = arith.constant 0 : i32
    %c0_i32_0 = arith.constant 0 : i32
    %c0_i32_1 = arith.constant 0 : i32
    %c0_i32_2 = arith.constant 0 : i32
    return %c0_i32, %c0_i32_0, %c0_i32_1 : i32, i32, i32
  }
  func.func @transform_4(%arg0: i32) -> (i32, i32) {
    %c0_i32 = arith.constant 0 : i32
    %c0_i32_0 = arith.constant 0 : i32
    %c0_i32_1 = arith.constant 0 : i32
    return %c0_i32, %c0_i32_0 : i32, i32
  }
  func.func @transform_5(%arg0: i32) -> (i32, i32, i32) {
    %c0_i32 = arith.constant 0 : i32
    %c0_i32_0 = arith.constant 0 : i32
    %c0_i32_1 = arith.constant 0 : i32
    return %arg0, %c0_i32, %c0_i32_0 : i32, i32, i32
  }
}

</mosaic_0001>

<llo_original>
// kernel: _lambda_.1
$region0: #{_lambda_.1}
  #allocation0 [shape = 'u32[]', space=smem, size = 0x4, offset = 0x4, fixed_abs, tag = 'smem constant byte address 0x4 - core index']
  #allocation1 [shape = 'u32[144,128]{1,0:T(1,128)}', space=vmem, size = 0x12000, scoped, tag = 'internal scratch']
  #allocation2 [shape = 'bf16[144,256]{1,0:T(16,128)(2,1)}', space=vmem, size = 0x12000, scoped, tag = 'scratch operand']
  #allocation3 [shape = 'bf16[144,256]{1,0:T(16,128)(2,1)}', space=vmem, size = 0x12000, scoped, tag = 'scratch operand']
  #allocation4 [shape = 'f32[142,256]{1,0:T(8,128)}', space=vmem, size = 0x24000, scoped, tag = 'scratch operand']
  #allocation5 [shape = 'f32[142,256]{1,0:T(8,128)}', space=vmem, size = 0x24000, scoped, tag = 'scratch operand']
  %s0 = inlined_call_operand.vmem [shape: f32[16,16,256], index: 0, kind: input, shape index: {}]
  %s1 = inlined_call_operand.vmem [shape: bf16[3,256,256], index: 1, kind: input, shape index: {}]
  %s2 = inlined_call_operand.vmem [shape: f32[1,256], index: 2, kind: input, shape index: {}]
  %s3 = inlined_call_operand.vmem [shape: bf16[3,256,256], index: 3, kind: input, shape index: {}]
  %s4 = inlined_call_operand.vmem [shape: f32[1,256], index: 4, kind: input, shape index: {}]
  %s5 = inlined_call_operand.vmem [shape: f32[16,16,256], index: 5, kind: output, shape index: {}]
  %s6 = sld [smem:[#allocation0]]
  $region53: #{_lambda_.1} parent=0
    _
  %s8 = ssub.s32 1, %s6
  %s9 = scalar_select 0, %s8, %s6
  loop: start=0, step=1, limit=4
  $region2: #{_lambda_.1} parent=0 // loop_pre_header
    _
  $region3: #{_lambda_.1} parent=0 // loop_header
    %s11 = sphi 0, %s15
    %p12 = scmp.ge.s32.totalorder %s11, 4
    %s21 = sphi 0, %s23
    %s24 = sphi 0, %s21
    %s25 = sphi 0, %s24
    %s41 = sphi 0, %s25
    %s45 = sphi 0, %s45
    %s47 = sphi 0, %s45
    %s48 = sphi 0, %s47
    %s62 = sphi 0, %s48
    %s66 = sphi 0, %s66
    %s68 = sphi 0, %s66
    %s69 = sphi 0, %s68
    %s83 = sphi 0, %s69
    %s87 = sphi 0, %s87
    %s89 = sphi 0, %s87
    %s90 = sphi 0, %s89
    %s104 = sphi 0, %s90
    %s108 = sphi 0, %s108
    %s110 = sphi 0, %s108
    %s111 = sphi 0, %s110
    %s125 = sphi 0, %s111
    %s131 = sphi 0, %s133
    %s134 = sphi 0, %s131
    %s135 = sphi 0, %s134
    %s151 = sphi 0, %s135
  $region4: #{_lambda_.1} parent=0 // loop_header_branch
    %14 = sbr.rel (%p12) target = $region8
  $region5: #{_lambda_.1} parent=0 // loop_body
    %s16 = ssub.s32 %s11, 1
    %s17 = ssub.s32 %s11, 2
    %s18 = sadd.s32 %s11, 1
    %s19 = ssub.s32 %s11, %s18
    %p20 = scmp.eq.s32.totalorder %s19, 0
    %s22 = sadd.s32 %s21, 1
    %s23 = scalar_select %p20, %s21, %s22
    %p26 = pneg %p20
    %p27 = scmp.eq.s32.totalorder %s11, 1
    %p28 = por %p26, %p27
    %p29 = scmp.ne.s32.totalorder %s21, %s24
    %p30 = scmp.eq.s32.totalorder %s11, 0
    %p31 = por %p29, %p30
    %p32 = scmp.ne.s32.totalorder %s21, %s24
    %p33 = scmp.eq.s32.totalorder %s16, 1
    %p34 = por %p32, %p33
    %p35 = scmp.ne.s32.totalorder %s24, %s25
    %p36 = scmp.eq.s32.totalorder %s16, 0
    %p37 = por %p35, %p36
    %p38 = scmp.ne.s32.totalorder %s24, %s25
    %p39 = scmp.eq.s32.totalorder %s17, 1
    %p40 = por %p38, %p39
    %p42 = scmp.ne.s32.totalorder %s25, %s41
    %p43 = scmp.eq.s32.totalorder %s17, 0
    %p44 = por %p42, %p43
    %s46 = sadd.s32 %s45, 1
    %p49 = scmp.eq.s32.totalorder %s11, 1
    %p50 = scmp.ne.s32.totalorder %s45, %s47
    %p51 = scmp.eq.s32.totalorder %s11, 0
    %p52 = por %p50, %p51
    %p53 = scmp.ne.s32.totalorder %s45, %s47
    %p54 = scmp.eq.s32.totalorder %s16, 1
    %p55 = por %p53, %p54
    %p56 = scmp.ne.s32.totalorder %s47, %s48
    %p57 = scmp.eq.s32.totalorder %s16, 0
    %p58 = por %p56, %p57
    %p59 = scmp.ne.s32.totalorder %s47, %s48
    %p60 = scmp.eq.s32.totalorder %s17, 1
    %p61 = por %p59, %p60
    %p63 = scmp.ne.s32.totalorder %s48, %s62
    %p64 = scmp.eq.s32.totalorder %s17, 0
    %p65 = por %p63, %p64
    %s67 = sadd.s32 %s66, 1
    %p70 = scmp.eq.s32.totalorder %s11, 1
    %p71 = scmp.ne.s32.totalorder %s66, %s68
    %p72 = scmp.eq.s32.totalorder %s11, 0
    %p73 = por %p71, %p72
    %p74 = scmp.ne.s32.totalorder %s66, %s68
    %p75 = scmp.eq.s32.totalorder %s16, 1
    %p76 = por %p74, %p75
    %p77 = scmp.ne.s32.totalorder %s68, %s69
    %p78 = scmp.eq.s32.totalorder %s16, 0
    %p79 = por %p77, %p78
    %p80 = scmp.ne.s32.totalorder %s68, %s69
    %p81 = scmp.eq.s32.totalorder %s17, 1
    %p82 = por %p80, %p81
    %p84 = scmp.ne.s32.totalorder %s69, %s83
    %p85 = scmp.eq.s32.totalorder %s17, 0
    %p86 = por %p84, %p85
    %s88 = sadd.s32 %s87, 1
    %p91 = scmp.eq.s32.totalorder %s11, 1
    %p92 = scmp.ne.s32.totalorder %s87, %s89
    %p93 = scmp.eq.s32.totalorder %s11, 0
    %p94 = por %p92, %p93
    %p95 = scmp.ne.s32.totalorder %s87, %s89
    %p96 = scmp.eq.s32.totalorder %s16, 1
    %p97 = por %p95, %p96
    %p98 = scmp.ne.s32.totalorder %s89, %s90
    %p99 = scmp.eq.s32.totalorder %s16, 0
    %p100 = por %p98, %p99
    %p101 = scmp.ne.s32.totalorder %s89, %s90
    %p102 = scmp.eq.s32.totalorder %s17, 1
    %p103 = por %p101, %p102
    %p105 = scmp.ne.s32.totalorder %s90, %s104
    %p106 = scmp.eq.s32.totalorder %s17, 0
    %p107 = por %p105, %p106
    %s109 = sadd.s32 %s108, 1
    %p112 = scmp.eq.s32.totalorder %s11, 1
    %p113 = scmp.ne.s32.totalorder %s108, %s110
    %p114 = scmp.eq.s32.totalorder %s11, 0
    %p115 = por %p113, %p114
    %p116 = scmp.ne.s32.totalorder %s108, %s110
    %p117 = scmp.eq.s32.totalorder %s16, 1
    %p118 = por %p116, %p117
    %p119 = scmp.ne.s32.totalorder %s110, %s111
    %p120 = scmp.eq.s32.totalorder %s16, 0
    %p121 = por %p119, %p120
    %p122 = scmp.ne.s32.totalorder %s110, %s111
    %p123 = scmp.eq.s32.totalorder %s17, 1
    %p124 = por %p122, %p123
    %p126 = scmp.ne.s32.totalorder %s111, %s125
    %p127 = scmp.eq.s32.totalorder %s17, 0
    %p128 = por %p126, %p127
    %s129 = ssub.s32 %s11, %s18
    %p130 = scmp.eq.s32.totalorder %s129, 0
    %s132 = sadd.s32 %s131, 1
    %s133 = scalar_select %p130, %s131, %s132
    %p136 = pneg %p130
    %p137 = scmp.eq.s32.totalorder %s11, 1
    %p138 = por %p136, %p137
    %p139 = scmp.ne.s32.totalorder %s131, %s134
    %p140 = scmp.eq.s32.totalorder %s11, 0
    %p141 = por %p139, %p140
    %p142 = scmp.ne.s32.totalorder %s131, %s134
    %p143 = scmp.eq.s32.totalorder %s16, 1
    %p144 = por %p142, %p143
    %p145 = scmp.ne.s32.totalorder %s134, %s135
    %p146 = scmp.eq.s32.totalorder %s16, 0
    %p147 = por %p145, %p146
    %p148 = scmp.ne.s32.totalorder %s134, %s135
    %p149 = scmp.eq.s32.totalorder %s17, 1
    %p150 = por %p148, %p149
    %p152 = scmp.ne.s32.totalorder %s135, %s151
    %p153 = scmp.eq.s32.totalorder %s17, 0
    %p154 = por %p152, %p153
    %p155 = scmp.le.s32.totalorder 1, %s11
    %p156 = scmp.lt.s32.totalorder %s11, 3
    %p157 = pnand %p155, %p156
    %p158 = pneg %p157
    // Predicated region
    $region9: #{_lambda_.1} parent=5 // pred_check
      _
    $region10: #{_lambda_.1} parent=5 // pred_check_branch
      %160 = sbr.rel (%p157) target = $region12
    $region11: #{_lambda_.1} parent=5 // pred_region
      %s161 = ssub.s32 %s11, 1
      // Predicated region
      $region13: #{_lambda_.1} parent=11 // pred_check
        %p162 = pneg %p58
      $region14: #{_lambda_.1} parent=11 // pred_check_branch
        %164 = sbr.rel (%p162) target = $region16
      $region15: #{_lambda_.1} parent=11 // pred_region
        _
      $region16: #{_lambda_.1} parent=11 // pred_fallthru
        _
      // Predicated region
      $region17: #{_lambda_.1} parent=11 // pred_check
        %p165 = pneg %p79
      $region18: #{_lambda_.1} parent=11 // pred_check_branch
        %167 = sbr.rel (%p165) target = $region20
      $region19: #{_lambda_.1} parent=11 // pred_region
        _
      $region20: #{_lambda_.1} parent=11 // pred_fallthru
        _
      // Predicated region
      $region21: #{_lambda_.1} parent=11 // pred_check
        %p168 = pneg %p100
      $region22: #{_lambda_.1} parent=11 // pred_check_branch
        %170 = sbr.rel (%p168) target = $region24
      $region23: #{_lambda_.1} parent=11 // pred_region
        _
      $region24: #{_lambda_.1} parent=11 // pred_fallthru
        _
      // Predicated region
      $region25: #{_lambda_.1} parent=11 // pred_check
        %p171 = pneg %p121
      $region26: #{_lambda_.1} parent=11 // pred_check_branch
        %173 = sbr.rel (%p171) target = $region28
      $region27: #{_lambda_.1} parent=11 // pred_region
        _
      $region28: #{_lambda_.1} parent=11 // pred_fallthru
        _
    $region12: #{_lambda_.1} parent=5 // pred_fallthru
      _
    %p174 = scmp.lt.s32.totalorder %s11, 2
    // Predicated region
    $region29: #{_lambda_.1} parent=5 // pred_check
      %p175 = pneg %p174
    $region30: #{_lambda_.1} parent=5 // pred_check_branch
      %177 = sbr.rel (%p175) target = $region32
    $region31: #{_lambda_.1} parent=5 // pred_region
      // Predicated region
      $region33: #{_lambda_.1} parent=31 // pred_check
        %p178 = pneg %p31
      $region34: #{_lambda_.1} parent=31 // pred_check_branch
        %180 = sbr.rel (%p178) target = $region36
      $region35: #{_lambda_.1} parent=31 // pred_region
        %s181 = smul.u32 8, %s11
        %p182 = scmp.lt.s32.totalorder %s181, 15
        %s183 = scalar_select %p182, %s181, 15
        %s184 = smul.addr %s183, 4
        %s185 = smul.addr %s184, 8
        %s186 = scalar_lea.vmem %s0, %s185
        %s187 = smul.u32 8, %s11
      $region36: #{_lambda_.1} parent=31 // pred_fallthru
        _
    $region32: #{_lambda_.1} parent=5 // pred_fallthru
      _
    %p188 = scmp.le.s32.totalorder 1, %s11
    %p189 = scmp.lt.s32.totalorder %s11, 3
    %p190 = pnand %p188, %p189
    %p191 = pneg %p190
    // Predicated region
    $region37: #{_lambda_.1} parent=5 // pred_check
      _
    $region38: #{_lambda_.1} parent=5 // pred_check_branch
      %193 = sbr.rel (%p190) target = $region40
    $region39: #{_lambda_.1} parent=5 // pred_region
      %s194 = ssub.s32 %s11, 1
      %s195 = smul.u32 8, %s16
      %p196 = scmp.lt.s32.totalorder %s195, 15
      %s197 = scalar_select %p196, %s195, 15
      %s198 = smul.addr %s197, 4
      %s199 = smul.addr %s198, 8
      %s200 = scalar_lea.vmem %s0, %s199
      %p201 = pneg %p37
      %p202 = pneg %p34
      %p203 = pneg %p58
      %p204 = pneg %p55
      %p205 = pneg %p79
      %p206 = pneg %p76
      %p207 = pneg %p100
      %p208 = pneg %p97
      %p209 = pneg %p121
      %p210 = pneg %p118
      %p211 = pneg %p147
      %p212 = pneg %p144
      %s213 = smul.u32 8, %s16
      %p214 = scmp.lt.s32.totalorder %s213, 15
      %s215 = scalar_select %p214, %s213, 15
      %s216 = smul.addr %s215, 4
      %s217 = smul.addr %s216, 8
      %s218 = scalar_lea.vmem %s5, %s217
      %s219 = smul.u32 8, %s16
      %p220 = scmp.lt.s32.totalorder %s219, 15
      %s221 = scalar_select %p220, %s219, 15
      %s222 = smul.addr %s221, 4
      %s223 = smul.addr %s222, 8
      %s224 = scalar_lea.vmem %s0, %s223
      %s225 = smul.u32 8, %s16
      %s226 = smul.u32 8, %s16
      %p227 = scmp.lt.s32.totalorder %s226, 15
      %s228 = scalar_select %p227, %s226, 15
      %s229 = smul.addr %s228, 4
      %s230 = smul.addr %s229, 8
      %s231 = scalar_lea.vmem %s5, %s230
      %s232 = smul.u32 8, %s16
      %v234 = vld [vmem:[%s2] sm:$0x3]
      %v235 = vld [vmem:[%s4] sm:$0x3]
      %vm236 = vcmask 1040384
      %vm237 = vsmask.f32 256
      %vm238 = vmand %vm236, %vm237
      %v239 = vld [vmem:[#allocation2] sm:$0x1]
      %v240 = vsel %vm238, 0, %v239
      %241 = vst [vmem:[#allocation2] sm:$0x1] %v240
      %v242 = vld [vmem:[#allocation2 + $0x8] sm:$0x1]
      %v243 = vsel %vm238, 0, %v242
      %244 = vst [vmem:[#allocation2 + $0x8] sm:$0x1] %v243
      %v245 = vld [vmem:[%s224] sm:$0xff]
      %v246 = vld [vmem:[%s224 + $0x8] sm:$0xff]
      %v247 = vld [vmem:[%s224 + $0x10] sm:$0xff]
      %v248 = vld [vmem:[%s224 + $0x18] sm:$0xff]
      %v249 = vpack.c.bf16 %v247, %v245
      %v250 = vpack.c.bf16 %v248, %v246
      %v252 = vshrl.u32 %v249, 16
      %v254 = vrot.slane %v252, 7
      %v255 = vshll.u32 %v249, 16
      %v257 = vor.u32 %v254, %v255
      %v259 = vshrl.u32 %v250, 16
      %v261 = vrot.slane %v259, 7
      %v262 = vshll.u32 %v250, 16
      %v264 = vor.u32 %v261, %v262
      %vm269 = vcmask 1047552
      %vm270 = vsmask.f32 7938
      %vm271 = vmand %vm269, %vm270
      %v272 = vld [vmem:[#allocation2] sm:$0xff]
      %v273 = vsel %vm271, %v257, %v272
      %274 = vst [vmem:[#allocation2] sm:$0xff] %v273
      %v275 = vld [vmem:[#allocation2 + $0x8] sm:$0xff]
      %v276 = vsel %vm271, %v264, %v275
      %277 = vst [vmem:[#allocation2 + $0x8] sm:$0xff] %v276
      %v278 = vld [vmem:[#allocation2 + $0x10] sm:$0x1]
      %v279 = vsel %vm238, %v254, %v278
      %280 = vst [vmem:[#allocation2 + $0x10] sm:$0x1] %v279
      %v281 = vld [vmem:[#allocation2 + $0x18] sm:$0x1]
      %v282 = vsel %vm238, %v261, %v281
      %283 = vst [vmem:[#allocation2 + $0x18] sm:$0x1] %v282
      %vm284 = vmand %vm236, %vm270
      %v285 = vld [vmem:[#allocation2 + $0x10] sm:$0x1]
      %v286 = vsel %vm284, 0, %v285
      %287 = vst [vmem:[#allocation2 + $0x10] sm:$0x1] %v286
      %v288 = vld [vmem:[#allocation2 + $0x18] sm:$0x1]
      %v289 = vsel %vm284, 0, %v288
      %290 = vst [vmem:[#allocation2 + $0x18] sm:$0x1] %v289
      %vm291 = vcmask 1041409
      %vm292 = vsmask.f32 1280
      %vm293 = vmand %vm291, %vm292
      %v294 = vld [vmem:[#allocation2 + $0x10] sm:$0x2]
      %v295 = vsel %vm293, 0, %v294
      %296 = vst [vmem:[#allocation2 + $0x10] sm:$0x2] %v295
      %v297 = vld [vmem:[#allocation2 + $0x18] sm:$0x2]
      %v298 = vsel %vm293, 0, %v297
      %299 = vst [vmem:[#allocation2 + $0x18] sm:$0x2] %v298
      %s300 = scalar_lea.vmem %s224, 32
      %v301 = vld [vmem:[%s300] sm:$0xff]
      %v302 = vld [vmem:[%s300 + $0x8] sm:$0xff]
      %v303 = vld [vmem:[%s300 + $0x10] sm:$0xff]
      %v304 = vld [vmem:[%s300 + $0x18] sm:$0xff]
      %v305 = vpack.c.bf16 %v303, %v301
      %v306 = vpack.c.bf16 %v304, %v302
      %v308 = vshrl.u32 %v305, 16
      %v310 = vrot.slane %v308, 6
      %v311 = vshll.u32 %v305, 16
      %v313 = vrot.slane %v311, 7
      %v314 = vor.u32 %v310, %v313
      %v316 = vshrl.u32 %v306, 16
      %v318 = vrot.slane %v316, 6
      %v319 = vshll.u32 %v306, 16
      %v321 = vrot.slane %v319, 7
      %v322 = vor.u32 %v318, %v321
      %vm325 = vcmask 1047553
      %vm326 = vsmask.f32 7942
      %vm327 = vmand %vm325, %vm326
      %v328 = vld [vmem:[#allocation2 + $0x10] sm:$0xfe]
      %v329 = vsel %vm327, %v314, %v328
      %330 = vst [vmem:[#allocation2 + $0x10] sm:$0xfe] %v329
      %v331 = vld [vmem:[#allocation2 + $0x18] sm:$0xfe]
      %v332 = vsel %vm327, %v322, %v331
      %333 = vst [vmem:[#allocation2 + $0x18] sm:$0xfe] %v332
      %vm334 = vcmask 1041408
      %vm335 = vmand %vm334, %vm292
      %v336 = vld [vmem:[#allocation2 + $0x20] sm:$0x3]
      %v337 = vsel %vm335, %v314, %v336
      %338 = vst [vmem:[#allocation2 + $0x20] sm:$0x3] %v337
      %v339 = vld [vmem:[#allocation2 + $0x28] sm:$0x3]
      %v340 = vsel %vm335, %v322, %v339
      %341 = vst [vmem:[#allocation2 + $0x28] sm:$0x3] %v340
      %vm342 = vmand %vm291, %vm326
      %v343 = vld [vmem:[#allocation2 + $0x20] sm:$0x2]
      %v344 = vsel %vm342, 0, %v343
      %345 = vst [vmem:[#allocation2 + $0x20] sm:$0x2] %v344
      %v346 = vld [vmem:[#allocation2 + $0x28] sm:$0x2]
      %v347 = vsel %vm342, 0, %v346
      %348 = vst [vmem:[#allocation2 + $0x28] sm:$0x2] %v347
      %vm349 = vcmask 1042434
      %vm350 = vsmask.f32 2304
      %vm351 = vmand %vm349, %vm350
      %v352 = vld [vmem:[#allocation2 + $0x20] sm:$0x4]
      %v353 = vsel %vm351, 0, %v352
      %354 = vst [vmem:[#allocation2 + $0x20] sm:$0x4] %v353
      %v355 = vld [vmem:[#allocation2 + $0x28] sm:$0x4]
      %v356 = vsel %vm351, 0, %v355
      %357 = vst [vmem:[#allocation2 + $0x28] sm:$0x4] %v356
      %s358 = scalar_lea.vmem %s224, 64
      %v359 = vld [vmem:[%s358] sm:$0xff]
      %v360 = vld [vmem:[%s358 + $0x8] sm:$0xff]
      %v361 = vld [vmem:[%s358 + $0x10] sm:$0xff]
      %v362 = vld [vmem:[%s358 + $0x18] sm:$0xff]
      %v363 = vpack.c.bf16 %v361, %v359
      %v364 = vpack.c.bf16 %v362, %v360
      %v366 = vshrl.u32 %v363, 16
      %v368 = vrot.slane %v366, 5
      %v369 = vshll.u32 %v363, 16
      %v371 = vrot.slane %v369, 6
      %v372 = vor.u32 %v368, %v371
      %v374 = vshrl.u32 %v364, 16
      %v376 = vrot.slane %v374, 5
      %v377 = vshll.u32 %v364, 16
      %v379 = vrot.slane %v377, 6
      %v380 = vor.u32 %v376, %v379
      %vm383 = vcmask 1047554
      %vm384 = vsmask.f32 7946
      %vm385 = vmand %vm383, %vm384
      %v386 = vld [vmem:[#allocation2 + $0x20] sm:$0xfc]
      %v387 = vsel %vm385, %v372, %v386
      %388 = vst [vmem:[#allocation2 + $0x20] sm:$0xfc] %v387
      %v389 = vld [vmem:[#allocation2 + $0x28] sm:$0xfc]
      %v390 = vsel %vm385, %v380, %v389
      %391 = vst [vmem:[#allocation2 + $0x28] sm:$0xfc] %v390
      %vm392 = vcmask 1042432
      %vm393 = vmand %vm392, %vm350
      %v394 = vld [vmem:[#allocation2 + $0x30] sm:$0x7]
      %v395 = vsel %vm393, %v372, %v394
      %396 = vst [vmem:[#allocation2 + $0x30] sm:$0x7] %v395
      %v397 = vld [vmem:[#allocation2 + $0x38] sm:$0x7]
      %v398 = vsel %vm393, %v380, %v397
      %399 = vst [vmem:[#allocation2 + $0x38] sm:$0x7] %v398
      %vm400 = vmand %vm349, %vm384
      %v401 = vld [vmem:[#allocation2 + $0x30] sm:$0x4]
      %v402 = vsel %vm400, 0, %v401
      %403 = vst [vmem:[#allocation2 + $0x30] sm:$0x4] %v402
      %v404 = vld [vmem:[#allocation2 + $0x38] sm:$0x4]
      %v405 = vsel %vm400, 0, %v404
      %406 = vst [vmem:[#allocation2 + $0x38] sm:$0x4] %v405
      %vm407 = vcmask 1043459
      %vm408 = vsmask.f32 3328
      %vm409 = vmand %vm407, %vm408
      %v410 = vld [vmem:[#allocation2 + $0x30] sm:$0x8]
      %v411 = vsel %vm409, 0, %v410
      %412 = vst [vmem:[#allocation2 + $0x30] sm:$0x8] %v411
      %v413 = vld [vmem:[#allocation2 + $0x38] sm:$0x8]
      %v414 = vsel %vm409, 0, %v413
      %415 = vst [vmem:[#allocation2 + $0x38] sm:$0x8] %v414
      %s416 = scalar_lea.vmem %s224, 96
      %v417 = vld [vmem:[%s416] sm:$0xff]
      %v418 = vld [vmem:[%s416 + $0x8] sm:$0xff]
      %v419 = vld [vmem:[%s416 + $0x10] sm:$0xff]
      %v420 = vld [vmem:[%s416 + $0x18] sm:$0xff]
      %v421 = vpack.c.bf16 %v419, %v417
      %v422 = vpack.c.bf16 %v420, %v418
      %v424 = vshrl.u32 %v421, 16
      %v426 = vrot.slane %v424, 4
      %v427 = vshll.u32 %v421, 16
      %v429 = vrot.slane %v427, 5
      %v430 = vor.u32 %v426, %v429
      %v432 = vshrl.u32 %v422, 16
      %v434 = vrot.slane %v432, 4
      %v435 = vshll.u32 %v422, 16
      %v437 = vrot.slane %v435, 5
      %v438 = vor.u32 %v434, %v437
      %vm441 = vcmask 1047555
      %vm442 = vsmask.f32 7950
      %vm443 = vmand %vm441, %vm442
      %v444 = vld [vmem:[#allocation2 + $0x30] sm:$0xf8]
      %v445 = vsel %vm443, %v430, %v444
      %446 = vst [vmem:[#allocation2 + $0x30] sm:$0xf8] %v445
      %v447 = vld [vmem:[#allocation2 + $0x38] sm:$0xf8]
      %v448 = vsel %vm443, %v438, %v447
      %449 = vst [vmem:[#allocation2 + $0x38] sm:$0xf8] %v448
      %vm450 = vcmask 1043456
      %vm451 = vmand %vm450, %vm408
      %v452 = vld [vmem:[#allocation2 + $0x40] sm:$0xf]
      %v453 = vsel %vm451, %v430, %v452
      %454 = vst [vmem:[#allocation2 + $0x40] sm:$0xf] %v453
      %v455 = vld [vmem:[#allocation2 + $0x48] sm:$0xf]
      %v456 = vsel %vm451, %v438, %v455
      %457 = vst [vmem:[#allocation2 + $0x48] sm:$0xf] %v456
      %vm458 = vmand %vm407, %vm442
      %v459 = vld [vmem:[#allocation2 + $0x40] sm:$0x8]
      %v460 = vsel %vm458, 0, %v459
      %461 = vst [vmem:[#allocation2 + $0x40] sm:$0x8] %v460
      %v462 = vld [vmem:[#allocation2 + $0x48] sm:$0x8]
      %v463 = vsel %vm458, 0, %v462
      %464 = vst [vmem:[#allocation2 + $0x48] sm:$0x8] %v463
      %vm465 = vcmask 1044484
      %vm466 = vsmask.f32 4352
      %vm467 = vmand %vm465, %vm466
      %v468 = vld [vmem:[#allocation2 + $0x40] sm:$0x10]
      %v469 = vsel %vm467, 0, %v468
      %470 = vst [vmem:[#allocation2 + $0x40] sm:$0x10] %v469
      %v471 = vld [vmem:[#allocation2 + $0x48] sm:$0x10]
      %v472 = vsel %vm467, 0, %v471
      %473 = vst [vmem:[#allocation2 + $0x48] sm:$0x10] %v472
      %s474 = scalar_lea.vmem %s224, 128
      %v475 = vld [vmem:[%s474] sm:$0xff]
      %v476 = vld [vmem:[%s474 + $0x8] sm:$0xff]
      %v477 = vld [vmem:[%s474 + $0x10] sm:$0xff]
      %v478 = vld [vmem:[%s474 + $0x18] sm:$0xff]
      %v479 = vpack.c.bf16 %v477, %v475
      %v480 = vpack.c.bf16 %v478, %v476
      %v482 = vshrl.u32 %v479, 16
      %v484 = vrot.slane %v482, 3
      %v485 = vshll.u32 %v479, 16
      %v487 = vrot.slane %v485, 4
      %v488 = vor.u32 %v484, %v487
      %v490 = vshrl.u32 %v480, 16
      %v492 = vrot.slane %v490, 3
      %v493 = vshll.u32 %v480, 16
      %v495 = vrot.slane %v493, 4
      %v496 = vor.u32 %v492, %v495
      %vm499 = vcmask 1047556
      %vm500 = vsmask.f32 7954
      %vm501 = vmand %vm499, %vm500
      %v502 = vld [vmem:[#allocation2 + $0x40] sm:$0xf0]
      %v503 = vsel %vm501, %v488, %v502
      %504 = vst [vmem:[#allocation2 + $0x40] sm:$0xf0] %v503
      %v505 = vld [vmem:[#allocation2 + $0x48] sm:$0xf0]
      %v506 = vsel %vm501, %v496, %v505
      %507 = vst [vmem:[#allocation2 + $0x48] sm:$0xf0] %v506
      %vm508 = vcmask 1044480
      %vm509 = vmand %vm508, %vm466
      %v510 = vld [vmem:[#allocation2 + $0x50] sm:$0x1f]
      %v511 = vsel %vm509, %v488, %v510
      %512 = vst [vmem:[#allocation2 + $0x50] sm:$0x1f] %v511
      %v513 = vld [vmem:[#allocation2 + $0x58] sm:$0x1f]
      %v514 = vsel %vm509, %v496, %v513
      %515 = vst [vmem:[#allocation2 + $0x58] sm:$0x1f] %v514
      %vm516 = vmand %vm465, %vm500
      %v517 = vld [vmem:[#allocation2 + $0x50] sm:$0x10]
      %v518 = vsel %vm516, 0, %v517
      %519 = vst [vmem:[#allocation2 + $0x50] sm:$0x10] %v518
      %v520 = vld [vmem:[#allocation2 + $0x58] sm:$0x10]
      %v521 = vsel %vm516, 0, %v520
      %522 = vst [vmem:[#allocation2 + $0x58] sm:$0x10] %v521
      %vm523 = vcmask 1045509
      %vm524 = vsmask.f32 5376
      %vm525 = vmand %vm523, %vm524
      %v526 = vld [vmem:[#allocation2 + $0x50] sm:$0x20]
      %v527 = vsel %vm525, 0, %v526
      %528 = vst [vmem:[#allocation2 + $0x50] sm:$0x20] %v527
      %v529 = vld [vmem:[#allocation2 + $0x58] sm:$0x20]
      %v530 = vsel %vm525, 0, %v529
      %531 = vst [vmem:[#allocation2 + $0x58] sm:$0x20] %v530
      %s532 = scalar_lea.vmem %s224, 160
      %v533 = vld [vmem:[%s532] sm:$0xff]
      %v534 = vld [vmem:[%s532 + $0x8] sm:$0xff]
      %v535 = vld [vmem:[%s532 + $0x10] sm:$0xff]
      %v536 = vld [vmem:[%s532 + $0x18] sm:$0xff]
      %v537 = vpack.c.bf16 %v535, %v533
      %v538 = vpack.c.bf16 %v536, %v534
      %v540 = vshrl.u32 %v537, 16
      %v542 = vrot.slane %v540, 2
      %v543 = vshll.u32 %v537, 16
      %v545 = vrot.slane %v543, 3
      %v546 = vor.u32 %v542, %v545
      %v548 = vshrl.u32 %v538, 16
      %v550 = vrot.slane %v548, 2
      %v551 = vshll.u32 %v538, 16
      %v553 = vrot.slane %v551, 3
      %v554 = vor.u32 %v550, %v553
      %vm557 = vcmask 1047557
      %vm558 = vsmask.f32 7958
      %vm559 = vmand %vm557, %vm558
      %v560 = vld [vmem:[#allocation2 + $0x50] sm:$0xe0]
      %v561 = vsel %vm559, %v546, %v560
      %562 = vst [vmem:[#allocation2 + $0x50] sm:$0xe0] %v561
      %v563 = vld [vmem:[#allocation2 + $0x58] sm:$0xe0]
      %v564 = vsel %vm559, %v554, %v563
      %565 = vst [vmem:[#allocation2 + $0x58] sm:$0xe0] %v564
      %vm566 = vcmask 1045504
      %vm567 = vmand %vm566, %vm524
      %v568 = vld [vmem:[#allocation2 + $0x60] sm:$0x3f]
      %v569 = vsel %vm567, %v546, %v568
      %570 = vst [vmem:[#allocation2 + $0x60] sm:$0x3f] %v569
      %v571 = vld [vmem:[#allocation2 + $0x68] sm:$0x3f]
      %v572 = vsel %vm567, %v554, %v571
      %573 = vst [vmem:[#allocation2 + $0x68] sm:$0x3f] %v572
      %vm574 = vmand %vm523, %vm558
      %v575 = vld [vmem:[#allocation2 + $0x60] sm:$0x20]
      %v576 = vsel %vm574, 0, %v575
      %577 = vst [vmem:[#allocation2 + $0x60] sm:$0x20] %v576
      %v578 = vld [vmem:[#allocation2 + $0x68] sm:$0x20]
      %v579 = vsel %vm574, 0, %v578
      %580 = vst [vmem:[#allocation2 + $0x68] sm:$0x20] %v579
      %vm581 = vcmask 1046534
      %vm582 = vsmask.f32 6400
      %vm583 = vmand %vm581, %vm582
      %v584 = vld [vmem:[#allocation2 + $0x60] sm:$0x40]
      %v585 = vsel %vm583, 0, %v584
      %586 = vst [vmem:[#allocation2 + $0x60] sm:$0x40] %v585
      %v587 = vld [vmem:[#allocation2 + $0x68] sm:$0x40]
      %v588 = vsel %vm583, 0, %v587
      %589 = vst [vmem:[#allocation2 + $0x68] sm:$0x40] %v588
      %s590 = scalar_lea.vmem %s224, 192
      %v591 = vld [vmem:[%s590] sm:$0xff]
      %v592 = vld [vmem:[%s590 + $0x8] sm:$0xff]
      %v593 = vld [vmem:[%s590 + $0x10] sm:$0xff]
      %v594 = vld [vmem:[%s590 + $0x18] sm:$0xff]
      %v595 = vpack.c.bf16 %v593, %v591
      %v596 = vpack.c.bf16 %v594, %v592
      %v598 = vshrl.u32 %v595, 16
      %v600 = vrot.slane %v598, 1
      %v601 = vshll.u32 %v595, 16
      %v603 = vrot.slane %v601, 2
      %v604 = vor.u32 %v600, %v603
      %v606 = vshrl.u32 %v596, 16
      %v608 = vrot.slane %v606, 1
      %v609 = vshll.u32 %v596, 16
      %v611 = vrot.slane %v609, 2
      %v612 = vor.u32 %v608, %v611
      %vm615 = vcmask 1047558
      %vm616 = vsmask.f32 7962
      %vm617 = vmand %vm615, %vm616
      %v618 = vld [vmem:[#allocation2 + $0x60] sm:$0xc0]
      %v619 = vsel %vm617, %v604, %v618
      %620 = vst [vmem:[#allocation2 + $0x60] sm:$0xc0] %v619
      %v621 = vld [vmem:[#allocation2 + $0x68] sm:$0xc0]
      %v622 = vsel %vm617, %v612, %v621
      %623 = vst [vmem:[#allocation2 + $0x68] sm:$0xc0] %v622
      %vm624 = vcmask 1046528
      %vm625 = vmand %vm624, %vm582
      %v626 = vld [vmem:[#allocation2 + $0x70] sm:$0x7f]
      %v627 = vsel %vm625, %v604, %v626
      %628 = vst [vmem:[#allocation2 + $0x70] sm:$0x7f] %v627
      %v629 = vld [vmem:[#allocation2 + $0x78] sm:$0x7f]
      %v630 = vsel %vm625, %v612, %v629
      %631 = vst [vmem:[#allocation2 + $0x78] sm:$0x7f] %v630
      %vm632 = vmand %vm581, %vm616
      %v633 = vld [vmem:[#allocation2 + $0x70] sm:$0x40]
      %v634 = vsel %vm632, 0, %v633
      %635 = vst [vmem:[#allocation2 + $0x70] sm:$0x40] %v634
      %v636 = vld [vmem:[#allocation2 + $0x78] sm:$0x40]
      %v637 = vsel %vm632, 0, %v636
      %638 = vst [vmem:[#allocation2 + $0x78] sm:$0x40] %v637
      %vm639 = vcmask 1047559
      %vm640 = vsmask.f32 7424
      %vm641 = vmand %vm639, %vm640
      %v642 = vld [vmem:[#allocation2 + $0x70] sm:$0x80]
      %v643 = vsel %vm641, 0, %v642
      %644 = vst [vmem:[#allocation2 + $0x70] sm:$0x80] %v643
      %v645 = vld [vmem:[#allocation2 + $0x78] sm:$0x80]
      %v646 = vsel %vm641, 0, %v645
      %647 = vst [vmem:[#allocation2 + $0x78] sm:$0x80] %v646
      %s648 = scalar_lea.vmem %s224, 224
      %v649 = vld [vmem:[%s648] sm:$0xff]
      %v650 = vld [vmem:[%s648 + $0x8] sm:$0xff]
      %v651 = vld [vmem:[%s648 + $0x10] sm:$0xff]
      %v652 = vld [vmem:[%s648 + $0x18] sm:$0xff]
      %v653 = vpack.c.bf16 %v651, %v649
      %v654 = vpack.c.bf16 %v652, %v650
      %v656 = vshll.u32 %v653, 16
      %v658 = vrot.slane %v656, 1
      %v660 = vshll.u32 %v654, 16
      %v662 = vrot.slane %v660, 1
      %v663 = vshrl.u32 %v653, 16
      %v665 = vor.u32 %v663, %v658
      %v666 = vshrl.u32 %v654, 16
      %v668 = vor.u32 %v666, %v662
      %vm673 = vsmask.f32 7966
      %vm674 = vmand %vm639, %vm673
      %v675 = vld [vmem:[#allocation2 + $0x70] sm:$0x80]
      %v676 = vsel %vm674, %v658, %v675
      %677 = vst [vmem:[#allocation2 + $0x70] sm:$0x80] %v676
      %v678 = vld [vmem:[#allocation2 + $0x78] sm:$0x80]
      %v679 = vsel %vm674, %v662, %v678
      %680 = vst [vmem:[#allocation2 + $0x78] sm:$0x80] %v679
      %vm681 = vmand %vm269, %vm640
      %v682 = vld [vmem:[#allocation2 + $0x80] sm:$0xff]
      %v683 = vsel %vm681, %v665, %v682
      %684 = vst [vmem:[#allocation2 + $0x80] sm:$0xff] %v683
      %v685 = vld [vmem:[#allocation2 + $0x88] sm:$0xff]
      %v686 = vsel %vm681, %v668, %v685
      %687 = vst [vmem:[#allocation2 + $0x88] sm:$0xff] %v686
      %v688 = vld [vmem:[#allocation2 + $0x80] sm:$0x80]
      %v689 = vsel %vm674, 0, %v688
      %690 = vst [vmem:[#allocation2 + $0x80] sm:$0x80] %v689
      %v691 = vld [vmem:[#allocation2 + $0x88] sm:$0x80]
      %v692 = vsel %vm674, 0, %v691
      %693 = vst [vmem:[#allocation2 + $0x88] sm:$0x80] %v692
      %v694 = vld [vmem:[#allocation2] sm:$0xff]
      %v695 = vld [vmem:[#allocation2 + $0x8] sm:$0xff]
      %v696 = vld [vmem:[#allocation2 + $0x10] sm:$0xff]
      %v697 = vld [vmem:[#allocation2 + $0x18] sm:$0xff]
      %v698 = vld [vmem:[#allocation2 + $0x20] sm:$0xff]
      %v699 = vld [vmem:[#allocation2 + $0x28] sm:$0xff]
      %v700 = vld [vmem:[#allocation2 + $0x30] sm:$0xff]
      %v701 = vld [vmem:[#allocation2 + $0x38] sm:$0xff]
      %v702 = vld [vmem:[#allocation2 + $0x40] sm:$0xff]
      %v703 = vld [vmem:[#allocation2 + $0x48] sm:$0xff]
      %v704 = vld [vmem:[#allocation2 + $0x50] sm:$0xff]
      %v705 = vld [vmem:[#allocation2 + $0x58] sm:$0xff]
      %v706 = vld [vmem:[#allocation2 + $0x60] sm:$0xff]
      %v707 = vld [vmem:[#allocation2 + $0x68] sm:$0xff]
      %v708 = vld [vmem:[#allocation2 + $0x70] sm:$0xff]
      %v709 = vld [vmem:[#allocation2 + $0x78] sm:$0xff]
      %v710 = vld [vmem:[#allocation2 + $0x80] sm:$0x7f]
      %v711 = vld [vmem:[#allocation2 + $0x88] sm:$0x7f]
      %v712 = vld [vmem:[%s1] sm:$0xff]
      %v713 = vld [vmem:[%s1 + $0x8] sm:$0xff]
      %v714 = vld [vmem:[%s1 + $0x10] sm:$0xff]
      %v715 = vld [vmem:[%s1 + $0x18] sm:$0xff]
      %v716 = vld [vmem:[%s1 + $0x20] sm:$0xff]
      %v717 = vld [vmem:[%s1 + $0x28] sm:$0xff]
      %v718 = vld [vmem:[%s1 + $0x30] sm:$0xff]
      %v719 = vld [vmem:[%s1 + $0x38] sm:$0xff]
      %v720 = vld [vmem:[%s1 + $0x40] sm:$0xff]
      %v721 = vld [vmem:[%s1 + $0x48] sm:$0xff]
      %v722 = vld [vmem:[%s1 + $0x50] sm:$0xff]
      %v723 = vld [vmem:[%s1 + $0x58] sm:$0xff]
      %v724 = vld [vmem:[%s1 + $0x60] sm:$0xff]
      %v725 = vld [vmem:[%s1 + $0x68] sm:$0xff]
      %v726 = vld [vmem:[%s1 + $0x70] sm:$0xff]
      %v727 = vld [vmem:[%s1 + $0x78] sm:$0xff]
      %v728 = vld [vmem:[%s1 + $0x80] sm:$0xff]
      %v729 = vld [vmem:[%s1 + $0x88] sm:$0xff]
      %v730 = vld [vmem:[%s1 + $0x90] sm:$0xff]
      %v731 = vld [vmem:[%s1 + $0x98] sm:$0xff]
      %v732 = vld [vmem:[%s1 + $0xa0] sm:$0xff]
      %v733 = vld [vmem:[%s1 + $0xa8] sm:$0xff]
      %v734 = vld [vmem:[%s1 + $0xb0] sm:$0xff]
      %v735 = vld [vmem:[%s1 + $0xb8] sm:$0xff]
      %v736 = vld [vmem:[%s1 + $0xc0] sm:$0xff]
      %v737 = vld [vmem:[%s1 + $0xc8] sm:$0xff]
      %v738 = vld [vmem:[%s1 + $0xd0] sm:$0xff]
      %v739 = vld [vmem:[%s1 + $0xd8] sm:$0xff]
      %v740 = vld [vmem:[%s1 + $0xe0] sm:$0xff]
      %v741 = vld [vmem:[%s1 + $0xe8] sm:$0xff]
      %v742 = vld [vmem:[%s1 + $0xf0] sm:$0xff]
      %v743 = vld [vmem:[%s1 + $0xf8] sm:$0xff]
      %v776 = vunpack.c.l.b16 %v712
      %v777 = vunpack.c.h.b16 %v712
      %v778 = vunpack.c.l.b16 %v713
      %v779 = vunpack.c.h.b16 %v713
      %v780 = vunpack.c.l.b16 %v714
      %v781 = vunpack.c.h.b16 %v714
      %v782 = vunpack.c.l.b16 %v715
      %v783 = vunpack.c.h.b16 %v715
      %v784 = vunpack.c.l.b16 %v716
      %v785 = vunpack.c.h.b16 %v716
      %v786 = vunpack.c.l.b16 %v717
      %v787 = vunpack.c.h.b16 %v717
      %v788 = vunpack.c.l.b16 %v718
      %v789 = vunpack.c.h.b16 %v718
      %v790 = vunpack.c.l.b16 %v719
      %v791 = vunpack.c.h.b16 %v719
      %v792 = vunpack.c.l.b16 %v720
      %v793 = vunpack.c.h.b16 %v720
      %v794 = vunpack.c.l.b16 %v721
      %v795 = vunpack.c.h.b16 %v721
      %v796 = vunpack.c.l.b16 %v722
      %v797 = vunpack.c.h.b16 %v722
      %v798 = vunpack.c.l.b16 %v723
      %v799 = vunpack.c.h.b16 %v723
      %v800 = vunpack.c.l.b16 %v724
      %v801 = vunpack.c.h.b16 %v724
      %v802 = vunpack.c.l.b16 %v725
      %v803 = vunpack.c.h.b16 %v725
      %v804 = vunpack.c.l.b16 %v726
      %v805 = vunpack.c.h.b16 %v726
      %v806 = vunpack.c.l.b16 %v727
      %v807 = vunpack.c.h.b16 %v727
      %v808 = vunpack.c.l.b16 %v728
      %v809 = vunpack.c.h.b16 %v728
      %v810 = vunpack.c.l.b16 %v729
      %v811 = vunpack.c.h.b16 %v729
      %v812 = vunpack.c.l.b16 %v730
      %v813 = vunpack.c.h.b16 %v730
      %v814 = vunpack.c.l.b16 %v731
      %v815 = vunpack.c.h.b16 %v731
      %v816 = vunpack.c.l.b16 %v732
      %v817 = vunpack.c.h.b16 %v732
      %v818 = vunpack.c.l.b16 %v733
      %v819 = vunpack.c.h.b16 %v733
      %v820 = vunpack.c.l.b16 %v734
      %v821 = vunpack.c.h.b16 %v734
      %v822 = vunpack.c.l.b16 %v735
      %v823 = vunpack.c.h.b16 %v735
      %v824 = vunpack.c.l.b16 %v736
      %v825 = vunpack.c.h.b16 %v736
      %v826 = vunpack.c.l.b16 %v737
      %v827 = vunpack.c.h.b16 %v737
      %v828 = vunpack.c.l.b16 %v738
      %v829 = vunpack.c.h.b16 %v738
      %v830 = vunpack.c.l.b16 %v739
      %v831 = vunpack.c.h.b16 %v739
      %v832 = vunpack.c.l.b16 %v740
      %v833 = vunpack.c.h.b16 %v740
      %v834 = vunpack.c.l.b16 %v741
      %v835 = vunpack.c.h.b16 %v741
      %v836 = vunpack.c.l.b16 %v742
      %v837 = vunpack.c.h.b16 %v742
      %v838 = vunpack.c.l.b16 %v743
      %v839 = vunpack.c.h.b16 %v743
      %v840 = vpack.c.b16 %v778, %v776
      %v841 = vpack.c.b16 %v779, %v777
      %v842 = vpack.c.b16 %v782, %v780
      %v843 = vpack.c.b16 %v783, %v781
      %v844 = vpack.c.b16 %v786, %v784
      %v845 = vpack.c.b16 %v787, %v785
      %v846 = vpack.c.b16 %v790, %v788
      %v847 = vpack.c.b16 %v791, %v789
      %v848 = vpack.c.b16 %v794, %v792
      %v849 = vpack.c.b16 %v795, %v793
      %v850 = vpack.c.b16 %v798, %v796
      %v851 = vpack.c.b16 %v799, %v797
      %v852 = vpack.c.b16 %v802, %v800
      %v853 = vpack.c.b16 %v803, %v801
      %v854 = vpack.c.b16 %v806, %v804
      %v855 = vpack.c.b16 %v807, %v805
      %v856 = vpack.c.b16 %v810, %v808
      %v857 = vpack.c.b16 %v811, %v809
      %v858 = vpack.c.b16 %v814, %v812
      %v859 = vpack.c.b16 %v815, %v813
      %v860 = vpack.c.b16 %v818, %v816
      %v861 = vpack.c.b16 %v819, %v817
      %v862 = vpack.c.b16 %v822, %v820
      %v863 = vpack.c.b16 %v823, %v821
      %v864 = vpack.c.b16 %v826, %v824
      %v865 = vpack.c.b16 %v827, %v825
      %v866 = vpack.c.b16 %v830, %v828
      %v867 = vpack.c.b16 %v831, %v829
      %v868 = vpack.c.b16 %v834, %v832
      %v869 = vpack.c.b16 %v835, %v833
      %v870 = vpack.c.b16 %v838, %v836
      %v871 = vpack.c.b16 %v839, %v837
      %904 = vmatprep.subr.bf16.mxu0 %v841
      %905 = vmatpush1.bf16.msra.mxu0 %v840
      %906 = vmatprep.subr.bf16.mxu0 %v843
      %907 = vmatpush1.bf16.msra.mxu0 %v842
      %908 = vmatprep.subr.bf16.mxu0 %v845
      %909 = vmatpush1.bf16.msra.mxu0 %v844
      %910 = vmatprep.subr.bf16.mxu0 %v847
      %911 = vmatpush1.bf16.msra.mxu0 %v846
      %912 = vmatprep.subr.bf16.mxu0 %v849
      %913 = vmatpush1.bf16.msra.mxu0 %v848
      %914 = vmatprep.subr.bf16.mxu0 %v851
      %915 = vmatpush1.bf16.msra.mxu0 %v850
      %916 = vmatprep.subr.bf16.mxu0 %v853
      %917 = vmatpush1.bf16.msra.mxu0 %v852
      %918 = vmatprep.subr.bf16.mxu0 %v855
      %919 = vmatpush1.bf16.msra.mxu0 %v854
      %920 = vmatprep.subr.bf16.mxu0 %v857
      %921 = vmatpush1.bf16.msra.mxu0 %v856
      %922 = vmatprep.subr.bf16.mxu0 %v859
      %923 = vmatpush1.bf16.msra.mxu0 %v858
      %924 = vmatprep.subr.bf16.mxu0 %v861
      %925 = vmatpush1.bf16.msra.mxu0 %v860
      %926 = vmatprep.subr.bf16.mxu0 %v863
      %927 = vmatpush1.bf16.msra.mxu0 %v862
      %928 = vmatprep.subr.bf16.mxu0 %v865
      %929 = vmatpush1.bf16.msra.mxu0 %v864
      %930 = vmatprep.subr.bf16.mxu0 %v867
      %931 = vmatpush1.bf16.msra.mxu0 %v866
      %932 = vmatprep.subr.bf16.mxu0 %v869
      %933 = vmatpush1.bf16.msra.mxu0 %v868
      %934 = vmatprep.subr.bf16.mxu0 %v871
      %935 = vmatpush1.bf16.msra.mxu0 %v870
      %936 = vmatprep.mubr.bf16.mxu0 %v695
      %937 = vmatmul.mubr.bf16.gmra.mrb[0].mxu0 %v694
      %v938 = vpop.f32.mrb[0].mxu0
      %v939 = vadd.f32 0.0, %v938
      %v940 = vpop.f32.mrb[0].mxu0
      %v941 = vadd.f32 0.0, %v940
      %v942 = vpop.f32.mrb[0].mxu0
      %v943 = vadd.f32 0.0, %v942
      %v944 = vpop.f32.mrb[0].mxu0
      %v945 = vadd.f32 0.0, %v944
      %946 = vmatprep.mubr.bf16.mxu0 %v697
      %947 = vmatmul.mubr.bf16.gmra.mrb[0].mxu0 %v696
      %v948 = vpop.f32.mrb[0].mxu0
      %v949 = vadd.f32 0.0, %v948
      %v950 = vpop.f32.mrb[0].mxu0
      %v951 = vadd.f32 0.0, %v950
      %v952 = vpop.f32.mrb[0].mxu0
      %v953 = vadd.f32 0.0, %v952
      %v954 = vpop.f32.mrb[0].mxu0
      %v955 = vadd.f32 0.0, %v954
      %956 = vmatprep.mubr.bf16.mxu0 %v699
      %957 = vmatmul.mubr.bf16.gmra.mrb[0].mxu0 %v698
      %v958 = vpop.f32.mrb[0].mxu0
      %v959 = vadd.f32 0.0, %v958
      %v960 = vpop.f32.mrb[0].mxu0
      %v961 = vadd.f32 0.0, %v960
      %v962 = vpop.f32.mrb[0].mxu0
      %v963 = vadd.f32 0.0, %v962
      %v964 = vpop.f32.mrb[0].mxu0
      %v965 = vadd.f32 0.0, %v964
      %966 = vmatprep.mubr.bf16.mxu0 %v701
      %967 = vmatmul.mubr.bf16.gmra.mrb[0].mxu0 %v700
      %v968 = vpop.f32.mrb[0].mxu0
      %v969 = vadd.f32 0.0, %v968
      %v970 = vpop.f32.mrb[0].mxu0
      %v971 = vadd.f32 0.0, %v970
      %v972 = vpop.f32.mrb[0].mxu0
      %v973 = vadd.f32 0.0, %v972
      %v974 = vpop.f32.mrb[0].mxu0
      %v975 = vadd.f32 0.0, %v974
      %976 = vmatprep.mubr.bf16.mxu0 %v703
      %977 = vmatmul.mubr.bf16.gmra.mrb[0].mxu0 %v702
      %v978 = vpop.f32.mrb[0].mxu0
      %v979 = vadd.f32 0.0, %v978
      %v980 = vpop.f32.mrb[0].mxu0
      %v981 = vadd.f32 0.0, %v980
      %v982 = vpop.f32.mrb[0].mxu0
      %v983 = vadd.f32 0.0, %v982
      %v984 = vpop.f32.mrb[0].mxu0
      %v985 = vadd.f32 0.0, %v984
      %986 = vmatprep.mubr.bf16.mxu0 %v705
      %987 = vmatmul.mubr.bf16.gmra.mrb[0].mxu0 %v704
      %v988 = vpop.f32.mrb[0].mxu0
      %v989 = vadd.f32 0.0, %v988
      %v990 = vpop.f32.mrb[0].mxu0
      %v991 = vadd.f32 0.0, %v990
      %v992 = vpop.f32.mrb[0].mxu0
      %v993 = vadd.f32 0.0, %v992
      %v994 = vpop.f32.mrb[0].mxu0
      %v995 = vadd.f32 0.0, %v994
      %996 = vmatprep.mubr.bf16.mxu0 %v707
      %997 = vmatmul.mubr.bf16.gmra.mrb[0].mxu0 %v706
      %v998 = vpop.f32.mrb[0].mxu0
      %v999 = vadd.f32 0.0, %v998
      %v1000 = vpop.f32.mrb[0].mxu0
      %v1001 = vadd.f32 0.0, %v1000
      %v1002 = vpop.f32.mrb[0].mxu0
      %v1003 = vadd.f32 0.0, %v1002
      %v1004 = vpop.f32.mrb[0].mxu0
      %v1005 = vadd.f32 0.0, %v1004
      %1006 = vmatprep.mubr.bf16.mxu0 %v709
      %1007 = vmatmul.mubr.bf16.gmra.mrb[0].mxu0 %v708
      %v1008 = vpop.f32.mrb[0].mxu0
      %v1009 = vadd.f32 0.0, %v1008
      %v1010 = vpop.f32.mrb[0].mxu0
      %v1011 = vadd.f32 0.0, %v1010
      %v1012 = vpop.f32.mrb[0].mxu0
      %v1013 = vadd.f32 0.0, %v1012
      %v1014 = vpop.f32.mrb[0].mxu0
      %v1015 = vadd.f32 0.0, %v1014
      %1016 = vmatprep.mubr.bf16.mxu0 %v711
      %1017 = vmatmul.mubr.bf16.gmra.mrb[0].mxu0 %v710
      %v1018 = vpop.f32.mrb[0].mxu0
      %v1019 = vadd.f32 0.0, %v1018
      %v1020 = vpop.f32.mrb[0].mxu0
      %v1021 = vadd.f32 0.0, %v1020
      %v1022 = vpop.f32.mrb[0].mxu0
      %v1023 = vadd.f32 0.0, %v1022
      %v1024 = vpop.f32.mrb[0].mxu0
      %v1025 = vadd.f32 0.0, %v1024
      %1026 = vdwg.mxu0
      %1027 = vst [vmem:[#allocation4] sm:$0xff] %v939
      %1028 = vst [vmem:[#allocation4 + $0x8] sm:$0xff] %v941
      %1029 = vst [vmem:[#allocation4 + $0x10] sm:$0xff] %v943
      %1030 = vst [vmem:[#allocation4 + $0x18] sm:$0xff] %v945
      %1031 = vst [vmem:[#allocation4 + $0x20] sm:$0xff] %v949
      %1032 = vst [vmem:[#allocation4 + $0x28] sm:$0xff] %v951
      %1033 = vst [vmem:[#allocation4 + $0x30] sm:$0xff] %v953
      %1034 = vst [vmem:[#allocation4 + $0x38] sm:$0xff] %v955
      %1035 = vst [vmem:[#allocation4 + $0x40] sm:$0xff] %v959
      %1036 = vst [vmem:[#allocation4 + $0x48] sm:$0xff] %v961
      %1037 = vst [vmem:[#allocation4 + $0x50] sm:$0xff] %v963
      %1038 = vst [vmem:[#allocation4 + $0x58] sm:$0xff] %v965
      %1039 = vst [vmem:[#allocation4 + $0x60] sm:$0xff] %v969
      %1040 = vst [vmem:[#allocation4 + $0x68] sm:$0xff] %v971
      %1041 = vst [vmem:[#allocation4 + $0x70] sm:$0xff] %v973
      %1042 = vst [vmem:[#allocation4 + $0x78] sm:$0xff] %v975
      %1043 = vst [vmem:[#allocation4 + $0x80] sm:$0xff] %v979
      %1044 = vst [vmem:[#allocation4 + $0x88] sm:$0xff] %v981
      %1045 = vst [vmem:[#allocation4 + $0x90] sm:$0xff] %v983
      %1046 = vst [vmem:[#allocation4 + $0x98] sm:$0xff] %v985
      %1047 = vst [vmem:[#allocation4 + $0xa0] sm:$0xff] %v989
      %1048 = vst [vmem:[#allocation4 + $0xa8] sm:$0xff] %v991
      %1049 = vst [vmem:[#allocation4 + $0xb0] sm:$0xff] %v993
      %1050 = vst [vmem:[#allocation4 + $0xb8] sm:$0xff] %v995
      %1051 = vst [vmem:[#allocation4 + $0xc0] sm:$0xff] %v999
      %1052 = vst [vmem:[#allocation4 + $0xc8] sm:$0xff] %v1001
      %1053 = vst [vmem:[#allocation4 + $0xd0] sm:$0xff] %v1003
      %1054 = vst [vmem:[#allocation4 + $0xd8] sm:$0xff] %v1005
      %1055 = vst [vmem:[#allocation4 + $0xe0] sm:$0xff] %v1009
      %1056 = vst [vmem:[#allocation4 + $0xe8] sm:$0xff] %v1011
      %1057 = vst [vmem:[#allocation4 + $0xf0] sm:$0xff] %v1013
      %1058 = vst [vmem:[#allocation4 + $0xf8] sm:$0xff] %v1015
      %1059 = vst [vmem:[#allocation4 + $0x100] sm:$0xff] %v1019
      %1060 = vst [vmem:[#allocation4 + $0x108] sm:$0xff] %v1021
      %1061 = vst [vmem:[#allocation4 + $0x110] sm:$0x3f] %v1023
      %1062 = vst [vmem:[#allocation4 + $0x118] sm:$0x3f] %v1025
      %v1063 = vld [vmem:[#allocation4] sm:$0xff]
      %v1064 = vld [vmem:[#allocation4 + $0x8] sm:$0xff]
      %v1065 = vld [vmem:[#allocation4 + $0x10] sm:$0xff]
      %v1066 = vld [vmem:[#allocation4 + $0x18] sm:$0xff]
      %v1067 = vld [vmem:[#allocation4 + $0x20] sm:$0xff]
      %v1068 = vld [vmem:[#allocation4 + $0x28] sm:$0xff]
      %v1069 = vld [vmem:[#allocation4 + $0x30] sm:$0xff]
      %v1070 = vld [vmem:[#allocation4 + $0x38] sm:$0xff]
      %v1071 = vld [vmem:[#allocation4 + $0x40] sm:$0xff]
      %v1072 = vld [vmem:[#allocation4 + $0x48] sm:$0xff]
      %v1073 = vld [vmem:[#allocation4 + $0x50] sm:$0xff]
      %v1074 = vld [vmem:[#allocation4 + $0x58] sm:$0xff]
      %v1075 = vld [vmem:[#allocation4 + $0x60] sm:$0xff]
      %v1076 = vld [vmem:[#allocation4 + $0x68] sm:$0xff]
      %v1077 = vld [vmem:[#allocation4 + $0x70] sm:$0xff]
      %v1078 = vld [vmem:[#allocation4 + $0x78] sm:$0xff]
      %v1079 = vld [vmem:[#allocation4 + $0x80] sm:$0xff]
      %v1080 = vld [vmem:[#allocation4 + $0x88] sm:$0xff]
      %v1081 = vld [vmem:[#allocation4 + $0x90] sm:$0xff]
      %v1082 = vld [vmem:[#allocation4 + $0x98] sm:$0xff]
      %v1083 = vld [vmem:[#allocation4 + $0xa0] sm:$0xff]
      %v1084 = vld [vmem:[#allocation4 + $0xa8] sm:$0xff]
      %v1085 = vld [vmem:[#allocation4 + $0xb0] sm:$0xff]
      %v1086 = vld [vmem:[#allocation4 + $0xb8] sm:$0xff]
      %v1087 = vld [vmem:[#allocation4 + $0xc0] sm:$0xff]
      %v1088 = vld [vmem:[#allocation4 + $0xc8] sm:$0xff]
      %v1089 = vld [vmem:[#allocation4 + $0xd0] sm:$0xff]
      %v1090 = vld [vmem:[#allocation4 + $0xd8] sm:$0xff]
      %v1091 = vld [vmem:[#allocation4 + $0xe0] sm:$0xff]
      %v1092 = vld [vmem:[#allocation4 + $0xe8] sm:$0xff]
      %v1093 = vld [vmem:[#allocation4 + $0xf0] sm:$0xff]
      %v1094 = vld [vmem:[#allocation4 + $0xf8] sm:$0xff]
      %v1095 = vld [vmem:[#allocation4 + $0x100] sm:$0xff]
      %v1096 = vld [vmem:[#allocation4 + $0x108] sm:$0xff]
      %v1097 = vld [vmem:[#allocation4 + $0x110] sm:$0x3f]
      %v1098 = vld [vmem:[#allocation4 + $0x118] sm:$0x3f]
      %v1099 = vld [vmem:[#allocation2] sm:$0xff]
      %v1100 = vld [vmem:[#allocation2 + $0x8] sm:$0xff]
      %v1101 = vld [vmem:[#allocation2 + $0x10] sm:$0xff]
      %v1102 = vld [vmem:[#allocation2 + $0x18] sm:$0xff]
      %v1103 = vld [vmem:[#allocation2 + $0x20] sm:$0xff]
      %v1104 = vld [vmem:[#allocation2 + $0x28] sm:$0xff]
      %v1105 = vld [vmem:[#allocation2 + $0x30] sm:$0xff]
      %v1106 = vld [vmem:[#allocation2 + $0x38] sm:$0xff]
      %v1107 = vld [vmem:[#allocation2 + $0x40] sm:$0xff]
      %v1108 = vld [vmem:[#allocation2 + $0x48] sm:$0xff]
      %v1109 = vld [vmem:[#allocation2 + $0x50] sm:$0xff]
      %v1110 = vld [vmem:[#allocation2 + $0x58] sm:$0xff]
      %v1111 = vld [vmem:[#allocation2 + $0x60] sm:$0xff]
      %v1112 = vld [vmem:[#allocation2 + $0x68] sm:$0xff]
      %v1113 = vld [vmem:[#allocation2 + $0x70] sm:$0xff]
      %v1114 = vld [vmem:[#allocation2 + $0x78] sm:$0xff]
      %v1115 = vld [vmem:[#allocation2 + $0x80] sm:$0xff]
      %v1116 = vld [vmem:[#allocation2 + $0x88] sm:$0xff]
      %s1117 = scalar_lea.vmem %s1, 256
      %v1118 = vld [vmem:[%s1117] sm:$0xff]
      %v1119 = vld [vmem:[%s1117 + $0x8] sm:$0xff]
      %v1120 = vld [vmem:[%s1117 + $0x10] sm:$0xff]
      %v1121 = vld [vmem:[%s1117 + $0x18] sm:$0xff]
      %v1122 = vld [vmem:[%s1117 + $0x20] sm:$0xff]
      %v1123 = vld [vmem:[%s1117 + $0x28] sm:$0xff]
      %v1124 = vld [vmem:[%s1117 + $0x30] sm:$0xff]
      %v1125 = vld [vmem:[%s1117 + $0x38] sm:$0xff]
      %v1126 = vld [vmem:[%s1117 + $0x40] sm:$0xff]
      %v1127 = vld [vmem:[%s1117 + $0x48] sm:$0xff]
      %v1128 = vld [vmem:[%s1117 + $0x50] sm:$0xff]
      %v1129 = vld [vmem:[%s1117 + $0x58] sm:$0xff]
      %v1130 = vld [vmem:[%s1117 + $0x60] sm:$0xff]
      %v1131 = vld [vmem:[%s1117 + $0x68] sm:$0xff]
      %v1132 = vld [vmem:[%s1117 + $0x70] sm:$0xff]
      %v1133 = vld [vmem:[%s1117 + $0x78] sm:$0xff]
      %v1134 = vld [vmem:[%s1117 + $0x80] sm:$0xff]
      %v1135 = vld [vmem:[%s1117 + $0x88] sm:$0xff]
      %v1136 = vld [vmem:[%s1117 + $0x90] sm:$0xff]
      %v1137 = vld [vmem:[%s1117 + $0x98] sm:$0xff]
      %v1138 = vld [vmem:[%s1117 + $0xa0] sm:$0xff]
      %v1139 = vld [vmem:[%s1117 + $0xa8] sm:$0xff]
      %v1140 = vld [vmem:[%s1117 + $0xb0] sm:$0xff]
      %v1141 = vld [vmem:[%s1117 + $0xb8] sm:$0xff]
      %v1142 = vld [vmem:[%s1117 + $0xc0] sm:$0xff]
      %v1143 = vld [vmem:[%s1117 + $0xc8] sm:$0xff]
      %v1144 = vld [vmem:[%s1117 + $0xd0] sm:$0xff]
      %v1145 = vld [vmem:[%s1117 + $0xd8] sm:$0xff]
      %v1146 = vld [vmem:[%s1117 + $0xe0] sm:$0xff]
      %v1147 = vld [vmem:[%s1117 + $0xe8] sm:$0xff]
      %v1148 = vld [vmem:[%s1117 + $0xf0] sm:$0xff]
      %v1149 = vld [vmem:[%s1117 + $0xf8] sm:$0xff]
      %v1151 = vshrl.u32 %v1099, 16
      %v1153 = vshll.u32 %v1099, 16
      %v1155 = vrot.slane %v1153, 1
      %v1156 = vor.u32 %v1151, %v1155
      %v1158 = vshll.u32 %v1101, 16
      %v1160 = vrot.slane %v1158, 1
      %v1161 = vsel %vm640, %v1156, %v1160
      %v1163 = vshrl.u32 %v1100, 16
      %v1165 = vshll.u32 %v1100, 16
      %v1167 = vrot.slane %v1165, 1
      %v1168 = vor.u32 %v1163, %v1167
      %v1170 = vshll.u32 %v1102, 16
      %v1172 = vrot.slane %v1170, 1
      %v1173 = vsel %vm640, %v1168, %v1172
      %v1174 = vshrl.u32 %v1101, 16
      %v1176 = vor.u32 %v1174, %v1160
      %v1178 = vshll.u32 %v1103, 16
      %v1180 = vrot.slane %v1178, 1
      %v1181 = vsel %vm640, %v1176, %v1180
      %v1182 = vshrl.u32 %v1102, 16
      %v1184 = vor.u32 %v1182, %v1172
      %v1186 = vshll.u32 %v1104, 16
      %v1188 = vrot.slane %v1186, 1
      %v1189 = vsel %vm640, %v1184, %v1188
      %v1190 = vshrl.u32 %v1103, 16
      %v1192 = vor.u32 %v1190, %v1180
      %v1194 = vshll.u32 %v1105, 16
      %v1196 = vrot.slane %v1194, 1
      %v1197 = vsel %vm640, %v1192, %v1196
      %v1198 = vshrl.u32 %v1104, 16
      %v1200 = vor.u32 %v1198, %v1188
      %v1202 = vshll.u32 %v1106, 16
      %v1204 = vrot.slane %v1202, 1
      %v1205 = vsel %vm640, %v1200, %v1204
      %v1206 = vshrl.u32 %v1105, 16
      %v1208 = vor.u32 %v1206, %v1196
      %v1210 = vshll.u32 %v1107, 16
      %v1212 = vrot.slane %v1210, 1
      %v1213 = vsel %vm640, %v1208, %v1212
      %v1214 = vshrl.u32 %v1106, 16
      %v1216 = vor.u32 %v1214, %v1204
      %v1218 = vshll.u32 %v1108, 16
      %v1220 = vrot.slane %v1218, 1
      %v1221 = vsel %vm640, %v1216, %v1220
      %v1222 = vshrl.u32 %v1107, 16
      %v1224 = vor.u32 %v1222, %v1212
      %v1226 = vshll.u32 %v1109, 16
      %v1228 = vrot.slane %v1226, 1
      %v1229 = vsel %vm640, %v1224, %v1228
      %v1230 = vshrl.u32 %v1108, 16
      %v1232 = vor.u32 %v1230, %v1220
      %v1234 = vshll.u32 %v1110, 16
      %v1236 = vrot.slane %v1234, 1
      %v1237 = vsel %vm640, %v1232, %v1236
      %v1238 = vshrl.u32 %v1109, 16
      %v1240 = vor.u32 %v1238, %v1228
      %v1242 = vshll.u32 %v1111, 16
      %v1244 = vrot.slane %v1242, 1
      %v1245 = vsel %vm640, %v1240, %v1244
      %v1246 = vshrl.u32 %v1110, 16
      %v1248 = vor.u32 %v1246, %v1236
      %v1250 = vshll.u32 %v1112, 16
      %v1252 = vrot.slane %v1250, 1
      %v1253 = vsel %vm640, %v1248, %v1252
      %v1254 = vshrl.u32 %v1111, 16
      %v1256 = vor.u32 %v1254, %v1244
      %v1258 = vshll.u32 %v1113, 16
      %v1260 = vrot.slane %v1258, 1
      %v1261 = vsel %vm640, %v1256, %v1260
      %v1262 = vshrl.u32 %v1112, 16
      %v1264 = vor.u32 %v1262, %v1252
      %v1266 = vshll.u32 %v1114, 16
      %v1268 = vrot.slane %v1266, 1
      %v1269 = vsel %vm640, %v1264, %v1268
      %v1270 = vshrl.u32 %v1113, 16
      %v1272 = vor.u32 %v1270, %v1260
      %v1274 = vshll.u32 %v1115, 16
      %v1276 = vrot.slane %v1274, 1
      %v1277 = vsel %vm640, %v1272, %v1276
      %v1278 = vshrl.u32 %v1114, 16
      %v1280 = vor.u32 %v1278, %v1268
      %v1282 = vshll.u32 %v1116, 16
      %v1284 = vrot.slane %v1282, 1
      %v1285 = vsel %vm640, %v1280, %v1284
      %v1286 = vshrl.u32 %v1115, 16
      %v1288 = vor.u32 %v1286, %v1276
      %v1289 = vshrl.u32 %v1116, 16
      %v1291 = vor.u32 %v1289, %v1284
      %v1342 = vunpack.c.l.b16 %v1118
      %v1343 = vunpack.c.h.b16 %v1118
      %v1344 = vunpack.c.l.b16 %v1119
      %v1345 = vunpack.c.h.b16 %v1119
      %v1346 = vunpack.c.l.b16 %v1120
      %v1347 = vunpack.c.h.b16 %v1120
      %v1348 = vunpack.c.l.b16 %v1121
      %v1349 = vunpack.c.h.b16 %v1121
      %v1350 = vunpack.c.l.b16 %v1122
      %v1351 = vunpack.c.h.b16 %v1122
      %v1352 = vunpack.c.l.b16 %v1123
      %v1353 = vunpack.c.h.b16 %v1123
      %v1354 = vunpack.c.l.b16 %v1124
      %v1355 = vunpack.c.h.b16 %v1124
      %v1356 = vunpack.c.l.b16 %v1125
      %v1357 = vunpack.c.h.b16 %v1125
      %v1358 = vunpack.c.l.b16 %v1126
      %v1359 = vunpack.c.h.b16 %v1126
      %v1360 = vunpack.c.l.b16 %v1127
      %v1361 = vunpack.c.h.b16 %v1127
      %v1362 = vunpack.c.l.b16 %v1128
      %v1363 = vunpack.c.h.b16 %v1128
      %v1364 = vunpack.c.l.b16 %v1129
      %v1365 = vunpack.c.h.b16 %v1129
      %v1366 = vunpack.c.l.b16 %v1130
      %v1367 = vunpack.c.h.b16 %v1130
      %v1368 = vunpack.c.l.b16 %v1131
      %v1369 = vunpack.c.h.b16 %v1131
      %v1370 = vunpack.c.l.b16 %v1132
      %v1371 = vunpack.c.h.b16 %v1132
      %v1372 = vunpack.c.l.b16 %v1133
      %v1373 = vunpack.c.h.b16 %v1133
      %v1374 = vunpack.c.l.b16 %v1134
      %v1375 = vunpack.c.h.b16 %v1134
      %v1376 = vunpack.c.l.b16 %v1135
      %v1377 = vunpack.c.h.b16 %v1135
      %v1378 = vunpack.c.l.b16 %v1136
      %v1379 = vunpack.c.h.b16 %v1136
      %v1380 = vunpack.c.l.b16 %v1137
      %v1381 = vunpack.c.h.b16 %v1137
      %v1382 = vunpack.c.l.b16 %v1138
      %v1383 = vunpack.c.h.b16 %v1138
      %v1384 = vunpack.c.l.b16 %v1139
      %v1385 = vunpack.c.h.b16 %v1139
      %v1386 = vunpack.c.l.b16 %v1140
      %v1387 = vunpack.c.h.b16 %v1140
      %v1388 = vunpack.c.l.b16 %v1141
      %v1389 = vunpack.c.h.b16 %v1141
      %v1390 = vunpack.c.l.b16 %v1142
      %v1391 = vunpack.c.h.b16 %v1142
      %v1392 = vunpack.c.l.b16 %v1143
      %v1393 = vunpack.c.h.b16 %v1143
      %v1394 = vunpack.c.l.b16 %v1144
      %v1395 = vunpack.c.h.b16 %v1144
      %v1396 = vunpack.c.l.b16 %v1145
      %v1397 = vunpack.c.h.b16 %v1145
      %v1398 = vunpack.c.l.b16 %v1146
      %v1399 = vunpack.c.h.b16 %v1146
      %v1400 = vunpack.c.l.b16 %v1147
      %v1401 = vunpack.c.h.b16 %v1147
      %v1402 = vunpack.c.l.b16 %v1148
      %v1403 = vunpack.c.h.b16 %v1148
      %v1404 = vunpack.c.l.b16 %v1149
      %v1405 = vunpack.c.h.b16 %v1149
      %v1406 = vpack.c.b16 %v1344, %v1342
      %v1407 = vpack.c.b16 %v1345, %v1343
      %v1408 = vpack.c.b16 %v1348, %v1346
      %v1409 = vpack.c.b16 %v1349, %v1347
      %v1410 = vpack.c.b16 %v1352, %v1350
      %v1411 = vpack.c.b16 %v1353, %v1351
      %v1412 = vpack.c.b16 %v1356, %v1354
      %v1413 = vpack.c.b16 %v1357, %v1355
      %v1414 = vpack.c.b16 %v1360, %v1358
      %v1415 = vpack.c.b16 %v1361, %v1359
      %v1416 = vpack.c.b16 %v1364, %v1362
      %v1417 = vpack.c.b16 %v1365, %v1363
      %v1418 = vpack.c.b16 %v1368, %v1366
      %v1419 = vpack.c.b16 %v1369, %v1367
      %v1420 = vpack.c.b16 %v1372, %v1370
      %v1421 = vpack.c.b16 %v1373, %v1371
      %v1422 = vpack.c.b16 %v1376, %v1374
      %v1423 = vpack.c.b16 %v1377, %v1375
      %v1424 = vpack.c.b16 %v1380, %v1378
      %v1425 = vpack.c.b16 %v1381, %v1379
      %v1426 = vpack.c.b16 %v1384, %v1382
      %v1427 = vpack.c.b16 %v1385, %v1383
      %v1428 = vpack.c.b16 %v1388, %v1386
      %v1429 = vpack.c.b16 %v1389, %v1387
      %v1430 = vpack.c.b16 %v1392, %v1390
      %v1431 = vpack.c.b16 %v1393, %v1391
      %v1432 = vpack.c.b16 %v1396, %v1394
      %v1433 = vpack.c.b16 %v1397, %v1395
      %v1434 = vpack.c.b16 %v1400, %v1398
      %v1435 = vpack.c.b16 %v1401, %v1399
      %v1436 = vpack.c.b16 %v1404, %v1402
      %v1437 = vpack.c.b16 %v1405, %v1403
      %1470 = vmatprep.subr.bf16.mxu0 %v1407
      %1471 = vmatpush1.bf16.msra.mxu0 %v1406
      %1472 = vmatprep.subr.bf16.mxu0 %v1409
      %1473 = vmatpush1.bf16.msra.mxu0 %v1408
      %1474 = vmatprep.subr.bf16.mxu0 %v1411
      %1475 = vmatpush1.bf16.msra.mxu0 %v1410
      %1476 = vmatprep.subr.bf16.mxu0 %v1413
      %1477 = vmatpush1.bf16.msra.mxu0 %v1412
      %1478 = vmatprep.subr.bf16.mxu0 %v1415
      %1479 = vmatpush1.bf16.msra.mxu0 %v1414
      %1480 = vmatprep.subr.bf16.mxu0 %v1417
      %1481 = vmatpush1.bf16.msra.mxu0 %v1416
      %1482 = vmatprep.subr.bf16.mxu0 %v1419
      %1483 = vmatpush1.bf16.msra.mxu0 %v1418
      %1484 = vmatprep.subr.bf16.mxu0 %v1421
      %1485 = vmatpush1.bf16.msra.mxu0 %v1420
      %1486 = vmatprep.subr.bf16.mxu0 %v1423
      %1487 = vmatpush1.bf16.msra.mxu0 %v1422
      %1488 = vmatprep.subr.bf16.mxu0 %v1425
      %1489 = vmatpush1.bf16.msra.mxu0 %v1424
      %1490 = vmatprep.subr.bf16.mxu0 %v1427
      %1491 = vmatpush1.bf16.msra.mxu0 %v1426
      %1492 = vmatprep.subr.bf16.mxu0 %v1429
      %1493 = vmatpush1.bf16.msra.mxu0 %v1428
      %1494 = vmatprep.subr.bf16.mxu0 %v1431
      %1495 = vmatpush1.bf16.msra.mxu0 %v1430
      %1496 = vmatprep.subr.bf16.mxu0 %v1433
      %1497 = vmatpush1.bf16.msra.mxu0 %v1432
      %1498 = vmatprep.subr.bf16.mxu0 %v1435
      %1499 = vmatpush1.bf16.msra.mxu0 %v1434
      %1500 = vmatprep.subr.bf16.mxu0 %v1437
      %1501 = vmatpush1.bf16.msra.mxu0 %v1436
      %1502 = vmatprep.mubr.bf16.mxu0 %v1173
      %1503 = vmatmul.mubr.bf16.gmra.mrb[0].mxu0 %v1161
      %v1504 = vpop.f32.mrb[0].mxu0
      %v1505 = vadd.f32 0.0, %v1504
      %v1506 = vpop.f32.mrb[0].mxu0
      %v1507 = vadd.f32 0.0, %v1506
      %v1508 = vpop.f32.mrb[0].mxu0
      %v1509 = vadd.f32 0.0, %v1508
      %v1510 = vpop.f32.mrb[0].mxu0
      %v1511 = vadd.f32 0.0, %v1510
      %1512 = vmatprep.mubr.bf16.mxu0 %v1189
      %1513 = vmatmul.mubr.bf16.gmra.mrb[0].mxu0 %v1181
      %v1514 = vpop.f32.mrb[0].mxu0
      %v1515 = vadd.f32 0.0, %v1514
      %v1516 = vpop.f32.mrb[0].mxu0
      %v1517 = vadd.f32 0.0, %v1516
      %v1518 = vpop.f32.mrb[0].mxu0
      %v1519 = vadd.f32 0.0, %v1518
      %v1520 = vpop.f32.mrb[0].mxu0
      %v1521 = vadd.f32 0.0, %v1520
      %1522 = vmatprep.mubr.bf16.mxu0 %v1205
      %1523 = vmatmul.mubr.bf16.gmra.mrb[0].mxu0 %v1197
      %v1524 = vpop.f32.mrb[0].mxu0
      %v1525 = vadd.f32 0.0, %v1524
      %v1526 = vpop.f32.mrb[0].mxu0
      %v1527 = vadd.f32 0.0, %v1526
      %v1528 = vpop.f32.mrb[0].mxu0
      %v1529 = vadd.f32 0.0, %v1528
      %v1530 = vpop.f32.mrb[0].mxu0
      %v1531 = vadd.f32 0.0, %v1530
      %1532 = vmatprep.mubr.bf16.mxu0 %v1221
      %1533 = vmatmul.mubr.bf16.gmra.mrb[0].mxu0 %v1213
      %v1534 = vpop.f32.mrb[0].mxu0
      %v1535 = vadd.f32 0.0, %v1534
      %v1536 = vpop.f32.mrb[0].mxu0
      %v1537 = vadd.f32 0.0, %v1536
      %v1538 = vpop.f32.mrb[0].mxu0
      %v1539 = vadd.f32 0.0, %v1538
      %v1540 = vpop.f32.mrb[0].mxu0
      %v1541 = vadd.f32 0.0, %v1540
      %1542 = vmatprep.mubr.bf16.mxu0 %v1237
      %1543 = vmatmul.mubr.bf16.gmra.mrb[0].mxu0 %v1229
      %v1544 = vpop.f32.mrb[0].mxu0
      %v1545 = vadd.f32 0.0, %v1544
      %v1546 = vpop.f32.mrb[0].mxu0
      %v1547 = vadd.f32 0.0, %v1546
      %v1548 = vpop.f32.mrb[0].mxu0
      %v1549 = vadd.f32 0.0, %v1548
      %v1550 = vpop.f32.mrb[0].mxu0
      %v1551 = vadd.f32 0.0, %v1550
      %1552 = vmatprep.mubr.bf16.mxu0 %v1253
      %1553 = vmatmul.mubr.bf16.gmra.mrb[0].mxu0 %v1245
      %v1554 = vpop.f32.mrb[0].mxu0
      %v1555 = vadd.f32 0.0, %v1554
      %v1556 = vpop.f32.mrb[0].mxu0
      %v1557 = vadd.f32 0.0, %v1556
      %v1558 = vpop.f32.mrb[0].mxu0
      %v1559 = vadd.f32 0.0, %v1558
      %v1560 = vpop.f32.mrb[0].mxu0
      %v1561 = vadd.f32 0.0, %v1560
      %1562 = vmatprep.mubr.bf16.mxu0 %v1269
      %1563 = vmatmul.mubr.bf16.gmra.mrb[0].mxu0 %v1261
      %v1564 = vpop.f32.mrb[0].mxu0
      %v1565 = vadd.f32 0.0, %v1564
      %v1566 = vpop.f32.mrb[0].mxu0
      %v1567 = vadd.f32 0.0, %v1566
      %v1568 = vpop.f32.mrb[0].mxu0
      %v1569 = vadd.f32 0.0, %v1568
      %v1570 = vpop.f32.mrb[0].mxu0
      %v1571 = vadd.f32 0.0, %v1570
      %1572 = vmatprep.mubr.bf16.mxu0 %v1285
      %1573 = vmatmul.mubr.bf16.gmra.mrb[0].mxu0 %v1277
      %v1574 = vpop.f32.mrb[0].mxu0
      %v1575 = vadd.f32 0.0, %v1574
      %v1576 = vpop.f32.mrb[0].mxu0
      %v1577 = vadd.f32 0.0, %v1576
      %v1578 = vpop.f32.mrb[0].mxu0
      %v1579 = vadd.f32 0.0, %v1578
      %v1580 = vpop.f32.mrb[0].mxu0
      %v1581 = vadd.f32 0.0, %v1580
      %1582 = vmatprep.mubr.bf16.mxu0 %v1291
      %1583 = vmatmul.mubr.bf16.gmra.mrb[0].mxu0 %v1288
      %v1584 = vpop.f32.mrb[0].mxu0
      %v1585 = vadd.f32 0.0, %v1584
      %v1586 = vpop.f32.mrb[0].mxu0
      %v1587 = vadd.f32 0.0, %v1586
      %v1588 = vpop.f32.mrb[0].mxu0
      %v1589 = vadd.f32 0.0, %v1588
      %v1590 = vpop.f32.mrb[0].mxu0
      %v1591 = vadd.f32 0.0, %v1590
      %1592 = vdwg.mxu0
      %v1593 = vadd.f32 %v1063, %v1505
      %v1594 = vadd.f32 %v1064, %v1507
      %v1595 = vadd.f32 %v1065, %v1509
      %v1596 = vadd.f32 %v1066, %v1511
      %v1597 = vadd.f32 %v1067, %v1515
      %v1598 = vadd.f32 %v1068, %v1517
      %v1599 = vadd.f32 %v1069, %v1519
      %v1600 = vadd.f32 %v1070, %v1521
      %v1601 = vadd.f32 %v1071, %v1525
      %v1602 = vadd.f32 %v1072, %v1527
      %v1603 = vadd.f32 %v1073, %v1529
      %v1604 = vadd.f32 %v1074, %v1531
      %v1605 = vadd.f32 %v1075, %v1535
      %v1606 = vadd.f32 %v1076, %v1537
      %v1607 = vadd.f32 %v1077, %v1539
      %v1608 = vadd.f32 %v1078, %v1541
      %v1609 = vadd.f32 %v1079, %v1545
      %v1610 = vadd.f32 %v1080, %v1547
      %v1611 = vadd.f32 %v1081, %v1549
      %v1612 = vadd.f32 %v1082, %v1551
      %v1613 = vadd.f32 %v1083, %v1555
      %v1614 = vadd.f32 %v1084, %v1557
      %v1615 = vadd.f32 %v1085, %v1559
      %v1616 = vadd.f32 %v1086, %v1561
      %v1617 = vadd.f32 %v1087, %v1565
      %v1618 = vadd.f32 %v1088, %v1567
      %v1619 = vadd.f32 %v1089, %v1569
      %v1620 = vadd.f32 %v1090, %v1571
      %v1621 = vadd.f32 %v1091, %v1575
      %v1622 = vadd.f32 %v1092, %v1577
      %v1623 = vadd.f32 %v1093, %v1579
      %v1624 = vadd.f32 %v1094, %v1581
      %v1625 = vadd.f32 %v1095, %v1585
      %v1626 = vadd.f32 %v1096, %v1587
      %v1627 = vadd.f32 %v1097, %v1589
      %v1628 = vadd.f32 %v1098, %v1591
      %1629 = vst [vmem:[#allocation4] sm:$0xff] %v1593
      %1630 = vst [vmem:[#allocation4 + $0x8] sm:$0xff] %v1594
      %1631 = vst [vmem:[#allocation4 + $0x10] sm:$0xff] %v1595
      %1632 = vst [vmem:[#allocation4 + $0x18] sm:$0xff] %v1596
      %1633 = vst [vmem:[#allocation4 + $0x20] sm:$0xff] %v1597
      %1634 = vst [vmem:[#allocation4 + $0x28] sm:$0xff] %v1598
      %1635 = vst [vmem:[#allocation4 + $0x30] sm:$0xff] %v1599
      %1636 = vst [vmem:[#allocation4 + $0x38] sm:$0xff] %v1600
      %1637 = vst [vmem:[#allocation4 + $0x40] sm:$0xff] %v1601
      %1638 = vst [vmem:[#allocation4 + $0x48] sm:$0xff] %v1602
      %1639 = vst [vmem:[#allocation4 + $0x50] sm:$0xff] %v1603
      %1640 = vst [vmem:[#allocation4 + $0x58] sm:$0xff] %v1604
      %1641 = vst [vmem:[#allocation4 + $0x60] sm:$0xff] %v1605
      %1642 = vst [vmem:[#allocation4 + $0x68] sm:$0xff] %v1606
      %1643 = vst [vmem:[#allocation4 + $0x70] sm:$0xff] %v1607
      %1644 = vst [vmem:[#allocation4 + $0x78] sm:$0xff] %v1608
      %1645 = vst [vmem:[#allocation4 + $0x80] sm:$0xff] %v1609
      %1646 = vst [vmem:[#allocation4 + $0x88] sm:$0xff] %v1610
      %1647 = vst [vmem:[#allocation4 + $0x90] sm:$0xff] %v1611
      %1648 = vst [vmem:[#allocation4 + $0x98] sm:$0xff] %v1612
      %1649 = vst [vmem:[#allocation4 + $0xa0] sm:$0xff] %v1613
      %1650 = vst [vmem:[#allocation4 + $0xa8] sm:$0xff] %v1614
      %1651 = vst [vmem:[#allocation4 + $0xb0] sm:$0xff] %v1615
      %1652 = vst [vmem:[#allocation4 + $0xb8] sm:$0xff] %v1616
      %1653 = vst [vmem:[#allocation4 + $0xc0] sm:$0xff] %v1617
      %1654 = vst [vmem:[#allocation4 + $0xc8] sm:$0xff] %v1618
      %1655 = vst [vmem:[#allocation4 + $0xd0] sm:$0xff] %v1619
      %1656 = vst [vmem:[#allocation4 + $0xd8] sm:$0xff] %v1620
      %1657 = vst [vmem:[#allocation4 + $0xe0] sm:$0xff] %v1621
      %1658 = vst [vmem:[#allocation4 + $0xe8] sm:$0xff] %v1622
      %1659 = vst [vmem:[#allocation4 + $0xf0] sm:$0xff] %v1623
      %1660 = vst [vmem:[#allocation4 + $0xf8] sm:$0xff] %v1624
      %1661 = vst [vmem:[#allocation4 + $0x100] sm:$0xff] %v1625
      %1662 = vst [vmem:[#allocation4 + $0x108] sm:$0xff] %v1626
      %1663 = vst [vmem:[#allocation4 + $0x110] sm:$0x3f] %v1627
      %1664 = vst [vmem:[#allocation4 + $0x118] sm:$0x3f] %v1628
      %v1665 = vld [vmem:[#allocation4] sm:$0xff]
      %v1666 = vld [vmem:[#allocation4 + $0x8] sm:$0xff]
      %v1667 = vld [vmem:[#allocation4 + $0x10] sm:$0xff]
      %v1668 = vld [vmem:[#allocation4 + $0x18] sm:$0xff]
      %v1669 = vld [vmem:[#allocation4 + $0x20] sm:$0xff]
      %v1670 = vld [vmem:[#allocation4 + $0x28] sm:$0xff]
      %v1671 = vld [vmem:[#allocation4 + $0x30] sm:$0xff]
      %v1672 = vld [vmem:[#allocation4 + $0x38] sm:$0xff]
      %v1673 = vld [vmem:[#allocation4 + $0x40] sm:$0xff]
      %v1674 = vld [vmem:[#allocation4 + $0x48] sm:$0xff]
      %v1675 = vld [vmem:[#allocation4 + $0x50] sm:$0xff]
      %v1676 = vld [vmem:[#allocation4 + $0x58] sm:$0xff]
      %v1677 = vld [vmem:[#allocation4 + $0x60] sm:$0xff]
      %v1678 = vld [vmem:[#allocation4 + $0x68] sm:$0xff]
      %v1679 = vld [vmem:[#allocation4 + $0x70] sm:$0xff]
      %v1680 = vld [vmem:[#allocation4 + $0x78] sm:$0xff]
      %v1681 = vld [vmem:[#allocation4 + $0x80] sm:$0xff]
      %v1682 = vld [vmem:[#allocation4 + $0x88] sm:$0xff]
      %v1683 = vld [vmem:[#allocation4 + $0x90] sm:$0xff]
      %v1684 = vld [vmem:[#allocation4 + $0x98] sm:$0xff]
      %v1685 = vld [vmem:[#allocation4 + $0xa0] sm:$0xff]
      %v1686 = vld [vmem:[#allocation4 + $0xa8] sm:$0xff]
      %v1687 = vld [vmem:[#allocation4 + $0xb0] sm:$0xff]
      %v1688 = vld [vmem:[#allocation4 + $0xb8] sm:$0xff]
      %v1689 = vld [vmem:[#allocation4 + $0xc0] sm:$0xff]
      %v1690 = vld [vmem:[#allocation4 + $0xc8] sm:$0xff]
      %v1691 = vld [vmem:[#allocation4 + $0xd0] sm:$0xff]
      %v1692 = vld [vmem:[#allocation4 + $0xd8] sm:$0xff]
      %v1693 = vld [vmem:[#allocation4 + $0xe0] sm:$0xff]
      %v1694 = vld [vmem:[#allocation4 + $0xe8] sm:$0xff]
      %v1695 = vld [vmem:[#allocation4 + $0xf0] sm:$0xff]
      %v1696 = vld [vmem:[#allocation4 + $0xf8] sm:$0xff]
      %v1697 = vld [vmem:[#allocation4 + $0x100] sm:$0xff]
      %v1698 = vld [vmem:[#allocation4 + $0x108] sm:$0xff]
      %v1699 = vld [vmem:[#allocation4 + $0x110] sm:$0x3f]
      %v1700 = vld [vmem:[#allocation4 + $0x118] sm:$0x3f]
      %v1701 = vld [vmem:[#allocation2] sm:$0xfe]
      %v1702 = vld [vmem:[#allocation2 + $0x8] sm:$0xfe]
      %v1703 = vld [vmem:[#allocation2 + $0x10] sm:$0xff]
      %v1704 = vld [vmem:[#allocation2 + $0x18] sm:$0xff]
      %v1705 = vld [vmem:[#allocation2 + $0x20] sm:$0xff]
      %v1706 = vld [vmem:[#allocation2 + $0x28] sm:$0xff]
      %v1707 = vld [vmem:[#allocation2 + $0x30] sm:$0xff]
      %v1708 = vld [vmem:[#allocation2 + $0x38] sm:$0xff]
      %v1709 = vld [vmem:[#allocation2 + $0x40] sm:$0xff]
      %v1710 = vld [vmem:[#allocation2 + $0x48] sm:$0xff]
      %v1711 = vld [vmem:[#allocation2 + $0x50] sm:$0xff]
      %v1712 = vld [vmem:[#allocation2 + $0x58] sm:$0xff]
      %v1713 = vld [vmem:[#allocation2 + $0x60] sm:$0xff]
      %v1714 = vld [vmem:[#allocation2 + $0x68] sm:$0xff]
      %v1715 = vld [vmem:[#allocation2 + $0x70] sm:$0xff]
      %v1716 = vld [vmem:[#allocation2 + $0x78] sm:$0xff]
      %v1717 = vld [vmem:[#allocation2 + $0x80] sm:$0xff]
      %v1718 = vld [vmem:[#allocation2 + $0x88] sm:$0xff]
      %s1719 = scalar_lea.vmem %s1, 512
      %v1720 = vld [vmem:[%s1719] sm:$0xff]
      %v1721 = vld [vmem:[%s1719 + $0x8] sm:$0xff]
      %v1722 = vld [vmem:[%s1719 + $0x10] sm:$0xff]
      %v1723 = vld [vmem:[%s1719 + $0x18] sm:$0xff]
      %v1724 = vld [vmem:[%s1719 + $0x20] sm:$0xff]
      %v1725 = vld [vmem:[%s1719 + $0x28] sm:$0xff]
      %v1726 = vld [vmem:[%s1719 + $0x30] sm:$0xff]
      %v1727 = vld [vmem:[%s1719 + $0x38] sm:$0xff]
      %v1728 = vld [vmem:[%s1719 + $0x40] sm:$0xff]
      %v1729 = vld [vmem:[%s1719 + $0x48] sm:$0xff]
      %v1730 = vld [vmem:[%s1719 + $0x50] sm:$0xff]
      %v1731 = vld [vmem:[%s1719 + $0x58] sm:$0xff]
      %v1732 = vld [vmem:[%s1719 + $0x60] sm:$0xff]
      %v1733 = vld [vmem:[%s1719 + $0x68] sm:$0xff]
      %v1734 = vld [vmem:[%s1719 + $0x70] sm:$0xff]
      %v1735 = vld [vmem:[%s1719 + $0x78] sm:$0xff]
      %v1736 = vld [vmem:[%s1719 + $0x80] sm:$0xff]
      %v1737 = vld [vmem:[%s1719 + $0x88] sm:$0xff]
      %v1738 = vld [vmem:[%s1719 + $0x90] sm:$0xff]
      %v1739 = vld [vmem:[%s1719 + $0x98] sm:$0xff]
      %v1740 = vld [vmem:[%s1719 + $0xa0] sm:$0xff]
      %v1741 = vld [vmem:[%s1719 + $0xa8] sm:$0xff]
      %v1742 = vld [vmem:[%s1719 + $0xb0] sm:$0xff]
      %v1743 = vld [vmem:[%s1719 + $0xb8] sm:$0xff]
      %v1744 = vld [vmem:[%s1719 + $0xc0] sm:$0xff]
      %v1745 = vld [vmem:[%s1719 + $0xc8] sm:$0xff]
      %v1746 = vld [vmem:[%s1719 + $0xd0] sm:$0xff]
      %v1747 = vld [vmem:[%s1719 + $0xd8] sm:$0xff]
      %v1748 = vld [vmem:[%s1719 + $0xe0] sm:$0xff]
      %v1749 = vld [vmem:[%s1719 + $0xe8] sm:$0xff]
      %v1750 = vld [vmem:[%s1719 + $0xf0] sm:$0xff]
      %v1751 = vld [vmem:[%s1719 + $0xf8] sm:$0xff]
      %v1770 = vrot.slane %v1701, 1
      %v1771 = vrot.slane %v1703, 1
      %v1772 = vsel %vm624, %v1770, %v1771
      %v1773 = vrot.slane %v1702, 1
      %v1774 = vrot.slane %v1704, 1
      %v1775 = vsel %vm624, %v1773, %v1774
      %v1776 = vrot.slane %v1705, 1
      %v1777 = vsel %vm624, %v1771, %v1776
      %v1778 = vrot.slane %v1706, 1
      %v1779 = vsel %vm624, %v1774, %v1778
      %v1780 = vrot.slane %v1707, 1
      %v1781 = vsel %vm624, %v1776, %v1780
      %v1782 = vrot.slane %v1708, 1
      %v1783 = vsel %vm624, %v1778, %v1782
      %v1784 = vrot.slane %v1709, 1
      %v1785 = vsel %vm624, %v1780, %v1784
      %v1786 = vrot.slane %v1710, 1
      %v1787 = vsel %vm624, %v1782, %v1786
      %v1788 = vrot.slane %v1711, 1
      %v1789 = vsel %vm624, %v1784, %v1788
      %v1790 = vrot.slane %v1712, 1
      %v1791 = vsel %vm624, %v1786, %v1790
      %v1792 = vrot.slane %v1713, 1
      %v1793 = vsel %vm624, %v1788, %v1792
      %v1794 = vrot.slane %v1714, 1
      %v1795 = vsel %vm624, %v1790, %v1794
      %v1796 = vrot.slane %v1715, 1
      %v1797 = vsel %vm624, %v1792, %v1796
      %v1798 = vrot.slane %v1716, 1
      %v1799 = vsel %vm624, %v1794, %v1798
      %v1800 = vrot.slane %v1717, 1
      %v1801 = vsel %vm624, %v1796, %v1800
      %v1802 = vrot.slane %v1718, 1
      %v1803 = vsel %vm624, %v1798, %v1802
      %v1854 = vunpack.c.l.b16 %v1720
      %v1855 = vunpack.c.h.b16 %v1720
      %v1856 = vunpack.c.l.b16 %v1721
      %v1857 = vunpack.c.h.b16 %v1721
      %v1858 = vunpack.c.l.b16 %v1722
      %v1859 = vunpack.c.h.b16 %v1722
      %v1860 = vunpack.c.l.b16 %v1723
      %v1861 = vunpack.c.h.b16 %v1723
      %v1862 = vunpack.c.l.b16 %v1724
      %v1863 = vunpack.c.h.b16 %v1724
      %v1864 = vunpack.c.l.b16 %v1725
      %v1865 = vunpack.c.h.b16 %v1725
      %v1866 = vunpack.c.l.b16 %v1726
      %v1867 = vunpack.c.h.b16 %v1726
      %v1868 = vunpack.c.l.b16 %v1727
      %v1869 = vunpack.c.h.b16 %v1727
      %v1870 = vunpack.c.l.b16 %v1728
      %v1871 = vunpack.c.h.b16 %v1728
      %v1872 = vunpack.c.l.b16 %v1729
      %v1873 = vunpack.c.h.b16 %v1729
      %v1874 = vunpack.c.l.b16 %v1730
      %v1875 = vunpack.c.h.b16 %v1730
      %v1876 = vunpack.c.l.b16 %v1731
      %v1877 = vunpack.c.h.b16 %v1731
      %v1878 = vunpack.c.l.b16 %v1732
      %v1879 = vunpack.c.h.b16 %v1732
      %v1880 = vunpack.c.l.b16 %v1733
      %v1881 = vunpack.c.h.b16 %v1733
      %v1882 = vunpack.c.l.b16 %v1734
      %v1883 = vunpack.c.h.b16 %v1734
      %v1884 = vunpack.c.l.b16 %v1735
      %v1885 = vunpack.c.h.b16 %v1735
      %v1886 = vunpack.c.l.b16 %v1736
      %v1887 = vunpack.c.h.b16 %v1736
      %v1888 = vunpack.c.l.b16 %v1737
      %v1889 = vunpack.c.h.b16 %v1737
      %v1890 = vunpack.c.l.b16 %v1738
      %v1891 = vunpack.c.h.b16 %v1738
      %v1892 = vunpack.c.l.b16 %v1739
      %v1893 = vunpack.c.h.b16 %v1739
      %v1894 = vunpack.c.l.b16 %v1740
      %v1895 = vunpack.c.h.b16 %v1740
      %v1896 = vunpack.c.l.b16 %v1741
      %v1897 = vunpack.c.h.b16 %v1741
      %v1898 = vunpack.c.l.b16 %v1742
      %v1899 = vunpack.c.h.b16 %v1742
      %v1900 = vunpack.c.l.b16 %v1743
      %v1901 = vunpack.c.h.b16 %v1743
      %v1902 = vunpack.c.l.b16 %v1744
      %v1903 = vunpack.c.h.b16 %v1744
      %v1904 = vunpack.c.l.b16 %v1745
      %v1905 = vunpack.c.h.b16 %v1745
      %v1906 = vunpack.c.l.b16 %v1746
      %v1907 = vunpack.c.h.b16 %v1746
      %v1908 = vunpack.c.l.b16 %v1747
      %v1909 = vunpack.c.h.b16 %v1747
      %v1910 = vunpack.c.l.b16 %v1748
      %v1911 = vunpack.c.h.b16 %v1748
      %v1912 = vunpack.c.l.b16 %v1749
      %v1913 = vunpack.c.h.b16 %v1749
      %v1914 = vunpack.c.l.b16 %v1750
      %v1915 = vunpack.c.h.b16 %v1750
      %v1916 = vunpack.c.l.b16 %v1751
      %v1917 = vunpack.c.h.b16 %v1751
      %v1918 = vpack.c.b16 %v1856, %v1854
      %v1919 = vpack.c.b16 %v1857, %v1855
      %v1920 = vpack.c.b16 %v1860, %v1858
      %v1921 = vpack.c.b16 %v1861, %v1859
      %v1922 = vpack.c.b16 %v1864, %v1862
      %v1923 = vpack.c.b16 %v1865, %v1863
      %v1924 = vpack.c.b16 %v1868, %v1866
      %v1925 = vpack.c.b16 %v1869, %v1867
      %v1926 = vpack.c.b16 %v1872, %v1870
      %v1927 = vpack.c.b16 %v1873, %v1871
      %v1928 = vpack.c.b16 %v1876, %v1874
      %v1929 = vpack.c.b16 %v1877, %v1875
      %v1930 = vpack.c.b16 %v1880, %v1878
      %v1931 = vpack.c.b16 %v1881, %v1879
      %v1932 = vpack.c.b16 %v1884, %v1882
      %v1933 = vpack.c.b16 %v1885, %v1883
      %v1934 = vpack.c.b16 %v1888, %v1886
      %v1935 = vpack.c.b16 %v1889, %v1887
      %v1936 = vpack.c.b16 %v1892, %v1890
      %v1937 = vpack.c.b16 %v1893, %v1891
      %v1938 = vpack.c.b16 %v1896, %v1894
      %v1939 = vpack.c.b16 %v1897, %v1895
      %v1940 = vpack.c.b16 %v1900, %v1898
      %v1941 = vpack.c.b16 %v1901, %v1899
      %v1942 = vpack.c.b16 %v1904, %v1902
      %v1943 = vpack.c.b16 %v1905, %v1903
      %v1944 = vpack.c.b16 %v1908, %v1906
      %v1945 = vpack.c.b16 %v1909, %v1907
      %v1946 = vpack.c.b16 %v1912, %v1910
      %v1947 = vpack.c.b16 %v1913, %v1911
      %v1948 = vpack.c.b16 %v1916, %v1914
      %v1949 = vpack.c.b16 %v1917, %v1915
      %1982 = vmatprep.subr.bf16.mxu0 %v1919
      %1983 = vmatpush1.bf16.msra.mxu0 %v1918
      %1984 = vmatprep.subr.bf16.mxu0 %v1921
      %1985 = vmatpush1.bf16.msra.mxu0 %v1920
      %1986 = vmatprep.subr.bf16.mxu0 %v1923
      %1987 = vmatpush1.bf16.msra.mxu0 %v1922
      %1988 = vmatprep.subr.bf16.mxu0 %v1925
      %1989 = vmatpush1.bf16.msra.mxu0 %v1924
      %1990 = vmatprep.subr.bf16.mxu0 %v1927
      %1991 = vmatpush1.bf16.msra.mxu0 %v1926
      %1992 = vmatprep.subr.bf16.mxu0 %v1929
      %1993 = vmatpush1.bf16.msra.mxu0 %v1928
      %1994 = vmatprep.subr.bf16.mxu0 %v1931
      %1995 = vmatpush1.bf16.msra.mxu0 %v1930
      %1996 = vmatprep.subr.bf16.mxu0 %v1933
      %1997 = vmatpush1.bf16.msra.mxu0 %v1932
      %1998 = vmatprep.subr.bf16.mxu0 %v1935
      %1999 = vmatpush1.bf16.msra.mxu0 %v1934
      %2000 = vmatprep.subr.bf16.mxu0 %v1937
      %2001 = vmatpush1.bf16.msra.mxu0 %v1936
      %2002 = vmatprep.subr.bf16.mxu0 %v1939
      %2003 = vmatpush1.bf16.msra.mxu0 %v1938
      %2004 = vmatprep.subr.bf16.mxu0 %v1941
      %2005 = vmatpush1.bf16.msra.mxu0 %v1940
      %2006 = vmatprep.subr.bf16.mxu0 %v1943
      %2007 = vmatpush1.bf16.msra.mxu0 %v1942
      %2008 = vmatprep.subr.bf16.mxu0 %v1945
      %2009 = vmatpush1.bf16.msra.mxu0 %v1944
      %2010 = vmatprep.subr.bf16.mxu0 %v1947
      %2011 = vmatpush1.bf16.msra.mxu0 %v1946
      %2012 = vmatprep.subr.bf16.mxu0 %v1949
      %2013 = vmatpush1.bf16.msra.mxu0 %v1948
      %2014 = vmatprep.mubr.bf16.mxu0 %v1775
      %2015 = vmatmul.mubr.bf16.gmra.mrb[0].mxu0 %v1772
      %v2016 = vpop.f32.mrb[0].mxu0
      %v2017 = vadd.f32 0.0, %v2016
      %v2018 = vpop.f32.mrb[0].mxu0
      %v2019 = vadd.f32 0.0, %v2018
      %v2020 = vpop.f32.mrb[0].mxu0
      %v2021 = vadd.f32 0.0, %v2020
      %v2022 = vpop.f32.mrb[0].mxu0
      %v2023 = vadd.f32 0.0, %v2022
      %2024 = vmatprep.mubr.bf16.mxu0 %v1779
      %2025 = vmatmul.mubr.bf16.gmra.mrb[0].mxu0 %v1777
      %v2026 = vpop.f32.mrb[0].mxu0
      %v2027 = vadd.f32 0.0, %v2026
      %v2028 = vpop.f32.mrb[0].mxu0
      %v2029 = vadd.f32 0.0, %v2028
      %v2030 = vpop.f32.mrb[0].mxu0
      %v2031 = vadd.f32 0.0, %v2030
      %v2032 = vpop.f32.mrb[0].mxu0
      %v2033 = vadd.f32 0.0, %v2032
      %2034 = vmatprep.mubr.bf16.mxu0 %v1783
      %2035 = vmatmul.mubr.bf16.gmra.mrb[0].mxu0 %v1781
      %v2036 = vpop.f32.mrb[0].mxu0
      %v2037 = vadd.f32 0.0, %v2036
      %v2038 = vpop.f32.mrb[0].mxu0
      %v2039 = vadd.f32 0.0, %v2038
      %v2040 = vpop.f32.mrb[0].mxu0
      %v2041 = vadd.f32 0.0, %v2040
      %v2042 = vpop.f32.mrb[0].mxu0
      %v2043 = vadd.f32 0.0, %v2042
      %2044 = vmatprep.mubr.bf16.mxu0 %v1787
      %2045 = vmatmul.mubr.bf16.gmra.mrb[0].mxu0 %v1785
      %v2046 = vpop.f32.mrb[0].mxu0
      %v2047 = vadd.f32 0.0, %v2046
      %v2048 = vpop.f32.mrb[0].mxu0
      %v2049 = vadd.f32 0.0, %v2048
      %v2050 = vpop.f32.mrb[0].mxu0
      %v2051 = vadd.f32 0.0, %v2050
      %v2052 = vpop.f32.mrb[0].mxu0
      %v2053 = vadd.f32 0.0, %v2052
      %2054 = vmatprep.mubr.bf16.mxu0 %v1791
      %2055 = vmatmul.mubr.bf16.gmra.mrb[0].mxu0 %v1789
      %v2056 = vpop.f32.mrb[0].mxu0
      %v2057 = vadd.f32 0.0, %v2056
      %v2058 = vpop.f32.mrb[0].mxu0
      %v2059 = vadd.f32 0.0, %v2058
      %v2060 = vpop.f32.mrb[0].mxu0
      %v2061 = vadd.f32 0.0, %v2060
      %v2062 = vpop.f32.mrb[0].mxu0
      %v2063 = vadd.f32 0.0, %v2062
      %2064 = vmatprep.mubr.bf16.mxu0 %v1795
      %2065 = vmatmul.mubr.bf16.gmra.mrb[0].mxu0 %v1793
      %v2066 = vpop.f32.mrb[0].mxu0
      %v2067 = vadd.f32 0.0, %v2066
      %v2068 = vpop.f32.mrb[0].mxu0
      %v2069 = vadd.f32 0.0, %v2068
      %v2070 = vpop.f32.mrb[0].mxu0
      %v2071 = vadd.f32 0.0, %v2070
      %v2072 = vpop.f32.mrb[0].mxu0
      %v2073 = vadd.f32 0.0, %v2072
      %2074 = vmatprep.mubr.bf16.mxu0 %v1799
      %2075 = vmatmul.mubr.bf16.gmra.mrb[0].mxu0 %v1797
      %v2076 = vpop.f32.mrb[0].mxu0
      %v2077 = vadd.f32 0.0, %v2076
      %v2078 = vpop.f32.mrb[0].mxu0
      %v2079 = vadd.f32 0.0, %v2078
      %v2080 = vpop.f32.mrb[0].mxu0
      %v2081 = vadd.f32 0.0, %v2080
      %v2082 = vpop.f32.mrb[0].mxu0
      %v2083 = vadd.f32 0.0, %v2082
      %2084 = vmatprep.mubr.bf16.mxu0 %v1803
      %2085 = vmatmul.mubr.bf16.gmra.mrb[0].mxu0 %v1801
      %v2086 = vpop.f32.mrb[0].mxu0
      %v2087 = vadd.f32 0.0, %v2086
      %v2088 = vpop.f32.mrb[0].mxu0
      %v2089 = vadd.f32 0.0, %v2088
      %v2090 = vpop.f32.mrb[0].mxu0
      %v2091 = vadd.f32 0.0, %v2090
      %v2092 = vpop.f32.mrb[0].mxu0
      %v2093 = vadd.f32 0.0, %v2092
      %2094 = vmatprep.mubr.bf16.mxu0 %v1802
      %2095 = vmatmul.mubr.bf16.gmra.mrb[0].mxu0 %v1800
      %v2096 = vpop.f32.mrb[0].mxu0
      %v2097 = vadd.f32 0.0, %v2096
      %v2098 = vpop.f32.mrb[0].mxu0
      %v2099 = vadd.f32 0.0, %v2098
      %v2100 = vpop.f32.mrb[0].mxu0
      %v2101 = vadd.f32 0.0, %v2100
      %v2102 = vpop.f32.mrb[0].mxu0
      %v2103 = vadd.f32 0.0, %v2102
      %2104 = vdwg.mxu0
      %v2105 = vadd.f32 %v1665, %v2017
      %v2106 = vadd.f32 %v1666, %v2019
      %v2107 = vadd.f32 %v1667, %v2021
      %v2108 = vadd.f32 %v1668, %v2023
      %v2109 = vadd.f32 %v1669, %v2027
      %v2110 = vadd.f32 %v1670, %v2029
      %v2111 = vadd.f32 %v1671, %v2031
      %v2112 = vadd.f32 %v1672, %v2033
      %v2113 = vadd.f32 %v1673, %v2037
      %v2114 = vadd.f32 %v1674, %v2039
      %v2115 = vadd.f32 %v1675, %v2041
      %v2116 = vadd.f32 %v1676, %v2043
      %v2117 = vadd.f32 %v1677, %v2047
      %v2118 = vadd.f32 %v1678, %v2049
      %v2119 = vadd.f32 %v1679, %v2051
      %v2120 = vadd.f32 %v1680, %v2053
      %v2121 = vadd.f32 %v1681, %v2057
      %v2122 = vadd.f32 %v1682, %v2059
      %v2123 = vadd.f32 %v1683, %v2061
      %v2124 = vadd.f32 %v1684, %v2063
      %v2125 = vadd.f32 %v1685, %v2067
      %v2126 = vadd.f32 %v1686, %v2069
      %v2127 = vadd.f32 %v1687, %v2071
      %v2128 = vadd.f32 %v1688, %v2073
      %v2129 = vadd.f32 %v1689, %v2077
      %v2130 = vadd.f32 %v1690, %v2079
      %v2131 = vadd.f32 %v1691, %v2081
      %v2132 = vadd.f32 %v1692, %v2083
      %v2133 = vadd.f32 %v1693, %v2087
      %v2134 = vadd.f32 %v1694, %v2089
      %v2135 = vadd.f32 %v1695, %v2091
      %v2136 = vadd.f32 %v1696, %v2093
      %v2137 = vadd.f32 %v1697, %v2097
      %v2138 = vadd.f32 %v1698, %v2099
      %v2139 = vadd.f32 %v1699, %v2101
      %v2140 = vadd.f32 %v1700, %v2103
      %2141 = vst [vmem:[#allocation4] sm:$0xff] %v2105
      %2142 = vst [vmem:[#allocation4 + $0x8] sm:$0xff] %v2106
      %2143 = vst [vmem:[#allocation4 + $0x10] sm:$0xff] %v2107
      %2144 = vst [vmem:[#allocation4 + $0x18] sm:$0xff] %v2108
      %2145 = vst [vmem:[#allocation4 + $0x20] sm:$0xff] %v2109
      %2146 = vst [vmem:[#allocation4 + $0x28] sm:$0xff] %v2110
      %2147 = vst [vmem:[#allocation4 + $0x30] sm:$0xff] %v2111
      %2148 = vst [vmem:[#allocation4 + $0x38] sm:$0xff] %v2112
      %2149 = vst [vmem:[#allocation4 + $0x40] sm:$0xff] %v2113
      %2150 = vst [vmem:[#allocation4 + $0x48] sm:$0xff] %v2114
      %2151 = vst [vmem:[#allocation4 + $0x50] sm:$0xff] %v2115
      %2152 = vst [vmem:[#allocation4 + $0x58] sm:$0xff] %v2116
      %2153 = vst [vmem:[#allocation4 + $0x60] sm:$0xff] %v2117
      %2154 = vst [vmem:[#allocation4 + $0x68] sm:$0xff] %v2118
      %2155 = vst [vmem:[#allocation4 + $0x70] sm:$0xff] %v2119
      %2156 = vst [vmem:[#allocation4 + $0x78] sm:$0xff] %v2120
      %2157 = vst [vmem:[#allocation4 + $0x80] sm:$0xff] %v2121
      %2158 = vst [vmem:[#allocation4 + $0x88] sm:$0xff] %v2122
      %2159 = vst [vmem:[#allocation4 + $0x90] sm:$0xff] %v2123
      %2160 = vst [vmem:[#allocation4 + $0x98] sm:$0xff] %v2124
      %2161 = vst [vmem:[#allocation4 + $0xa0] sm:$0xff] %v2125
      %2162 = vst [vmem:[#allocation4 + $0xa8] sm:$0xff] %v2126
      %2163 = vst [vmem:[#allocation4 + $0xb0] sm:$0xff] %v2127
      %2164 = vst [vmem:[#allocation4 + $0xb8] sm:$0xff] %v2128
      %2165 = vst [vmem:[#allocation4 + $0xc0] sm:$0xff] %v2129
      %2166 = vst [vmem:[#allocation4 + $0xc8] sm:$0xff] %v2130
      %2167 = vst [vmem:[#allocation4 + $0xd0] sm:$0xff] %v2131
      %2168 = vst [vmem:[#allocation4 + $0xd8] sm:$0xff] %v2132
      %2169 = vst [vmem:[#allocation4 + $0xe0] sm:$0xff] %v2133
      %2170 = vst [vmem:[#allocation4 + $0xe8] sm:$0xff] %v2134
      %2171 = vst [vmem:[#allocation4 + $0xf0] sm:$0xff] %v2135
      %2172 = vst [vmem:[#allocation4 + $0xf8] sm:$0xff] %v2136
      %2173 = vst [vmem:[#allocation4 + $0x100] sm:$0xff] %v2137
      %2174 = vst [vmem:[#allocation4 + $0x108] sm:$0xff] %v2138
      %2175 = vst [vmem:[#allocation4 + $0x110] sm:$0x3f] %v2139
      %2176 = vst [vmem:[#allocation4 + $0x118] sm:$0x3f] %v2140
      %v2177 = vld [vmem:[#allocation3] sm:$0x1]
      %v2178 = vsel %vm238, 0, %v2177
      %2179 = vst [vmem:[#allocation3] sm:$0x1] %v2178
      %v2180 = vld [vmem:[#allocation3 + $0x8] sm:$0x1]
      %v2181 = vsel %vm238, 0, %v2180
      %2182 = vst [vmem:[#allocation3 + $0x8] sm:$0x1] %v2181
      %v2183 = vld [vmem:[#allocation4] sm:$0xff]
      %v2184 = vld [vmem:[#allocation4 + $0x8] sm:$0xff]
      %v2185 = vld [vmem:[#allocation4 + $0x10] sm:$0xff]
      %v2186 = vld [vmem:[#allocation4 + $0x18] sm:$0xff]
      %v2188 = vlaneseq
      %v2189 = vshrl.u32 %v2188, 7
      %v2190 = vsub.s32 0, %v2189
      %v2191 = vrot.slane %v234, %v2190
      %v2192 = vlaneseq
      %v2193 = vshrl.u32 %v2192, 7
      %v2194 = vsub.s32 1, %v2193
      %v2195 = vrot.slane %v234, %v2194
      %v2198 = vadd.f32 %v2183, %v2191
      %v2199 = vadd.f32 %v2184, %v2195
      %v2200 = vadd.f32 %v2185, %v2191
      %v2201 = vadd.f32 %v2186, %v2195
      %v2202 = vmax.f32 %v2198, 0.0
      %v2203 = vmax.f32 %v2199, 0.0
      %v2204 = vmax.f32 %v2200, 0.0
      %v2205 = vmax.f32 %v2201, 0.0
      %v2206 = vpack.c.bf16 %v2204, %v2202
      %v2207 = vpack.c.bf16 %v2205, %v2203
      %v2209 = vshrl.u32 %v2206, 16
      %v2211 = vrot.slane %v2209, 7
      %v2212 = vshll.u32 %v2206, 16
      %v2214 = vor.u32 %v2211, %v2212
      %v2216 = vshrl.u32 %v2207, 16
      %v2218 = vrot.slane %v2216, 7
      %v2219 = vshll.u32 %v2207, 16
      %v2221 = vor.u32 %v2218, %v2219
      %v2226 = vld [vmem:[#allocation3] sm:$0xff]
      %v2227 = vsel %vm271, %v2214, %v2226
      %2228 = vst [vmem:[#allocation3] sm:$0xff] %v2227
      %v2229 = vld [vmem:[#allocation3 + $0x8] sm:$0xff]
      %v2230 = vsel %vm271, %v2221, %v2229
      %2231 = vst [vmem:[#allocation3 + $0x8] sm:$0xff] %v2230
      %v2232 = vld [vmem:[#allocation3 + $0x10] sm:$0x1]
      %v2233 = vsel %vm238, %v2211, %v2232
      %2234 = vst [vmem:[#allocation3 + $0x10] sm:$0x1] %v2233
      %v2235 = vld [vmem:[#allocation3 + $0x18] sm:$0x1]
      %v2236 = vsel %vm238, %v2218, %v2235
      %2237 = vst [vmem:[#allocation3 + $0x18] sm:$0x1] %v2236
      %v2238 = vld [vmem:[#allocation3 + $0x10] sm:$0x1]
      %v2239 = vsel %vm284, 0, %v2238
      %2240 = vst [vmem:[#allocation3 + $0x10] sm:$0x1] %v2239
      %v2241 = vld [vmem:[#allocation3 + $0x18] sm:$0x1]
      %v2242 = vsel %vm284, 0, %v2241
      %2243 = vst [vmem:[#allocation3 + $0x18] sm:$0x1] %v2242
      %v2244 = vld [vmem:[#allocation3 + $0x10] sm:$0x2]
      %v2245 = vsel %vm293, 0, %v2244
      %2246 = vst [vmem:[#allocation3 + $0x10] sm:$0x2] %v2245
      %v2247 = vld [vmem:[#allocation3 + $0x18] sm:$0x2]
      %v2248 = vsel %vm293, 0, %v2247
      %2249 = vst [vmem:[#allocation3 + $0x18] sm:$0x2] %v2248
      %v2250 = vld [vmem:[#allocation4 + $0x20] sm:$0xfc]
      %v2251 = vld [vmem:[#allocation4 + $0x28] sm:$0xfc]
      %v2252 = vld [vmem:[#allocation4 + $0x30] sm:$0xff]
      %v2253 = vld [vmem:[#allocation4 + $0x38] sm:$0xff]
      %v2254 = vld [vmem:[#allocation4 + $0x40] sm:$0x3]
      %v2255 = vld [vmem:[#allocation4 + $0x48] sm:$0x3]
      %v2256 = vadd.f32 %v2250, %v2191
      %v2257 = vadd.f32 %v2251, %v2195
      %v2258 = vadd.f32 %v2252, %v2191
      %v2259 = vadd.f32 %v2253, %v2195
      %v2260 = vadd.f32 %v2254, %v2191
      %v2261 = vadd.f32 %v2255, %v2195
      %v2262 = vmax.f32 %v2256, 0.0
      %v2263 = vmax.f32 %v2257, 0.0
      %v2264 = vmax.f32 %v2258, 0.0
      %v2265 = vmax.f32 %v2259, 0.0
      %v2266 = vmax.f32 %v2260, 0.0
      %v2267 = vmax.f32 %v2261, 0.0
      %v2268 = vpack.c.bf16 %v2264, %v2262
      %v2269 = vpack.c.bf16 %v2265, %v2263
      %v2270 = vpack.c.bf16 %v2266, %v2266
      %v2271 = vpack.c.bf16 %v2267, %v2267
      %v2273 = vshrl.u32 %v2268, 16
      %v2275 = vrot.slane %v2273, 7
      %v2276 = vshll.u32 %v2268, 16
      %v2278 = vor.u32 %v2275, %v2276
      %v2280 = vshrl.u32 %v2269, 16
      %v2282 = vrot.slane %v2280, 7
      %v2283 = vshll.u32 %v2269, 16
      %v2285 = vor.u32 %v2282, %v2283
      %v2287 = vshrl.u32 %v2270, 16
      %v2289 = vrot.slane %v2287, 7
      %v2290 = vshll.u32 %v2270, 16
      %v2292 = vor.u32 %v2289, %v2290
      %v2293 = vsel %vm237, %v2275, %v2292
      %v2295 = vshrl.u32 %v2271, 16
      %v2297 = vrot.slane %v2295, 7
      %v2298 = vshll.u32 %v2271, 16
      %v2300 = vor.u32 %v2297, %v2298
      %v2301 = vsel %vm237, %v2282, %v2300
      %v2306 = vld [vmem:[#allocation3 + $0x10] sm:$0xfe]
      %v2307 = vsel %vm327, %v2278, %v2306
      %2308 = vst [vmem:[#allocation3 + $0x10] sm:$0xfe] %v2307
      %v2309 = vld [vmem:[#allocation3 + $0x18] sm:$0xfe]
      %v2310 = vsel %vm327, %v2285, %v2309
      %2311 = vst [vmem:[#allocation3 + $0x18] sm:$0xfe] %v2310
      %v2312 = vld [vmem:[#allocation3 + $0x20] sm:$0x3]
      %v2313 = vsel %vm335, %v2293, %v2312
      %2314 = vst [vmem:[#allocation3 + $0x20] sm:$0x3] %v2313
      %v2315 = vld [vmem:[#allocation3 + $0x28] sm:$0x3]
      %v2316 = vsel %vm335, %v2301, %v2315
      %2317 = vst [vmem:[#allocation3 + $0x28] sm:$0x3] %v2316
      %v2318 = vld [vmem:[#allocation3 + $0x20] sm:$0x2]
      %v2319 = vsel %vm342, 0, %v2318
      %2320 = vst [vmem:[#allocation3 + $0x20] sm:$0x2] %v2319
      %v2321 = vld [vmem:[#allocation3 + $0x28] sm:$0x2]
      %v2322 = vsel %vm342, 0, %v2321
      %2323 = vst [vmem:[#allocation3 + $0x28] sm:$0x2] %v2322
      %v2324 = vld [vmem:[#allocation3 + $0x20] sm:$0x4]
      %v2325 = vsel %vm351, 0, %v2324
      %2326 = vst [vmem:[#allocation3 + $0x20] sm:$0x4] %v2325
      %v2327 = vld [vmem:[#allocation3 + $0x28] sm:$0x4]
      %v2328 = vsel %vm351, 0, %v2327
      %2329 = vst [vmem:[#allocation3 + $0x28] sm:$0x4] %v2328
      %v2330 = vld [vmem:[#allocation4 + $0x40] sm:$0xf0]
      %v2331 = vld [vmem:[#allocation4 + $0x48] sm:$0xf0]
      %v2332 = vld [vmem:[#allocation4 + $0x50] sm:$0xff]
      %v2333 = vld [vmem:[#allocation4 + $0x58] sm:$0xff]
      %v2334 = vld [vmem:[#allocation4 + $0x60] sm:$0xf]
      %v2335 = vld [vmem:[#allocation4 + $0x68] sm:$0xf]
      %v2336 = vadd.f32 %v2330, %v2191
      %v2337 = vadd.f32 %v2331, %v2195
      %v2338 = vadd.f32 %v2332, %v2191
      %v2339 = vadd.f32 %v2333, %v2195
      %v2340 = vadd.f32 %v2334, %v2191
      %v2341 = vadd.f32 %v2335, %v2195
      %v2342 = vmax.f32 %v2336, 0.0
      %v2343 = vmax.f32 %v2337, 0.0
      %v2344 = vmax.f32 %v2338, 0.0
      %v2345 = vmax.f32 %v2339, 0.0
      %v2346 = vmax.f32 %v2340, 0.0
      %v2347 = vmax.f32 %v2341, 0.0
      %v2348 = vpack.c.bf16 %v2344, %v2342
      %v2349 = vpack.c.bf16 %v2345, %v2343
      %v2350 = vpack.c.bf16 %v2346, %v2346
      %v2351 = vpack.c.bf16 %v2347, %v2347
      %v2353 = vshrl.u32 %v2348, 16
      %v2355 = vrot.slane %v2353, 7
      %v2356 = vshll.u32 %v2348, 16
      %v2358 = vor.u32 %v2355, %v2356
      %v2360 = vshrl.u32 %v2349, 16
      %v2362 = vrot.slane %v2360, 7
      %v2363 = vshll.u32 %v2349, 16
      %v2365 = vor.u32 %v2362, %v2363
      %v2367 = vshrl.u32 %v2350, 16
      %v2369 = vrot.slane %v2367, 7
      %v2370 = vshll.u32 %v2350, 16
      %v2372 = vor.u32 %v2369, %v2370
      %v2373 = vsel %vm237, %v2355, %v2372
      %v2375 = vshrl.u32 %v2351, 16
      %v2377 = vrot.slane %v2375, 7
      %v2378 = vshll.u32 %v2351, 16
      %v2380 = vor.u32 %v2377, %v2378
      %v2381 = vsel %vm237, %v2362, %v2380
      %v2386 = vld [vmem:[#allocation3 + $0x20] sm:$0xfc]
      %v2387 = vsel %vm385, %v2358, %v2386
      %2388 = vst [vmem:[#allocation3 + $0x20] sm:$0xfc] %v2387
      %v2389 = vld [vmem:[#allocation3 + $0x28] sm:$0xfc]
      %v2390 = vsel %vm385, %v2365, %v2389
      %2391 = vst [vmem:[#allocation3 + $0x28] sm:$0xfc] %v2390
      %v2392 = vld [vmem:[#allocation3 + $0x30] sm:$0x7]
      %v2393 = vsel %vm393, %v2373, %v2392
      %2394 = vst [vmem:[#allocation3 + $0x30] sm:$0x7] %v2393
      %v2395 = vld [vmem:[#allocation3 + $0x38] sm:$0x7]
      %v2396 = vsel %vm393, %v2381, %v2395
      %2397 = vst [vmem:[#allocation3 + $0x38] sm:$0x7] %v2396
      %v2398 = vld [vmem:[#allocation3 + $0x30] sm:$0x4]
      %v2399 = vsel %vm400, 0, %v2398
      %2400 = vst [vmem:[#allocation3 + $0x30] sm:$0x4] %v2399
      %v2401 = vld [vmem:[#allocation3 + $0x38] sm:$0x4]
      %v2402 = vsel %vm400, 0, %v2401
      %2403 = vst [vmem:[#allocation3 + $0x38] sm:$0x4] %v2402
      %v2404 = vld [vmem:[#allocation3 + $0x30] sm:$0x8]
      %v2405 = vsel %vm409, 0, %v2404
      %2406 = vst [vmem:[#allocation3 + $0x30] sm:$0x8] %v2405
      %v2407 = vld [vmem:[#allocation3 + $0x38] sm:$0x8]
      %v2408 = vsel %vm409, 0, %v2407
      %2409 = vst [vmem:[#allocation3 + $0x38] sm:$0x8] %v2408
      %v2410 = vld [vmem:[#allocation4 + $0x60] sm:$0xc0]
      %v2411 = vld [vmem:[#allocation4 + $0x68] sm:$0xc0]
      %v2412 = vld [vmem:[#allocation4 + $0x70] sm:$0xff]
      %v2413 = vld [vmem:[#allocation4 + $0x78] sm:$0xff]
      %v2414 = vld [vmem:[#allocation4 + $0x80] sm:$0x3f]
      %v2415 = vld [vmem:[#allocation4 + $0x88] sm:$0x3f]
      %v2416 = vadd.f32 %v2410, %v2191
      %v2417 = vadd.f32 %v2411, %v2195
      %v2418 = vadd.f32 %v2412, %v2191
      %v2419 = vadd.f32 %v2413, %v2195
      %v2420 = vadd.f32 %v2414, %v2191
      %v2421 = vadd.f32 %v2415, %v2195
      %v2422 = vmax.f32 %v2416, 0.0
      %v2423 = vmax.f32 %v2417, 0.0
      %v2424 = vmax.f32 %v2418, 0.0
      %v2425 = vmax.f32 %v2419, 0.0
      %v2426 = vmax.f32 %v2420, 0.0
      %v2427 = vmax.f32 %v2421, 0.0
      %v2428 = vpack.c.bf16 %v2424, %v2422
      %v2429 = vpack.c.bf16 %v2425, %v2423
      %v2430 = vpack.c.bf16 %v2426, %v2426
      %v2431 = vpack.c.bf16 %v2427, %v2427
      %v2433 = vshrl.u32 %v2428, 16
      %v2435 = vrot.slane %v2433, 7
      %v2436 = vshll.u32 %v2428, 16
      %v2438 = vor.u32 %v2435, %v2436
      %v2440 = vshrl.u32 %v2429, 16
      %v2442 = vrot.slane %v2440, 7
      %v2443 = vshll.u32 %v2429, 16
      %v2445 = vor.u32 %v2442, %v2443
      %v2447 = vshrl.u32 %v2430, 16
      %v2449 = vrot.slane %v2447, 7
      %v2450 = vshll.u32 %v2430, 16
      %v2452 = vor.u32 %v2449, %v2450
      %v2453 = vsel %vm237, %v2435, %v2452
      %v2455 = vshrl.u32 %v2431, 16
      %v2457 = vrot.slane %v2455, 7
      %v2458 = vshll.u32 %v2431, 16
      %v2460 = vor.u32 %v2457, %v2458
      %v2461 = vsel %vm237, %v2442, %v2460
      %v2466 = vld [vmem:[#allocation3 + $0x30] sm:$0xf8]
      %v2467 = vsel %vm443, %v2438, %v2466
      %2468 = vst [vmem:[#allocation3 + $0x30] sm:$0xf8] %v2467
      %v2469 = vld [vmem:[#allocation3 + $0x38] sm:$0xf8]
      %v2470 = vsel %vm443, %v2445, %v2469
      %2471 = vst [vmem:[#allocation3 + $0x38] sm:$0xf8] %v2470
      %v2472 = vld [vmem:[#allocation3 + $0x40] sm:$0xf]
      %v2473 = vsel %vm451, %v2453, %v2472
      %2474 = vst [vmem:[#allocation3 + $0x40] sm:$0xf] %v2473
      %v2475 = vld [vmem:[#allocation3 + $0x48] sm:$0xf]
      %v2476 = vsel %vm451, %v2461, %v2475
      %2477 = vst [vmem:[#allocation3 + $0x48] sm:$0xf] %v2476
      %v2478 = vld [vmem:[#allocation3 + $0x40] sm:$0x8]
      %v2479 = vsel %vm458, 0, %v2478
      %2480 = vst [vmem:[#allocation3 + $0x40] sm:$0x8] %v2479
      %v2481 = vld [vmem:[#allocation3 + $0x48] sm:$0x8]
      %v2482 = vsel %vm458, 0, %v2481
      %2483 = vst [vmem:[#allocation3 + $0x48] sm:$0x8] %v2482
      %v2484 = vld [vmem:[#allocation3 + $0x40] sm:$0x10]
      %v2485 = vsel %vm467, 0, %v2484
      %2486 = vst [vmem:[#allocation3 + $0x40] sm:$0x10] %v2485
      %v2487 = vld [vmem:[#allocation3 + $0x48] sm:$0x10]
      %v2488 = vsel %vm467, 0, %v2487
      %2489 = vst [vmem:[#allocation3 + $0x48] sm:$0x10] %v2488
      %v2490 = vld [vmem:[#allocation4 + $0x90] sm:$0xff]
      %v2491 = vld [vmem:[#allocation4 + $0x98] sm:$0xff]
      %v2492 = vld [vmem:[#allocation4 + $0xa0] sm:$0xff]
      %v2493 = vld [vmem:[#allocation4 + $0xa8] sm:$0xff]
      %v2494 = vadd.f32 %v2490, %v2191
      %v2495 = vadd.f32 %v2491, %v2195
      %v2496 = vadd.f32 %v2492, %v2191
      %v2497 = vadd.f32 %v2493, %v2195
      %v2498 = vmax.f32 %v2494, 0.0
      %v2499 = vmax.f32 %v2495, 0.0
      %v2500 = vmax.f32 %v2496, 0.0
      %v2501 = vmax.f32 %v2497, 0.0
      %v2502 = vpack.c.bf16 %v2500, %v2498
      %v2503 = vpack.c.bf16 %v2501, %v2499
      %v2505 = vshrl.u32 %v2502, 16
      %v2507 = vrot.slane %v2505, 3
      %v2508 = vshll.u32 %v2502, 16
      %v2510 = vrot.slane %v2508, 4
      %v2511 = vor.u32 %v2507, %v2510
      %v2513 = vshrl.u32 %v2503, 16
      %v2515 = vrot.slane %v2513, 3
      %v2516 = vshll.u32 %v2503, 16
      %v2518 = vrot.slane %v2516, 4
      %v2519 = vor.u32 %v2515, %v2518
      %v2522 = vld [vmem:[#allocation3 + $0x40] sm:$0xf0]
      %v2523 = vsel %vm501, %v2511, %v2522
      %2524 = vst [vmem:[#allocation3 + $0x40] sm:$0xf0] %v2523
      %v2525 = vld [vmem:[#allocation3 + $0x48] sm:$0xf0]
      %v2526 = vsel %vm501, %v2519, %v2525
      %2527 = vst [vmem:[#allocation3 + $0x48] sm:$0xf0] %v2526
      %v2528 = vld [vmem:[#allocation3 + $0x50] sm:$0x1f]
      %v2529 = vsel %vm509, %v2511, %v2528
      %2530 = vst [vmem:[#allocation3 + $0x50] sm:$0x1f] %v2529
      %v2531 = vld [vmem:[#allocation3 + $0x58] sm:$0x1f]
      %v2532 = vsel %vm509, %v2519, %v2531
      %2533 = vst [vmem:[#allocation3 + $0x58] sm:$0x1f] %v2532
      %v2534 = vld [vmem:[#allocation3 + $0x50] sm:$0x10]
      %v2535 = vsel %vm516, 0, %v2534
      %2536 = vst [vmem:[#allocation3 + $0x50] sm:$0x10] %v2535
      %v2537 = vld [vmem:[#allocation3 + $0x58] sm:$0x10]
      %v2538 = vsel %vm516, 0, %v2537
      %2539 = vst [vmem:[#allocation3 + $0x58] sm:$0x10] %v2538
      %v2540 = vld [vmem:[#allocation3 + $0x50] sm:$0x20]
      %v2541 = vsel %vm525, 0, %v2540
      %2542 = vst [vmem:[#allocation3 + $0x50] sm:$0x20] %v2541
      %v2543 = vld [vmem:[#allocation3 + $0x58] sm:$0x20]
      %v2544 = vsel %vm525, 0, %v2543
      %2545 = vst [vmem:[#allocation3 + $0x58] sm:$0x20] %v2544
      %v2546 = vld [vmem:[#allocation4 + $0xb0] sm:$0xfc]
      %v2547 = vld [vmem:[#allocation4 + $0xb8] sm:$0xfc]
      %v2548 = vld [vmem:[#allocation4 + $0xc0] sm:$0xff]
      %v2549 = vld [vmem:[#allocation4 + $0xc8] sm:$0xff]
      %v2550 = vld [vmem:[#allocation4 + $0xd0] sm:$0x3]
      %v2551 = vld [vmem:[#allocation4 + $0xd8] sm:$0x3]
      %v2552 = vadd.f32 %v2546, %v2191
      %v2553 = vadd.f32 %v2547, %v2195
      %v2554 = vadd.f32 %v2548, %v2191
      %v2555 = vadd.f32 %v2549, %v2195
      %v2556 = vadd.f32 %v2550, %v2191
      %v2557 = vadd.f32 %v2551, %v2195
      %v2558 = vmax.f32 %v2552, 0.0
      %v2559 = vmax.f32 %v2553, 0.0
      %v2560 = vmax.f32 %v2554, 0.0
      %v2561 = vmax.f32 %v2555, 0.0
      %v2562 = vmax.f32 %v2556, 0.0
      %v2563 = vmax.f32 %v2557, 0.0
      %v2564 = vpack.c.bf16 %v2560, %v2558
      %v2565 = vpack.c.bf16 %v2561, %v2559
      %v2566 = vpack.c.bf16 %v2562, %v2562
      %v2567 = vpack.c.bf16 %v2563, %v2563
      %v2569 = vshrl.u32 %v2564, 16
      %v2571 = vrot.slane %v2569, 3
      %v2572 = vshll.u32 %v2564, 16
      %v2574 = vrot.slane %v2572, 4
      %v2575 = vor.u32 %v2571, %v2574
      %v2577 = vshrl.u32 %v2565, 16
      %v2579 = vrot.slane %v2577, 3
      %v2580 = vshll.u32 %v2565, 16
      %v2582 = vrot.slane %v2580, 4
      %v2583 = vor.u32 %v2579, %v2582
      %v2585 = vshrl.u32 %v2566, 16
      %v2587 = vrot.slane %v2585, 3
      %v2588 = vshll.u32 %v2566, 16
      %v2590 = vrot.slane %v2588, 4
      %v2591 = vor.u32 %v2587, %v2590
      %v2592 = vsel %vm466, %v2575, %v2591
      %v2594 = vshrl.u32 %v2567, 16
      %v2596 = vrot.slane %v2594, 3
      %v2597 = vshll.u32 %v2567, 16
      %v2599 = vrot.slane %v2597, 4
      %v2600 = vor.u32 %v2596, %v2599
      %v2601 = vsel %vm466, %v2583, %v2600
      %v2606 = vld [vmem:[#allocation3 + $0x50] sm:$0xe0]
      %v2607 = vsel %vm559, %v2575, %v2606
      %2608 = vst [vmem:[#allocation3 + $0x50] sm:$0xe0] %v2607
      %v2609 = vld [vmem:[#allocation3 + $0x58] sm:$0xe0]
      %v2610 = vsel %vm559, %v2583, %v2609
      %2611 = vst [vmem:[#allocation3 + $0x58] sm:$0xe0] %v2610
      %v2612 = vld [vmem:[#allocation3 + $0x60] sm:$0x3f]
      %v2613 = vsel %vm567, %v2592, %v2612
      %2614 = vst [vmem:[#allocation3 + $0x60] sm:$0x3f] %v2613
      %v2615 = vld [vmem:[#allocation3 + $0x68] sm:$0x3f]
      %v2616 = vsel %vm567, %v2601, %v2615
      %2617 = vst [vmem:[#allocation3 + $0x68] sm:$0x3f] %v2616
      %v2618 = vld [vmem:[#allocation3 + $0x60] sm:$0x20]
      %v2619 = vsel %vm574, 0, %v2618
      %2620 = vst [vmem:[#allocation3 + $0x60] sm:$0x20] %v2619
      %v2621 = vld [vmem:[#allocation3 + $0x68] sm:$0x20]
      %v2622 = vsel %vm574, 0, %v2621
      %2623 = vst [vmem:[#allocation3 + $0x68] sm:$0x20] %v2622
      %v2624 = vld [vmem:[#allocation3 + $0x60] sm:$0x40]
      %v2625 = vsel %vm583, 0, %v2624
      %2626 = vst [vmem:[#allocation3 + $0x60] sm:$0x40] %v2625
      %v2627 = vld [vmem:[#allocation3 + $0x68] sm:$0x40]
      %v2628 = vsel %vm583, 0, %v2627
      %2629 = vst [vmem:[#allocation3 + $0x68] sm:$0x40] %v2628
      %v2630 = vld [vmem:[#allocation4 + $0xd0] sm:$0xf0]
      %v2631 = vld [vmem:[#allocation4 + $0xd8] sm:$0xf0]
      %v2632 = vld [vmem:[#allocation4 + $0xe0] sm:$0xff]
      %v2633 = vld [vmem:[#allocation4 + $0xe8] sm:$0xff]
      %v2634 = vld [vmem:[#allocation4 + $0xf0] sm:$0xf]
      %v2635 = vld [vmem:[#allocation4 + $0xf8] sm:$0xf]
      %v2636 = vadd.f32 %v2630, %v2191
      %v2637 = vadd.f32 %v2631, %v2195
      %v2638 = vadd.f32 %v2632, %v2191
      %v2639 = vadd.f32 %v2633, %v2195
      %v2640 = vadd.f32 %v2634, %v2191
      %v2641 = vadd.f32 %v2635, %v2195
      %v2642 = vmax.f32 %v2636, 0.0
      %v2643 = vmax.f32 %v2637, 0.0
      %v2644 = vmax.f32 %v2638, 0.0
      %v2645 = vmax.f32 %v2639, 0.0
      %v2646 = vmax.f32 %v2640, 0.0
      %v2647 = vmax.f32 %v2641, 0.0
      %v2648 = vpack.c.bf16 %v2644, %v2642
      %v2649 = vpack.c.bf16 %v2645, %v2643
      %v2650 = vpack.c.bf16 %v2646, %v2646
      %v2651 = vpack.c.bf16 %v2647, %v2647
      %v2653 = vshrl.u32 %v2648, 16
      %v2655 = vrot.slane %v2653, 3
      %v2656 = vshll.u32 %v2648, 16
      %v2658 = vrot.slane %v2656, 4
      %v2659 = vor.u32 %v2655, %v2658
      %v2661 = vshrl.u32 %v2649, 16
      %v2663 = vrot.slane %v2661, 3
      %v2664 = vshll.u32 %v2649, 16
      %v2666 = vrot.slane %v2664, 4
      %v2667 = vor.u32 %v2663, %v2666
      %v2669 = vshrl.u32 %v2650, 16
      %v2671 = vrot.slane %v2669, 3
      %v2672 = vshll.u32 %v2650, 16
      %v2674 = vrot.slane %v2672, 4
      %v2675 = vor.u32 %v2671, %v2674
      %v2676 = vsel %vm466, %v2659, %v2675
      %v2678 = vshrl.u32 %v2651, 16
      %v2680 = vrot.slane %v2678, 3
      %v2681 = vshll.u32 %v2651, 16
      %v2683 = vrot.slane %v2681, 4
      %v2684 = vor.u32 %v2680, %v2683
      %v2685 = vsel %vm466, %v2667, %v2684
      %v2690 = vld [vmem:[#allocation3 + $0x60] sm:$0xc0]
      %v2691 = vsel %vm617, %v2659, %v2690
      %2692 = vst [vmem:[#allocation3 + $0x60] sm:$0xc0] %v2691
      %v2693 = vld [vmem:[#allocation3 + $0x68] sm:$0xc0]
      %v2694 = vsel %vm617, %v2667, %v2693
      %2695 = vst [vmem:[#allocation3 + $0x68] sm:$0xc0] %v2694
      %v2696 = vld [vmem:[#allocation3 + $0x70] sm:$0x7f]
      %v2697 = vsel %vm625, %v2676, %v2696
      %2698 = vst [vmem:[#allocation3 + $0x70] sm:$0x7f] %v2697
      %v2699 = vld [vmem:[#allocation3 + $0x78] sm:$0x7f]
      %v2700 = vsel %vm625, %v2685, %v2699
      %2701 = vst [vmem:[#allocation3 + $0x78] sm:$0x7f] %v2700
      %v2702 = vld [vmem:[#allocation3 + $0x70] sm:$0x40]
      %v2703 = vsel %vm632, 0, %v2702
      %2704 = vst [vmem:[#allocation3 + $0x70] sm:$0x40] %v2703
      %v2705 = vld [vmem:[#allocation3 + $0x78] sm:$0x40]
      %v2706 = vsel %vm632, 0, %v2705
      %2707 = vst [vmem:[#allocation3 + $0x78] sm:$0x40] %v2706
      %v2708 = vld [vmem:[#allocation3 + $0x70] sm:$0x80]
      %v2709 = vsel %vm641, 0, %v2708
      %2710 = vst [vmem:[#allocation3 + $0x70] sm:$0x80] %v2709
      %v2711 = vld [vmem:[#allocation3 + $0x78] sm:$0x80]
      %v2712 = vsel %vm641, 0, %v2711
      %2713 = vst [vmem:[#allocation3 + $0x78] sm:$0x80] %v2712
      %v2714 = vld [vmem:[#allocation4 + $0xf0] sm:$0xc0]
      %v2715 = vld [vmem:[#allocation4 + $0xf8] sm:$0xc0]
      %v2716 = vld [vmem:[#allocation4 + $0x100] sm:$0xff]
      %v2717 = vld [vmem:[#allocation4 + $0x108] sm:$0xff]
      %v2718 = vld [vmem:[#allocation4 + $0x110] sm:$0x3f]
      %v2719 = vld [vmem:[#allocation4 + $0x118] sm:$0x3f]
      %v2720 = vadd.f32 %v2714, %v2191
      %v2721 = vadd.f32 %v2715, %v2195
      %v2722 = vadd.f32 %v2716, %v2191
      %v2723 = vadd.f32 %v2717, %v2195
      %v2724 = vadd.f32 %v2718, %v2191
      %v2725 = vadd.f32 %v2719, %v2195
      %v2726 = vmax.f32 %v2720, 0.0
      %v2727 = vmax.f32 %v2721, 0.0
      %v2728 = vmax.f32 %v2722, 0.0
      %v2729 = vmax.f32 %v2723, 0.0
      %v2730 = vmax.f32 %v2724, 0.0
      %v2731 = vmax.f32 %v2725, 0.0
      %v2732 = vpack.c.bf16 %v2728, %v2726
      %v2733 = vpack.c.bf16 %v2729, %v2727
      %v2734 = vpack.c.bf16 %v2730, %v2730
      %v2735 = vpack.c.bf16 %v2731, %v2731
      %v2737 = vshll.u32 %v2732, 16
      %v2739 = vrot.slane %v2737, 4
      %v2741 = vshll.u32 %v2733, 16
      %v2743 = vrot.slane %v2741, 4
      %v2744 = vshrl.u32 %v2732, 16
      %v2746 = vrot.slane %v2744, 3
      %v2747 = vor.u32 %v2746, %v2739
      %v2749 = vshrl.u32 %v2734, 16
      %v2751 = vrot.slane %v2749, 3
      %v2752 = vshll.u32 %v2734, 16
      %v2754 = vrot.slane %v2752, 4
      %v2755 = vor.u32 %v2751, %v2754
      %v2756 = vsel %vm466, %v2747, %v2755
      %v2757 = vshrl.u32 %v2733, 16
      %v2759 = vrot.slane %v2757, 3
      %v2760 = vor.u32 %v2759, %v2743
      %v2762 = vshrl.u32 %v2735, 16
      %v2764 = vrot.slane %v2762, 3
      %v2765 = vshll.u32 %v2735, 16
      %v2767 = vrot.slane %v2765, 4
      %v2768 = vor.u32 %v2764, %v2767
      %v2769 = vsel %vm466, %v2760, %v2768
      %v2774 = vld [vmem:[#allocation3 + $0x70] sm:$0x80]
      %v2775 = vsel %vm674, %v2739, %v2774
      %2776 = vst [vmem:[#allocation3 + $0x70] sm:$0x80] %v2775
      %v2777 = vld [vmem:[#allocation3 + $0x78] sm:$0x80]
      %v2778 = vsel %vm674, %v2743, %v2777
      %2779 = vst [vmem:[#allocation3 + $0x78] sm:$0x80] %v2778
      %v2780 = vld [vmem:[#allocation3 + $0x80] sm:$0xff]
      %v2781 = vsel %vm681, %v2756, %v2780
      %2782 = vst [vmem:[#allocation3 + $0x80] sm:$0xff] %v2781
      %v2783 = vld [vmem:[#allocation3 + $0x88] sm:$0xff]
      %v2784 = vsel %vm681, %v2769, %v2783
      %2785 = vst [vmem:[#allocation3 + $0x88] sm:$0xff] %v2784
      %v2786 = vld [vmem:[#allocation3 + $0x80] sm:$0x80]
      %v2787 = vsel %vm674, 0, %v2786
      %2788 = vst [vmem:[#allocation3 + $0x80] sm:$0x80] %v2787
      %v2789 = vld [vmem:[#allocation3 + $0x88] sm:$0x80]
      %v2790 = vsel %vm674, 0, %v2789
      %2791 = vst [vmem:[#allocation3 + $0x88] sm:$0x80] %v2790
      %v2792 = vld [vmem:[#allocation3] sm:$0xff]
      %v2793 = vld [vmem:[#allocation3 + $0x8] sm:$0xff]
      %v2794 = vld [vmem:[#allocation3 + $0x10] sm:$0xff]
      %v2795 = vld [vmem:[#allocation3 + $0x18] sm:$0xff]
      %v2796 = vld [vmem:[#allocation3 + $0x20] sm:$0xff]
      %v2797 = vld [vmem:[#allocation3 + $0x28] sm:$0xff]
      %v2798 = vld [vmem:[#allocation3 + $0x30] sm:$0xff]
      %v2799 = vld [vmem:[#allocation3 + $0x38] sm:$0xff]
      %v2800 = vld [vmem:[#allocation3 + $0x40] sm:$0xff]
      %v2801 = vld [vmem:[#allocation3 + $0x48] sm:$0xff]
      %v2802 = vld [vmem:[#allocation3 + $0x50] sm:$0xff]
      %v2803 = vld [vmem:[#allocation3 + $0x58] sm:$0xff]
      %v2804 = vld [vmem:[#allocation3 + $0x60] sm:$0xff]
      %v2805 = vld [vmem:[#allocation3 + $0x68] sm:$0xff]
      %v2806 = vld [vmem:[#allocation3 + $0x70] sm:$0xff]
      %v2807 = vld [vmem:[#allocation3 + $0x78] sm:$0xff]
      %v2808 = vld [vmem:[#allocation3 + $0x80] sm:$0x7f]
      %v2809 = vld [vmem:[#allocation3 + $0x88] sm:$0x7f]
      %v2810 = vld [vmem:[%s3] sm:$0xff]
      %v2811 = vld [vmem:[%s3 + $0x8] sm:$0xff]
      %v2812 = vld [vmem:[%s3 + $0x10] sm:$0xff]
      %v2813 = vld [vmem:[%s3 + $0x18] sm:$0xff]
      %v2814 = vld [vmem:[%s3 + $0x20] sm:$0xff]
      %v2815 = vld [vmem:[%s3 + $0x28] sm:$0xff]
      %v2816 = vld [vmem:[%s3 + $0x30] sm:$0xff]
      %v2817 = vld [vmem:[%s3 + $0x38] sm:$0xff]
      %v2818 = vld [vmem:[%s3 + $0x40] sm:$0xff]
      %v2819 = vld [vmem:[%s3 + $0x48] sm:$0xff]
      %v2820 = vld [vmem:[%s3 + $0x50] sm:$0xff]
      %v2821 = vld [vmem:[%s3 + $0x58] sm:$0xff]
      %v2822 = vld [vmem:[%s3 + $0x60] sm:$0xff]
      %v2823 = vld [vmem:[%s3 + $0x68] sm:$0xff]
      %v2824 = vld [vmem:[%s3 + $0x70] sm:$0xff]
      %v2825 = vld [vmem:[%s3 + $0x78] sm:$0xff]
      %v2826 = vld [vmem:[%s3 + $0x80] sm:$0xff]
      %v2827 = vld [vmem:[%s3 + $0x88] sm:$0xff]
      %v2828 = vld [vmem:[%s3 + $0x90] sm:$0xff]
      %v2829 = vld [vmem:[%s3 + $0x98] sm:$0xff]
      %v2830 = vld [vmem:[%s3 + $0xa0] sm:$0xff]
      %v2831 = vld [vmem:[%s3 + $0xa8] sm:$0xff]
      %v2832 = vld [vmem:[%s3 + $0xb0] sm:$0xff]
      %v2833 = vld [vmem:[%s3 + $0xb8] sm:$0xff]
      %v2834 = vld [vmem:[%s3 + $0xc0] sm:$0xff]
      %v2835 = vld [vmem:[%s3 + $0xc8] sm:$0xff]
      %v2836 = vld [vmem:[%s3 + $0xd0] sm:$0xff]
      %v2837 = vld [vmem:[%s3 + $0xd8] sm:$0xff]
      %v2838 = vld [vmem:[%s3 + $0xe0] sm:$0xff]
      %v2839 = vld [vmem:[%s3 + $0xe8] sm:$0xff]
      %v2840 = vld [vmem:[%s3 + $0xf0] sm:$0xff]
      %v2841 = vld [vmem:[%s3 + $0xf8] sm:$0xff]
      %v2874 = vunpack.c.l.b16 %v2810
      %v2875 = vunpack.c.h.b16 %v2810
      %v2876 = vunpack.c.l.b16 %v2811
      %v2877 = vunpack.c.h.b16 %v2811
      %v2878 = vunpack.c.l.b16 %v2812
      %v2879 = vunpack.c.h.b16 %v2812
      %v2880 = vunpack.c.l.b16 %v2813
      %v2881 = vunpack.c.h.b16 %v2813
      %v2882 = vunpack.c.l.b16 %v2814
      %v2883 = vunpack.c.h.b16 %v2814
      %v2884 = vunpack.c.l.b16 %v2815
      %v2885 = vunpack.c.h.b16 %v2815
      %v2886 = vunpack.c.l.b16 %v2816
      %v2887 = vunpack.c.h.b16 %v2816
      %v2888 = vunpack.c.l.b16 %v2817
      %v2889 = vunpack.c.h.b16 %v2817
      %v2890 = vunpack.c.l.b16 %v2818
      %v2891 = vunpack.c.h.b16 %v2818
      %v2892 = vunpack.c.l.b16 %v2819
      %v2893 = vunpack.c.h.b16 %v2819
      %v2894 = vunpack.c.l.b16 %v2820
      %v2895 = vunpack.c.h.b16 %v2820
      %v2896 = vunpack.c.l.b16 %v2821
      %v2897 = vunpack.c.h.b16 %v2821
      %v2898 = vunpack.c.l.b16 %v2822
      %v2899 = vunpack.c.h.b16 %v2822
      %v2900 = vunpack.c.l.b16 %v2823
      %v2901 = vunpack.c.h.b16 %v2823
      %v2902 = vunpack.c.l.b16 %v2824
      %v2903 = vunpack.c.h.b16 %v2824
      %v2904 = vunpack.c.l.b16 %v2825
      %v2905 = vunpack.c.h.b16 %v2825
      %v2906 = vunpack.c.l.b16 %v2826
      %v2907 = vunpack.c.h.b16 %v2826
      %v2908 = vunpack.c.l.b16 %v2827
      %v2909 = vunpack.c.h.b16 %v2827
      %v2910 = vunpack.c.l.b16 %v2828
      %v2911 = vunpack.c.h.b16 %v2828
      %v2912 = vunpack.c.l.b16 %v2829
      %v2913 = vunpack.c.h.b16 %v2829
      %v2914 = vunpack.c.l.b16 %v2830
      %v2915 = vunpack.c.h.b16 %v2830
      %v2916 = vunpack.c.l.b16 %v2831
      %v2917 = vunpack.c.h.b16 %v2831
      %v2918 = vunpack.c.l.b16 %v2832
      %v2919 = vunpack.c.h.b16 %v2832
      %v2920 = vunpack.c.l.b16 %v2833
      %v2921 = vunpack.c.h.b16 %v2833
      %v2922 = vunpack.c.l.b16 %v2834
      %v2923 = vunpack.c.h.b16 %v2834
      %v2924 = vunpack.c.l.b16 %v2835
      %v2925 = vunpack.c.h.b16 %v2835
      %v2926 = vunpack.c.l.b16 %v2836
      %v2927 = vunpack.c.h.b16 %v2836
      %v2928 = vunpack.c.l.b16 %v2837
      %v2929 = vunpack.c.h.b16 %v2837
      %v2930 = vunpack.c.l.b16 %v2838
      %v2931 = vunpack.c.h.b16 %v2838
      %v2932 = vunpack.c.l.b16 %v2839
      %v2933 = vunpack.c.h.b16 %v2839
      %v2934 = vunpack.c.l.b16 %v2840
      %v2935 = vunpack.c.h.b16 %v2840
      %v2936 = vunpack.c.l.b16 %v2841
      %v2937 = vunpack.c.h.b16 %v2841
      %v2938 = vpack.c.b16 %v2876, %v2874
      %v2939 = vpack.c.b16 %v2877, %v2875
      %v2940 = vpack.c.b16 %v2880, %v2878
      %v2941 = vpack.c.b16 %v2881, %v2879
      %v2942 = vpack.c.b16 %v2884, %v2882
      %v2943 = vpack.c.b16 %v2885, %v2883
      %v2944 = vpack.c.b16 %v2888, %v2886
      %v2945 = vpack.c.b16 %v2889, %v2887
      %v2946 = vpack.c.b16 %v2892, %v2890
      %v2947 = vpack.c.b16 %v2893, %v2891
      %v2948 = vpack.c.b16 %v2896, %v2894
      %v2949 = vpack.c.b16 %v2897, %v2895
      %v2950 = vpack.c.b16 %v2900, %v2898
      %v2951 = vpack.c.b16 %v2901, %v2899
      %v2952 = vpack.c.b16 %v2904, %v2902
      %v2953 = vpack.c.b16 %v2905, %v2903
      %v2954 = vpack.c.b16 %v2908, %v2906
      %v2955 = vpack.c.b16 %v2909, %v2907
      %v2956 = vpack.c.b16 %v2912, %v2910
      %v2957 = vpack.c.b16 %v2913, %v2911
      %v2958 = vpack.c.b16 %v2916, %v2914
      %v2959 = vpack.c.b16 %v2917, %v2915
      %v2960 = vpack.c.b16 %v2920, %v2918
      %v2961 = vpack.c.b16 %v2921, %v2919
      %v2962 = vpack.c.b16 %v2924, %v2922
      %v2963 = vpack.c.b16 %v2925, %v2923
      %v2964 = vpack.c.b16 %v2928, %v2926
      %v2965 = vpack.c.b16 %v2929, %v2927
      %v2966 = vpack.c.b16 %v2932, %v2930
      %v2967 = vpack.c.b16 %v2933, %v2931
      %v2968 = vpack.c.b16 %v2936, %v2934
      %v2969 = vpack.c.b16 %v2937, %v2935
      %3002 = vmatprep.subr.bf16.mxu0 %v2939
      %3003 = vmatpush1.bf16.msra.mxu0 %v2938
      %3004 = vmatprep.subr.bf16.mxu0 %v2941
      %3005 = vmatpush1.bf16.msra.mxu0 %v2940
      %3006 = vmatprep.subr.bf16.mxu0 %v2943
      %3007 = vmatpush1.bf16.msra.mxu0 %v2942
      %3008 = vmatprep.subr.bf16.mxu0 %v2945
      %3009 = vmatpush1.bf16.msra.mxu0 %v2944
      %3010 = vmatprep.subr.bf16.mxu0 %v2947
      %3011 = vmatpush1.bf16.msra.mxu0 %v2946
      %3012 = vmatprep.subr.bf16.mxu0 %v2949
      %3013 = vmatpush1.bf16.msra.mxu0 %v2948
      %3014 = vmatprep.subr.bf16.mxu0 %v2951
      %3015 = vmatpush1.bf16.msra.mxu0 %v2950
      %3016 = vmatprep.subr.bf16.mxu0 %v2953
      %3017 = vmatpush1.bf16.msra.mxu0 %v2952
      %3018 = vmatprep.subr.bf16.mxu0 %v2955
      %3019 = vmatpush1.bf16.msra.mxu0 %v2954
      %3020 = vmatprep.subr.bf16.mxu0 %v2957
      %3021 = vmatpush1.bf16.msra.mxu0 %v2956
      %3022 = vmatprep.subr.bf16.mxu0 %v2959
      %3023 = vmatpush1.bf16.msra.mxu0 %v2958
      %3024 = vmatprep.subr.bf16.mxu0 %v2961
      %3025 = vmatpush1.bf16.msra.mxu0 %v2960
      %3026 = vmatprep.subr.bf16.mxu0 %v2963
      %3027 = vmatpush1.bf16.msra.mxu0 %v2962
      %3028 = vmatprep.subr.bf16.mxu0 %v2965
      %3029 = vmatpush1.bf16.msra.mxu0 %v2964
      %3030 = vmatprep.subr.bf16.mxu0 %v2967
      %3031 = vmatpush1.bf16.msra.mxu0 %v2966
      %3032 = vmatprep.subr.bf16.mxu0 %v2969
      %3033 = vmatpush1.bf16.msra.mxu0 %v2968
      %3034 = vmatprep.mubr.bf16.mxu0 %v2793
      %3035 = vmatmul.mubr.bf16.gmra.mrb[0].mxu0 %v2792
      %v3036 = vpop.f32.mrb[0].mxu0
      %v3037 = vadd.f32 0.0, %v3036
      %v3038 = vpop.f32.mrb[0].mxu0
      %v3039 = vadd.f32 0.0, %v3038
      %v3040 = vpop.f32.mrb[0].mxu0
      %v3041 = vadd.f32 0.0, %v3040
      %v3042 = vpop.f32.mrb[0].mxu0
      %v3043 = vadd.f32 0.0, %v3042
      %3044 = vmatprep.mubr.bf16.mxu0 %v2795
      %3045 = vmatmul.mubr.bf16.gmra.mrb[0].mxu0 %v2794
      %v3046 = vpop.f32.mrb[0].mxu0
      %v3047 = vadd.f32 0.0, %v3046
      %v3048 = vpop.f32.mrb[0].mxu0
      %v3049 = vadd.f32 0.0, %v3048
      %v3050 = vpop.f32.mrb[0].mxu0
      %v3051 = vadd.f32 0.0, %v3050
      %v3052 = vpop.f32.mrb[0].mxu0
      %v3053 = vadd.f32 0.0, %v3052
      %3054 = vmatprep.mubr.bf16.mxu0 %v2797
      %3055 = vmatmul.mubr.bf16.gmra.mrb[0].mxu0 %v2796
      %v3056 = vpop.f32.mrb[0].mxu0
      %v3057 = vadd.f32 0.0, %v3056
      %v3058 = vpop.f32.mrb[0].mxu0
      %v3059 = vadd.f32 0.0, %v3058
      %v3060 = vpop.f32.mrb[0].mxu0
      %v3061 = vadd.f32 0.0, %v3060
      %v3062 = vpop.f32.mrb[0].mxu0
      %v3063 = vadd.f32 0.0, %v3062
      %3064 = vmatprep.mubr.bf16.mxu0 %v2799
      %3065 = vmatmul.mubr.bf16.gmra.mrb[0].mxu0 %v2798
      %v3066 = vpop.f32.mrb[0].mxu0
      %v3067 = vadd.f32 0.0, %v3066
      %v3068 = vpop.f32.mrb[0].mxu0
      %v3069 = vadd.f32 0.0, %v3068
      %v3070 = vpop.f32.mrb[0].mxu0
      %v3071 = vadd.f32 0.0, %v3070
      %v3072 = vpop.f32.mrb[0].mxu0
      %v3073 = vadd.f32 0.0, %v3072
      %3074 = vmatprep.mubr.bf16.mxu0 %v2801
      %3075 = vmatmul.mubr.bf16.gmra.mrb[0].mxu0 %v2800
      %v3076 = vpop.f32.mrb[0].mxu0
      %v3077 = vadd.f32 0.0, %v3076
      %v3078 = vpop.f32.mrb[0].mxu0
      %v3079 = vadd.f32 0.0, %v3078
      %v3080 = vpop.f32.mrb[0].mxu0
      %v3081 = vadd.f32 0.0, %v3080
      %v3082 = vpop.f32.mrb[0].mxu0
      %v3083 = vadd.f32 0.0, %v3082
      %3084 = vmatprep.mubr.bf16.mxu0 %v2803
      %3085 = vmatmul.mubr.bf16.gmra.mrb[0].mxu0 %v2802
      %v3086 = vpop.f32.mrb[0].mxu0
      %v3087 = vadd.f32 0.0, %v3086
      %v3088 = vpop.f32.mrb[0].mxu0
      %v3089 = vadd.f32 0.0, %v3088
      %v3090 = vpop.f32.mrb[0].mxu0
      %v3091 = vadd.f32 0.0, %v3090
      %v3092 = vpop.f32.mrb[0].mxu0
      %v3093 = vadd.f32 0.0, %v3092
      %3094 = vmatprep.mubr.bf16.mxu0 %v2805
      %3095 = vmatmul.mubr.bf16.gmra.mrb[0].mxu0 %v2804
      %v3096 = vpop.f32.mrb[0].mxu0
      %v3097 = vadd.f32 0.0, %v3096
      %v3098 = vpop.f32.mrb[0].mxu0
      %v3099 = vadd.f32 0.0, %v3098
      %v3100 = vpop.f32.mrb[0].mxu0
      %v3101 = vadd.f32 0.0, %v3100
      %v3102 = vpop.f32.mrb[0].mxu0
      %v3103 = vadd.f32 0.0, %v3102
      %3104 = vmatprep.mubr.bf16.mxu0 %v2807
      %3105 = vmatmul.mubr.bf16.gmra.mrb[0].mxu0 %v2806
      %v3106 = vpop.f32.mrb[0].mxu0
      %v3107 = vadd.f32 0.0, %v3106
      %v3108 = vpop.f32.mrb[0].mxu0
      %v3109 = vadd.f32 0.0, %v3108
      %v3110 = vpop.f32.mrb[0].mxu0
      %v3111 = vadd.f32 0.0, %v3110
      %v3112 = vpop.f32.mrb[0].mxu0
      %v3113 = vadd.f32 0.0, %v3112
      %3114 = vmatprep.mubr.bf16.mxu0 %v2809
      %3115 = vmatmul.mubr.bf16.gmra.mrb[0].mxu0 %v2808
      %v3116 = vpop.f32.mrb[0].mxu0
      %v3117 = vadd.f32 0.0, %v3116
      %v3118 = vpop.f32.mrb[0].mxu0
      %v3119 = vadd.f32 0.0, %v3118
      %v3120 = vpop.f32.mrb[0].mxu0
      %v3121 = vadd.f32 0.0, %v3120
      %v3122 = vpop.f32.mrb[0].mxu0
      %v3123 = vadd.f32 0.0, %v3122
      %3124 = vdwg.mxu0
      %3125 = vst [vmem:[#allocation5] sm:$0xff] %v3037
      %3126 = vst [vmem:[#allocation5 + $0x8] sm:$0xff] %v3039
      %3127 = vst [vmem:[#allocation5 + $0x10] sm:$0xff] %v3041
      %3128 = vst [vmem:[#allocation5 + $0x18] sm:$0xff] %v3043
      %3129 = vst [vmem:[#allocation5 + $0x20] sm:$0xff] %v3047
      %3130 = vst [vmem:[#allocation5 + $0x28] sm:$0xff] %v3049
      %3131 = vst [vmem:[#allocation5 + $0x30] sm:$0xff] %v3051
      %3132 = vst [vmem:[#allocation5 + $0x38] sm:$0xff] %v3053
      %3133 = vst [vmem:[#allocation5 + $0x40] sm:$0xff] %v3057
      %3134 = vst [vmem:[#allocation5 + $0x48] sm:$0xff] %v3059
      %3135 = vst [vmem:[#allocation5 + $0x50] sm:$0xff] %v3061
      %3136 = vst [vmem:[#allocation5 + $0x58] sm:$0xff] %v3063
      %3137 = vst [vmem:[#allocation5 + $0x60] sm:$0xff] %v3067
      %3138 = vst [vmem:[#allocation5 + $0x68] sm:$0xff] %v3069
      %3139 = vst [vmem:[#allocation5 + $0x70] sm:$0xff] %v3071
      %3140 = vst [vmem:[#allocation5 + $0x78] sm:$0xff] %v3073
      %3141 = vst [vmem:[#allocation5 + $0x80] sm:$0xff] %v3077
      %3142 = vst [vmem:[#allocation5 + $0x88] sm:$0xff] %v3079
      %3143 = vst [vmem:[#allocation5 + $0x90] sm:$0xff] %v3081
      %3144 = vst [vmem:[#allocation5 + $0x98] sm:$0xff] %v3083
      %3145 = vst [vmem:[#allocation5 + $0xa0] sm:$0xff] %v3087
      %3146 = vst [vmem:[#allocation5 + $0xa8] sm:$0xff] %v3089
      %3147 = vst [vmem:[#allocation5 + $0xb0] sm:$0xff] %v3091
      %3148 = vst [vmem:[#allocation5 + $0xb8] sm:$0xff] %v3093
      %3149 = vst [vmem:[#allocation5 + $0xc0] sm:$0xff] %v3097
      %3150 = vst [vmem:[#allocation5 + $0xc8] sm:$0xff] %v3099
      %3151 = vst [vmem:[#allocation5 + $0xd0] sm:$0xff] %v3101
      %3152 = vst [vmem:[#allocation5 + $0xd8] sm:$0xff] %v3103
      %3153 = vst [vmem:[#allocation5 + $0xe0] sm:$0xff] %v3107
      %3154 = vst [vmem:[#allocation5 + $0xe8] sm:$0xff] %v3109
      %3155 = vst [vmem:[#allocation5 + $0xf0] sm:$0xff] %v3111
      %3156 = vst [vmem:[#allocation5 + $0xf8] sm:$0xff] %v3113
      %3157 = vst [vmem:[#allocation5 + $0x100] sm:$0xff] %v3117
      %3158 = vst [vmem:[#allocation5 + $0x108] sm:$0xff] %v3119
      %3159 = vst [vmem:[#allocation5 + $0x110] sm:$0x3f] %v3121
      %3160 = vst [vmem:[#allocation5 + $0x118] sm:$0x3f] %v3123
      %v3161 = vld [vmem:[#allocation5] sm:$0xff]
      %v3162 = vld [vmem:[#allocation5 + $0x8] sm:$0xff]
      %v3163 = vld [vmem:[#allocation5 + $0x10] sm:$0xff]
      %v3164 = vld [vmem:[#allocation5 + $0x18] sm:$0xff]
      %v3165 = vld [vmem:[#allocation5 + $0x20] sm:$0xff]
      %v3166 = vld [vmem:[#allocation5 + $0x28] sm:$0xff]
      %v3167 = vld [vmem:[#allocation5 + $0x30] sm:$0xff]
      %v3168 = vld [vmem:[#allocation5 + $0x38] sm:$0xff]
      %v3169 = vld [vmem:[#allocation5 + $0x40] sm:$0xff]
      %v3170 = vld [vmem:[#allocation5 + $0x48] sm:$0xff]
      %v3171 = vld [vmem:[#allocation5 + $0x50] sm:$0xff]
      %v3172 = vld [vmem:[#allocation5 + $0x58] sm:$0xff]
      %v3173 = vld [vmem:[#allocation5 + $0x60] sm:$0xff]
      %v3174 = vld [vmem:[#allocation5 + $0x68] sm:$0xff]
      %v3175 = vld [vmem:[#allocation5 + $0x70] sm:$0xff]
      %v3176 = vld [vmem:[#allocation5 + $0x78] sm:$0xff]
      %v3177 = vld [vmem:[#allocation5 + $0x80] sm:$0xff]
      %v3178 = vld [vmem:[#allocation5 + $0x88] sm:$0xff]
      %v3179 = vld [vmem:[#allocation5 + $0x90] sm:$0xff]
      %v3180 = vld [vmem:[#allocation5 + $0x98] sm:$0xff]
      %v3181 = vld [vmem:[#allocation5 + $0xa0] sm:$0xff]
      %v3182 = vld [vmem:[#allocation5 + $0xa8] sm:$0xff]
      %v3183 = vld [vmem:[#allocation5 + $0xb0] sm:$0xff]
      %v3184 = vld [vmem:[#allocation5 + $0xb8] sm:$0xff]
      %v3185 = vld [vmem:[#allocation5 + $0xc0] sm:$0xff]
      %v3186 = vld [vmem:[#allocation5 + $0xc8] sm:$0xff]
      %v3187 = vld [vmem:[#allocation5 + $0xd0] sm:$0xff]
      %v3188 = vld [vmem:[#allocation5 + $0xd8] sm:$0xff]
      %v3189 = vld [vmem:[#allocation5 + $0xe0] sm:$0xff]
      %v3190 = vld [vmem:[#allocation5 + $0xe8] sm:$0xff]
      %v3191 = vld [vmem:[#allocation5 + $0xf0] sm:$0xff]
      %v3192 = vld [vmem:[#allocation5 + $0xf8] sm:$0xff]
      %v3193 = vld [vmem:[#allocation5 + $0x100] sm:$0xff]
      %v3194 = vld [vmem:[#allocation5 + $0x108] sm:$0xff]
      %v3195 = vld [vmem:[#allocation5 + $0x110] sm:$0x3f]
      %v3196 = vld [vmem:[#allocation5 + $0x118] sm:$0x3f]
      %v3197 = vld [vmem:[#allocation3] sm:$0xff]
      %v3198 = vld [vmem:[#allocation3 + $0x8] sm:$0xff]
      %v3199 = vld [vmem:[#allocation3 + $0x10] sm:$0xff]
      %v3200 = vld [vmem:[#allocation3 + $0x18] sm:$0xff]
      %v3201 = vld [vmem:[#allocation3 + $0x20] sm:$0xff]
      %v3202 = vld [vmem:[#allocation3 + $0x28] sm:$0xff]
      %v3203 = vld [vmem:[#allocation3 + $0x30] sm:$0xff]
      %v3204 = vld [vmem:[#allocation3 + $0x38] sm:$0xff]
      %v3205 = vld [vmem:[#allocation3 + $0x40] sm:$0xff]
      %v3206 = vld [vmem:[#allocation3 + $0x48] sm:$0xff]
      %v3207 = vld [vmem:[#allocation3 + $0x50] sm:$0xff]
      %v3208 = vld [vmem:[#allocation3 + $0x58] sm:$0xff]
      %v3209 = vld [vmem:[#allocation3 + $0x60] sm:$0xff]
      %v3210 = vld [vmem:[#allocation3 + $0x68] sm:$0xff]
      %v3211 = vld [vmem:[#allocation3 + $0x70] sm:$0xff]
      %v3212 = vld [vmem:[#allocation3 + $0x78] sm:$0xff]
      %v3213 = vld [vmem:[#allocation3 + $0x80] sm:$0xff]
      %v3214 = vld [vmem:[#allocation3 + $0x88] sm:$0xff]
      %s3215 = scalar_lea.vmem %s3, 256
      %v3216 = vld [vmem:[%s3215] sm:$0xff]
      %v3217 = vld [vmem:[%s3215 + $0x8] sm:$0xff]
      %v3218 = vld [vmem:[%s3215 + $0x10] sm:$0xff]
      %v3219 = vld [vmem:[%s3215 + $0x18] sm:$0xff]
      %v3220 = vld [vmem:[%s3215 + $0x20] sm:$0xff]
      %v3221 = vld [vmem:[%s3215 + $0x28] sm:$0xff]
      %v3222 = vld [vmem:[%s3215 + $0x30] sm:$0xff]
      %v3223 = vld [vmem:[%s3215 + $0x38] sm:$0xff]
      %v3224 = vld [vmem:[%s3215 + $0x40] sm:$0xff]
      %v3225 = vld [vmem:[%s3215 + $0x48] sm:$0xff]
      %v3226 = vld [vmem:[%s3215 + $0x50] sm:$0xff]
      %v3227 = vld [vmem:[%s3215 + $0x58] sm:$0xff]
      %v3228 = vld [vmem:[%s3215 + $0x60] sm:$0xff]
      %v3229 = vld [vmem:[%s3215 + $0x68] sm:$0xff]
      %v3230 = vld [vmem:[%s3215 + $0x70] sm:$0xff]
      %v3231 = vld [vmem:[%s3215 + $0x78] sm:$0xff]
      %v3232 = vld [vmem:[%s3215 + $0x80] sm:$0xff]
      %v3233 = vld [vmem:[%s3215 + $0x88] sm:$0xff]
      %v3234 = vld [vmem:[%s3215 + $0x90] sm:$0xff]
      %v3235 = vld [vmem:[%s3215 + $0x98] sm:$0xff]
      %v3236 = vld [vmem:[%s3215 + $0xa0] sm:$0xff]
      %v3237 = vld [vmem:[%s3215 + $0xa8] sm:$0xff]
      %v3238 = vld [vmem:[%s3215 + $0xb0] sm:$0xff]
      %v3239 = vld [vmem:[%s3215 + $0xb8] sm:$0xff]
      %v3240 = vld [vmem:[%s3215 + $0xc0] sm:$0xff]
      %v3241 = vld [vmem:[%s3215 + $0xc8] sm:$0xff]
      %v3242 = vld [vmem:[%s3215 + $0xd0] sm:$0xff]
      %v3243 = vld [vmem:[%s3215 + $0xd8] sm:$0xff]
      %v3244 = vld [vmem:[%s3215 + $0xe0] sm:$0xff]
      %v3245 = vld [vmem:[%s3215 + $0xe8] sm:$0xff]
      %v3246 = vld [vmem:[%s3215 + $0xf0] sm:$0xff]
      %v3247 = vld [vmem:[%s3215 + $0xf8] sm:$0xff]
      %v3249 = vshrl.u32 %v3197, 16
      %v3251 = vshll.u32 %v3197, 16
      %v3253 = vrot.slane %v3251, 1
      %v3254 = vor.u32 %v3249, %v3253
      %v3256 = vshll.u32 %v3199, 16
      %v3258 = vrot.slane %v3256, 1
      %v3259 = vsel %vm640, %v3254, %v3258
      %v3261 = vshrl.u32 %v3198, 16
      %v3263 = vshll.u32 %v3198, 16
      %v3265 = vrot.slane %v3263, 1
      %v3266 = vor.u32 %v3261, %v3265
      %v3268 = vshll.u32 %v3200, 16
      %v3270 = vrot.slane %v3268, 1
      %v3271 = vsel %vm640, %v3266, %v3270
      %v3272 = vshrl.u32 %v3199, 16
      %v3274 = vor.u32 %v3272, %v3258
      %v3276 = vshll.u32 %v3201, 16
      %v3278 = vrot.slane %v3276, 1
      %v3279 = vsel %vm640, %v3274, %v3278
      %v3280 = vshrl.u32 %v3200, 16
      %v3282 = vor.u32 %v3280, %v3270
      %v3284 = vshll.u32 %v3202, 16
      %v3286 = vrot.slane %v3284, 1
      %v3287 = vsel %vm640, %v3282, %v3286
      %v3288 = vshrl.u32 %v3201, 16
      %v3290 = vor.u32 %v3288, %v3278
      %v3292 = vshll.u32 %v3203, 16
      %v3294 = vrot.slane %v3292, 1
      %v3295 = vsel %vm640, %v3290, %v3294
      %v3296 = vshrl.u32 %v3202, 16
      %v3298 = vor.u32 %v3296, %v3286
      %v3300 = vshll.u32 %v3204, 16
      %v3302 = vrot.slane %v3300, 1
      %v3303 = vsel %vm640, %v3298, %v3302
      %v3304 = vshrl.u32 %v3203, 16
      %v3306 = vor.u32 %v3304, %v3294
      %v3308 = vshll.u32 %v3205, 16
      %v3310 = vrot.slane %v3308, 1
      %v3311 = vsel %vm640, %v3306, %v3310
      %v3312 = vshrl.u32 %v3204, 16
      %v3314 = vor.u32 %v3312, %v3302
      %v3316 = vshll.u32 %v3206, 16
      %v3318 = vrot.slane %v3316, 1
      %v3319 = vsel %vm640, %v3314, %v3318
      %v3320 = vshrl.u32 %v3205, 16
      %v3322 = vor.u32 %v3320, %v3310
      %v3324 = vshll.u32 %v3207, 16
      %v3326 = vrot.slane %v3324, 1
      %v3327 = vsel %vm640, %v3322, %v3326
      %v3328 = vshrl.u32 %v3206, 16
      %v3330 = vor.u32 %v3328, %v3318
      %v3332 = vshll.u32 %v3208, 16
      %v3334 = vrot.slane %v3332, 1
      %v3335 = vsel %vm640, %v3330, %v3334
      %v3336 = vshrl.u32 %v3207, 16
      %v3338 = vor.u32 %v3336, %v3326
      %v3340 = vshll.u32 %v3209, 16
      %v3342 = vrot.slane %v3340, 1
      %v3343 = vsel %vm640, %v3338, %v3342
      %v3344 = vshrl.u32 %v3208, 16
      %v3346 = vor.u32 %v3344, %v3334
      %v3348 = vshll.u32 %v3210, 16
      %v3350 = vrot.slane %v3348, 1
      %v3351 = vsel %vm640, %v3346, %v3350
      %v3352 = vshrl.u32 %v3209, 16
      %v3354 = vor.u32 %v3352, %v3342
      %v3356 = vshll.u32 %v3211, 16
      %v3358 = vrot.slane %v3356, 1
      %v3359 = vsel %vm640, %v3354, %v3358
      %v3360 = vshrl.u32 %v3210, 16
      %v3362 = vor.u32 %v3360, %v3350
      %v3364 = vshll.u32 %v3212, 16
      %v3366 = vrot.slane %v3364, 1
      %v3367 = vsel %vm640, %v3362, %v3366
      %v3368 = vshrl.u32 %v3211, 16
      %v3370 = vor.u32 %v3368, %v3358
      %v3372 = vshll.u32 %v3213, 16
      %v3374 = vrot.slane %v3372, 1
      %v3375 = vsel %vm640, %v3370, %v3374
      %v3376 = vshrl.u32 %v3212, 16
      %v3378 = vor.u32 %v3376, %v3366
      %v3380 = vshll.u32 %v3214, 16
      %v3382 = vrot.slane %v3380, 1
      %v3383 = vsel %vm640, %v3378, %v3382
      %v3384 = vshrl.u32 %v3213, 16
      %v3386 = vor.u32 %v3384, %v3374
      %v3387 = vshrl.u32 %v3214, 16
      %v3389 = vor.u32 %v3387, %v3382
      %v3440 = vunpack.c.l.b16 %v3216
      %v3441 = vunpack.c.h.b16 %v3216
      %v3442 = vunpack.c.l.b16 %v3217
      %v3443 = vunpack.c.h.b16 %v3217
      %v3444 = vunpack.c.l.b16 %v3218
      %v3445 = vunpack.c.h.b16 %v3218
      %v3446 = vunpack.c.l.b16 %v3219
      %v3447 = vunpack.c.h.b16 %v3219
      %v3448 = vunpack.c.l.b16 %v3220
      %v3449 = vunpack.c.h.b16 %v3220
      %v3450 = vunpack.c.l.b16 %v3221
      %v3451 = vunpack.c.h.b16 %v3221
      %v3452 = vunpack.c.l.b16 %v3222
      %v3453 = vunpack.c.h.b16 %v3222
      %v3454 = vunpack.c.l.b16 %v3223
      %v3455 = vunpack.c.h.b16 %v3223
      %v3456 = vunpack.c.l.b16 %v3224
      %v3457 = vunpack.c.h.b16 %v3224
      %v3458 = vunpack.c.l.b16 %v3225
      %v3459 = vunpack.c.h.b16 %v3225
      %v3460 = vunpack.c.l.b16 %v3226
      %v3461 = vunpack.c.h.b16 %v3226
      %v3462 = vunpack.c.l.b16 %v3227
      %v3463 = vunpack.c.h.b16 %v3227
      %v3464 = vunpack.c.l.b16 %v3228
      %v3465 = vunpack.c.h.b16 %v3228
      %v3466 = vunpack.c.l.b16 %v3229
      %v3467 = vunpack.c.h.b16 %v3229
      %v3468 = vunpack.c.l.b16 %v3230
      %v3469 = vunpack.c.h.b16 %v3230
      %v3470 = vunpack.c.l.b16 %v3231
      %v3471 = vunpack.c.h.b16 %v3231
      %v3472 = vunpack.c.l.b16 %v3232
      %v3473 = vunpack.c.h.b16 %v3232
      %v3474 = vunpack.c.l.b16 %v3233
      %v3475 = vunpack.c.h.b16 %v3233
      %v3476 = vunpack.c.l.b16 %v3234
      %v3477 = vunpack.c.h.b16 %v3234
      %v3478 = vunpack.c.l.b16 %v3235
      %v3479 = vunpack.c.h.b16 %v3235
      %v3480 = vunpack.c.l.b16 %v3236
      %v3481 = vunpack.c.h.b16 %v3236
      %v3482 = vunpack.c.l.b16 %v3237
      %v3483 = vunpack.c.h.b16 %v3237
      %v3484 = vunpack.c.l.b16 %v3238
      %v3485 = vunpack.c.h.b16 %v3238
      %v3486 = vunpack.c.l.b16 %v3239
      %v3487 = vunpack.c.h.b16 %v3239
      %v3488 = vunpack.c.l.b16 %v3240
      %v3489 = vunpack.c.h.b16 %v3240
      %v3490 = vunpack.c.l.b16 %v3241
      %v3491 = vunpack.c.h.b16 %v3241
      %v3492 = vunpack.c.l.b16 %v3242
      %v3493 = vunpack.c.h.b16 %v3242
      %v3494 = vunpack.c.l.b16 %v3243
      %v3495 = vunpack.c.h.b16 %v3243
      %v3496 = vunpack.c.l.b16 %v3244
      %v3497 = vunpack.c.h.b16 %v3244
      %v3498 = vunpack.c.l.b16 %v3245
      %v3499 = vunpack.c.h.b16 %v3245
      %v3500 = vunpack.c.l.b16 %v3246
      %v3501 = vunpack.c.h.b16 %v3246
      %v3502 = vunpack.c.l.b16 %v3247
      %v3503 = vunpack.c.h.b16 %v3247
      %v3504 = vpack.c.b16 %v3442, %v3440
      %v3505 = vpack.c.b16 %v3443, %v3441
      %v3506 = vpack.c.b16 %v3446, %v3444
      %v3507 = vpack.c.b16 %v3447, %v3445
      %v3508 = vpack.c.b16 %v3450, %v3448
      %v3509 = vpack.c.b16 %v3451, %v3449
      %v3510 = vpack.c.b16 %v3454, %v3452
      %v3511 = vpack.c.b16 %v3455, %v3453
      %v3512 = vpack.c.b16 %v3458, %v3456
      %v3513 = vpack.c.b16 %v3459, %v3457
      %v3514 = vpack.c.b16 %v3462, %v3460
      %v3515 = vpack.c.b16 %v3463, %v3461
      %v3516 = vpack.c.b16 %v3466, %v3464
      %v3517 = vpack.c.b16 %v3467, %v3465
      %v3518 = vpack.c.b16 %v3470, %v3468
      %v3519 = vpack.c.b16 %v3471, %v3469
      %v3520 = vpack.c.b16 %v3474, %v3472
      %v3521 = vpack.c.b16 %v3475, %v3473
      %v3522 = vpack.c.b16 %v3478, %v3476
      %v3523 = vpack.c.b16 %v3479, %v3477
      %v3524 = vpack.c.b16 %v3482, %v3480
      %v3525 = vpack.c.b16 %v3483, %v3481
      %v3526 = vpack.c.b16 %v3486, %v3484
      %v3527 = vpack.c.b16 %v3487, %v3485
      %v3528 = vpack.c.b16 %v3490, %v3488
      %v3529 = vpack.c.b16 %v3491, %v3489
      %v3530 = vpack.c.b16 %v3494, %v3492
      %v3531 = vpack.c.b16 %v3495, %v3493
      %v3532 = vpack.c.b16 %v3498, %v3496
      %v3533 = vpack.c.b16 %v3499, %v3497
      %v3534 = vpack.c.b16 %v3502, %v3500
      %v3535 = vpack.c.b16 %v3503, %v3501
      %3568 = vmatprep.subr.bf16.mxu0 %v3505
      %3569 = vmatpush1.bf16.msra.mxu0 %v3504
      %3570 = vmatprep.subr.bf16.mxu0 %v3507
      %3571 = vmatpush1.bf16.msra.mxu0 %v3506
      %3572 = vmatprep.subr.bf16.mxu0 %v3509
      %3573 = vmatpush1.bf16.msra.mxu0 %v3508
      %3574 = vmatprep.subr.bf16.mxu0 %v3511
      %3575 = vmatpush1.bf16.msra.mxu0 %v3510
      %3576 = vmatprep.subr.bf16.mxu0 %v3513
      %3577 = vmatpush1.bf16.msra.mxu0 %v3512
      %3578 = vmatprep.subr.bf16.mxu0 %v3515
      %3579 = vmatpush1.bf16.msra.mxu0 %v3514
      %3580 = vmatprep.subr.bf16.mxu0 %v3517
      %3581 = vmatpush1.bf16.msra.mxu0 %v3516
      %3582 = vmatprep.subr.bf16.mxu0 %v3519
      %3583 = vmatpush1.bf16.msra.mxu0 %v3518
      %3584 = vmatprep.subr.bf16.mxu0 %v3521
      %3585 = vmatpush1.bf16.msra.mxu0 %v3520
      %3586 = vmatprep.subr.bf16.mxu0 %v3523
      %3587 = vmatpush1.bf16.msra.mxu0 %v3522
      %3588 = vmatprep.subr.bf16.mxu0 %v3525
      %3589 = vmatpush1.bf16.msra.mxu0 %v3524
      %3590 = vmatprep.subr.bf16.mxu0 %v3527
      %3591 = vmatpush1.bf16.msra.mxu0 %v3526
      %3592 = vmatprep.subr.bf16.mxu0 %v3529
      %3593 = vmatpush1.bf16.msra.mxu0 %v3528
      %3594 = vmatprep.subr.bf16.mxu0 %v3531
      %3595 = vmatpush1.bf16.msra.mxu0 %v3530
      %3596 = vmatprep.subr.bf16.mxu0 %v3533
      %3597 = vmatpush1.bf16.msra.mxu0 %v3532
      %3598 = vmatprep.subr.bf16.mxu0 %v3535
      %3599 = vmatpush1.bf16.msra.mxu0 %v3534
      %3600 = vmatprep.mubr.bf16.mxu0 %v3271
      %3601 = vmatmul.mubr.bf16.gmra.mrb[0].mxu0 %v3259
      %v3602 = vpop.f32.mrb[0].mxu0
      %v3603 = vadd.f32 0.0, %v3602
      %v3604 = vpop.f32.mrb[0].mxu0
      %v3605 = vadd.f32 0.0, %v3604
      %v3606 = vpop.f32.mrb[0].mxu0
      %v3607 = vadd.f32 0.0, %v3606
      %v3608 = vpop.f32.mrb[0].mxu0
      %v3609 = vadd.f32 0.0, %v3608
      %3610 = vmatprep.mubr.bf16.mxu0 %v3287
      %3611 = vmatmul.mubr.bf16.gmra.mrb[0].mxu0 %v3279
      %v3612 = vpop.f32.mrb[0].mxu0
      %v3613 = vadd.f32 0.0, %v3612
      %v3614 = vpop.f32.mrb[0].mxu0
      %v3615 = vadd.f32 0.0, %v3614
      %v3616 = vpop.f32.mrb[0].mxu0
      %v3617 = vadd.f32 0.0, %v3616
      %v3618 = vpop.f32.mrb[0].mxu0
      %v3619 = vadd.f32 0.0, %v3618
      %3620 = vmatprep.mubr.bf16.mxu0 %v3303
      %3621 = vmatmul.mubr.bf16.gmra.mrb[0].mxu0 %v3295
      %v3622 = vpop.f32.mrb[0].mxu0
      %v3623 = vadd.f32 0.0, %v3622
      %v3624 = vpop.f32.mrb[0].mxu0
      %v3625 = vadd.f32 0.0, %v3624
      %v3626 = vpop.f32.mrb[0].mxu0
      %v3627 = vadd.f32 0.0, %v3626
      %v3628 = vpop.f32.mrb[0].mxu0
      %v3629 = vadd.f32 0.0, %v3628
      %3630 = vmatprep.mubr.bf16.mxu0 %v3319
      %3631 = vmatmul.mubr.bf16.gmra.mrb[0].mxu0 %v3311
      %v3632 = vpop.f32.mrb[0].mxu0
      %v3633 = vadd.f32 0.0, %v3632
      %v3634 = vpop.f32.mrb[0].mxu0
      %v3635 = vadd.f32 0.0, %v3634
      %v3636 = vpop.f32.mrb[0].mxu0
      %v3637 = vadd.f32 0.0, %v3636
      %v3638 = vpop.f32.mrb[0].mxu0
      %v3639 = vadd.f32 0.0, %v3638
      %3640 = vmatprep.mubr.bf16.mxu0 %v3335
      %3641 = vmatmul.mubr.bf16.gmra.mrb[0].mxu0 %v3327
      %v3642 = vpop.f32.mrb[0].mxu0
      %v3643 = vadd.f32 0.0, %v3642
      %v3644 = vpop.f32.mrb[0].mxu0
      %v3645 = vadd.f32 0.0, %v3644
      %v3646 = vpop.f32.mrb[0].mxu0
      %v3647 = vadd.f32 0.0, %v3646
      %v3648 = vpop.f32.mrb[0].mxu0
      %v3649 = vadd.f32 0.0, %v3648
      %3650 = vmatprep.mubr.bf16.mxu0 %v3351
      %3651 = vmatmul.mubr.bf16.gmra.mrb[0].mxu0 %v3343
      %v3652 = vpop.f32.mrb[0].mxu0
      %v3653 = vadd.f32 0.0, %v3652
      %v3654 = vpop.f32.mrb[0].mxu0
      %v3655 = vadd.f32 0.0, %v3654
      %v3656 = vpop.f32.mrb[0].mxu0
      %v3657 = vadd.f32 0.0, %v3656
      %v3658 = vpop.f32.mrb[0].mxu0
      %v3659 = vadd.f32 0.0, %v3658
      %3660 = vmatprep.mubr.bf16.mxu0 %v3367
      %3661 = vmatmul.mubr.bf16.gmra.mrb[0].mxu0 %v3359
      %v3662 = vpop.f32.mrb[0].mxu0
      %v3663 = vadd.f32 0.0, %v3662
      %v3664 = vpop.f32.mrb[0].mxu0
      %v3665 = vadd.f32 0.0, %v3664
      %v3666 = vpop.f32.mrb[0].mxu0
      %v3667 = vadd.f32 0.0, %v3666
      %v3668 = vpop.f32.mrb[0].mxu0
      %v3669 = vadd.f32 0.0, %v3668
      %3670 = vmatprep.mubr.bf16.mxu0 %v3383
      %3671 = vmatmul.mubr.bf16.gmra.mrb[0].mxu0 %v3375
      %v3672 = vpop.f32.mrb[0].mxu0
      %v3673 = vadd.f32 0.0, %v3672
      %v3674 = vpop.f32.mrb[0].mxu0
      %v3675 = vadd.f32 0.0, %v3674
      %v3676 = vpop.f32.mrb[0].mxu0
      %v3677 = vadd.f32 0.0, %v3676
      %v3678 = vpop.f32.mrb[0].mxu0
      %v3679 = vadd.f32 0.0, %v3678
      %3680 = vmatprep.mubr.bf16.mxu0 %v3389
      %3681 = vmatmul.mubr.bf16.gmra.mrb[0].mxu0 %v3386
      %v3682 = vpop.f32.mrb[0].mxu0
      %v3683 = vadd.f32 0.0, %v3682
      %v3684 = vpop.f32.mrb[0].mxu0
      %v3685 = vadd.f32 0.0, %v3684
      %v3686 = vpop.f32.mrb[0].mxu0
      %v3687 = vadd.f32 0.0, %v3686
      %v3688 = vpop.f32.mrb[0].mxu0
      %v3689 = vadd.f32 0.0, %v3688
      %3690 = vdwg.mxu0
      %v3691 = vadd.f32 %v3161, %v3603
      %v3692 = vadd.f32 %v3162, %v3605
      %v3693 = vadd.f32 %v3163, %v3607
      %v3694 = vadd.f32 %v3164, %v3609
      %v3695 = vadd.f32 %v3165, %v3613
      %v3696 = vadd.f32 %v3166, %v3615
      %v3697 = vadd.f32 %v3167, %v3617
      %v3698 = vadd.f32 %v3168, %v3619
      %v3699 = vadd.f32 %v3169, %v3623
      %v3700 = vadd.f32 %v3170, %v3625
      %v3701 = vadd.f32 %v3171, %v3627
      %v3702 = vadd.f32 %v3172, %v3629
      %v3703 = vadd.f32 %v3173, %v3633
      %v3704 = vadd.f32 %v3174, %v3635
      %v3705 = vadd.f32 %v3175, %v3637
      %v3706 = vadd.f32 %v3176, %v3639
      %v3707 = vadd.f32 %v3177, %v3643
      %v3708 = vadd.f32 %v3178, %v3645
      %v3709 = vadd.f32 %v3179, %v3647
      %v3710 = vadd.f32 %v3180, %v3649
      %v3711 = vadd.f32 %v3181, %v3653
      %v3712 = vadd.f32 %v3182, %v3655
      %v3713 = vadd.f32 %v3183, %v3657
      %v3714 = vadd.f32 %v3184, %v3659
      %v3715 = vadd.f32 %v3185, %v3663
      %v3716 = vadd.f32 %v3186, %v3665
      %v3717 = vadd.f32 %v3187, %v3667
      %v3718 = vadd.f32 %v3188, %v3669
      %v3719 = vadd.f32 %v3189, %v3673
      %v3720 = vadd.f32 %v3190, %v3675
      %v3721 = vadd.f32 %v3191, %v3677
      %v3722 = vadd.f32 %v3192, %v3679
      %v3723 = vadd.f32 %v3193, %v3683
      %v3724 = vadd.f32 %v3194, %v3685
      %v3725 = vadd.f32 %v3195, %v3687
      %v3726 = vadd.f32 %v3196, %v3689
      %3727 = vst [vmem:[#allocation5] sm:$0xff] %v3691
      %3728 = vst [vmem:[#allocation5 + $0x8] sm:$0xff] %v3692
      %3729 = vst [vmem:[#allocation5 + $0x10] sm:$0xff] %v3693
      %3730 = vst [vmem:[#allocation5 + $0x18] sm:$0xff] %v3694
      %3731 = vst [vmem:[#allocation5 + $0x20] sm:$0xff] %v3695
      %3732 = vst [vmem:[#allocation5 + $0x28] sm:$0xff] %v3696
      %3733 = vst [vmem:[#allocation5 + $0x30] sm:$0xff] %v3697
      %3734 = vst [vmem:[#allocation5 + $0x38] sm:$0xff] %v3698
      %3735 = vst [vmem:[#allocation5 + $0x40] sm:$0xff] %v3699
      %3736 = vst [vmem:[#allocation5 + $0x48] sm:$0xff] %v3700
      %3737 = vst [vmem:[#allocation5 + $0x50] sm:$0xff] %v3701
      %3738 = vst [vmem:[#allocation5 + $0x58] sm:$0xff] %v3702
      %3739 = vst [vmem:[#allocation5 + $0x60] sm:$0xff] %v3703
      %3740 = vst [vmem:[#allocation5 + $0x68] sm:$0xff] %v3704
      %3741 = vst [vmem:[#allocation5 + $0x70] sm:$0xff] %v3705
      %3742 = vst [vmem:[#allocation5 + $0x78] sm:$0xff] %v3706
      %3743 = vst [vmem:[#allocation5 + $0x80] sm:$0xff] %v3707
      %3744 = vst [vmem:[#allocation5 + $0x88] sm:$0xff] %v3708
      %3745 = vst [vmem:[#allocation5 + $0x90] sm:$0xff] %v3709
      %3746 = vst [vmem:[#allocation5 + $0x98] sm:$0xff] %v3710
      %3747 = vst [vmem:[#allocation5 + $0xa0] sm:$0xff] %v3711
      %3748 = vst [vmem:[#allocation5 + $0xa8] sm:$0xff] %v3712
      %3749 = vst [vmem:[#allocation5 + $0xb0] sm:$0xff] %v3713
      %3750 = vst [vmem:[#allocation5 + $0xb8] sm:$0xff] %v3714
      %3751 = vst [vmem:[#allocation5 + $0xc0] sm:$0xff] %v3715
      %3752 = vst [vmem:[#allocation5 + $0xc8] sm:$0xff] %v3716
      %3753 = vst [vmem:[#allocation5 + $0xd0] sm:$0xff] %v3717
      %3754 = vst [vmem:[#allocation5 + $0xd8] sm:$0xff] %v3718
      %3755 = vst [vmem:[#allocation5 + $0xe0] sm:$0xff] %v3719
      %3756 = vst [vmem:[#allocation5 + $0xe8] sm:$0xff] %v3720
      %3757 = vst [vmem:[#allocation5 + $0xf0] sm:$0xff] %v3721
      %3758 = vst [vmem:[#allocation5 + $0xf8] sm:$0xff] %v3722
      %3759 = vst [vmem:[#allocation5 + $0x100] sm:$0xff] %v3723
      %3760 = vst [vmem:[#allocation5 + $0x108] sm:$0xff] %v3724
      %3761 = vst [vmem:[#allocation5 + $0x110] sm:$0x3f] %v3725
      %3762 = vst [vmem:[#allocation5 + $0x118] sm:$0x3f] %v3726
      %v3763 = vld [vmem:[#allocation5] sm:$0xff]
      %v3764 = vld [vmem:[#allocation5 + $0x8] sm:$0xff]
      %v3765 = vld [vmem:[#allocation5 + $0x10] sm:$0xff]
      %v3766 = vld [vmem:[#allocation5 + $0x18] sm:$0xff]
      %v3767 = vld [vmem:[#allocation5 + $0x20] sm:$0xff]
      %v3768 = vld [vmem:[#allocation5 + $0x28] sm:$0xff]
      %v3769 = vld [vmem:[#allocation5 + $0x30] sm:$0xff]
      %v3770 = vld [vmem:[#allocation5 + $0x38] sm:$0xff]
      %v3771 = vld [vmem:[#allocation5 + $0x40] sm:$0xff]
      %v3772 = vld [vmem:[#allocation5 + $0x48] sm:$0xff]
      %v3773 = vld [vmem:[#allocation5 + $0x50] sm:$0xff]
      %v3774 = vld [vmem:[#allocation5 + $0x58] sm:$0xff]
      %v3775 = vld [vmem:[#allocation5 + $0x60] sm:$0xff]
      %v3776 = vld [vmem:[#allocation5 + $0x68] sm:$0xff]
      %v3777 = vld [vmem:[#allocation5 + $0x70] sm:$0xff]
      %v3778 = vld [vmem:[#allocation5 + $0x78] sm:$0xff]
      %v3779 = vld [vmem:[#allocation5 + $0x80] sm:$0xff]
      %v3780 = vld [vmem:[#allocation5 + $0x88] sm:$0xff]
      %v3781 = vld [vmem:[#allocation5 + $0x90] sm:$0xff]
      %v3782 = vld [vmem:[#allocation5 + $0x98] sm:$0xff]
      %v3783 = vld [vmem:[#allocation5 + $0xa0] sm:$0xff]
      %v3784 = vld [vmem:[#allocation5 + $0xa8] sm:$0xff]
      %v3785 = vld [vmem:[#allocation5 + $0xb0] sm:$0xff]
      %v3786 = vld [vmem:[#allocation5 + $0xb8] sm:$0xff]
      %v3787 = vld [vmem:[#allocation5 + $0xc0] sm:$0xff]
      %v3788 = vld [vmem:[#allocation5 + $0xc8] sm:$0xff]
      %v3789 = vld [vmem:[#allocation5 + $0xd0] sm:$0xff]
      %v3790 = vld [vmem:[#allocation5 + $0xd8] sm:$0xff]
      %v3791 = vld [vmem:[#allocation5 + $0xe0] sm:$0xff]
      %v3792 = vld [vmem:[#allocation5 + $0xe8] sm:$0xff]
      %v3793 = vld [vmem:[#allocation5 + $0xf0] sm:$0xff]
      %v3794 = vld [vmem:[#allocation5 + $0xf8] sm:$0xff]
      %v3795 = vld [vmem:[#allocation5 + $0x100] sm:$0xff]
      %v3796 = vld [vmem:[#allocation5 + $0x108] sm:$0xff]
      %v3797 = vld [vmem:[#allocation5 + $0x110] sm:$0x3f]
      %v3798 = vld [vmem:[#allocation5 + $0x118] sm:$0x3f]
      %v3799 = vld [vmem:[#allocation3] sm:$0xfe]
      %v3800 = vld [vmem:[#allocation3 + $0x8] sm:$0xfe]
      %v3801 = vld [vmem:[#allocation3 + $0x10] sm:$0xff]
      %v3802 = vld [vmem:[#allocation3 + $0x18] sm:$0xff]
      %v3803 = vld [vmem:[#allocation3 + $0x20] sm:$0xff]
      %v3804 = vld [vmem:[#allocation3 + $0x28] sm:$0xff]
      %v3805 = vld [vmem:[#allocation3 + $0x30] sm:$0xff]
      %v3806 = vld [vmem:[#allocation3 + $0x38] sm:$0xff]
      %v3807 = vld [vmem:[#allocation3 + $0x40] sm:$0xff]
      %v3808 = vld [vmem:[#allocation3 + $0x48] sm:$0xff]
      %v3809 = vld [vmem:[#allocation3 + $0x50] sm:$0xff]
      %v3810 = vld [vmem:[#allocation3 + $0x58] sm:$0xff]
      %v3811 = vld [vmem:[#allocation3 + $0x60] sm:$0xff]
      %v3812 = vld [vmem:[#allocation3 + $0x68] sm:$0xff]
      %v3813 = vld [vmem:[#allocation3 + $0x70] sm:$0xff]
      %v3814 = vld [vmem:[#allocation3 + $0x78] sm:$0xff]
      %v3815 = vld [vmem:[#allocation3 + $0x80] sm:$0xff]
      %v3816 = vld [vmem:[#allocation3 + $0x88] sm:$0xff]
      %s3817 = scalar_lea.vmem %s3, 512
      %v3818 = vld [vmem:[%s3817] sm:$0xff]
      %v3819 = vld [vmem:[%s3817 + $0x8] sm:$0xff]
      %v3820 = vld [vmem:[%s3817 + $0x10] sm:$0xff]
      %v3821 = vld [vmem:[%s3817 + $0x18] sm:$0xff]
      %v3822 = vld [vmem:[%s3817 + $0x20] sm:$0xff]
      %v3823 = vld [vmem:[%s3817 + $0x28] sm:$0xff]
      %v3824 = vld [vmem:[%s3817 + $0x30] sm:$0xff]
      %v3825 = vld [vmem:[%s3817 + $0x38] sm:$0xff]
      %v3826 = vld [vmem:[%s3817 + $0x40] sm:$0xff]
      %v3827 = vld [vmem:[%s3817 + $0x48] sm:$0xff]
      %v3828 = vld [vmem:[%s3817 + $0x50] sm:$0xff]
      %v3829 = vld [vmem:[%s3817 + $0x58] sm:$0xff]
      %v3830 = vld [vmem:[%s3817 + $0x60] sm:$0xff]
      %v3831 = vld [vmem:[%s3817 + $0x68] sm:$0xff]
      %v3832 = vld [vmem:[%s3817 + $0x70] sm:$0xff]
      %v3833 = vld [vmem:[%s3817 + $0x78] sm:$0xff]
      %v3834 = vld [vmem:[%s3817 + $0x80] sm:$0xff]
      %v3835 = vld [vmem:[%s3817 + $0x88] sm:$0xff]
      %v3836 = vld [vmem:[%s3817 + $0x90] sm:$0xff]
      %v3837 = vld [vmem:[%s3817 + $0x98] sm:$0xff]
      %v3838 = vld [vmem:[%s3817 + $0xa0] sm:$0xff]
      %v3839 = vld [vmem:[%s3817 + $0xa8] sm:$0xff]
      %v3840 = vld [vmem:[%s3817 + $0xb0] sm:$0xff]
      %v3841 = vld [vmem:[%s3817 + $0xb8] sm:$0xff]
      %v3842 = vld [vmem:[%s3817 + $0xc0] sm:$0xff]
      %v3843 = vld [vmem:[%s3817 + $0xc8] sm:$0xff]
      %v3844 = vld [vmem:[%s3817 + $0xd0] sm:$0xff]
      %v3845 = vld [vmem:[%s3817 + $0xd8] sm:$0xff]
      %v3846 = vld [vmem:[%s3817 + $0xe0] sm:$0xff]
      %v3847 = vld [vmem:[%s3817 + $0xe8] sm:$0xff]
      %v3848 = vld [vmem:[%s3817 + $0xf0] sm:$0xff]
      %v3849 = vld [vmem:[%s3817 + $0xf8] sm:$0xff]
      %v3868 = vrot.slane %v3799, 1
      %v3869 = vrot.slane %v3801, 1
      %v3870 = vsel %vm624, %v3868, %v3869
      %v3871 = vrot.slane %v3800, 1
      %v3872 = vrot.slane %v3802, 1
      %v3873 = vsel %vm624, %v3871, %v3872
      %v3874 = vrot.slane %v3803, 1
      %v3875 = vsel %vm624, %v3869, %v3874
      %v3876 = vrot.slane %v3804, 1
      %v3877 = vsel %vm624, %v3872, %v3876
      %v3878 = vrot.slane %v3805, 1
      %v3879 = vsel %vm624, %v3874, %v3878
      %v3880 = vrot.slane %v3806, 1
      %v3881 = vsel %vm624, %v3876, %v3880
      %v3882 = vrot.slane %v3807, 1
      %v3883 = vsel %vm624, %v3878, %v3882
      %v3884 = vrot.slane %v3808, 1
      %v3885 = vsel %vm624, %v3880, %v3884
      %v3886 = vrot.slane %v3809, 1
      %v3887 = vsel %vm624, %v3882, %v3886
      %v3888 = vrot.slane %v3810, 1
      %v3889 = vsel %vm624, %v3884, %v3888
      %v3890 = vrot.slane %v3811, 1
      %v3891 = vsel %vm624, %v3886, %v3890
      %v3892 = vrot.slane %v3812, 1
      %v3893 = vsel %vm624, %v3888, %v3892
      %v3894 = vrot.slane %v3813, 1
      %v3895 = vsel %vm624, %v3890, %v3894
      %v3896 = vrot.slane %v3814, 1
      %v3897 = vsel %vm624, %v3892, %v3896
      %v3898 = vrot.slane %v3815, 1
      %v3899 = vsel %vm624, %v3894, %v3898
      %v3900 = vrot.slane %v3816, 1
      %v3901 = vsel %vm624, %v3896, %v3900
      %v3952 = vunpack.c.l.b16 %v3818
      %v3953 = vunpack.c.h.b16 %v3818
      %v3954 = vunpack.c.l.b16 %v3819
      %v3955 = vunpack.c.h.b16 %v3819
      %v3956 = vunpack.c.l.b16 %v3820
      %v3957 = vunpack.c.h.b16 %v3820
      %v3958 = vunpack.c.l.b16 %v3821
      %v3959 = vunpack.c.h.b16 %v3821
      %v3960 = vunpack.c.l.b16 %v3822
      %v3961 = vunpack.c.h.b16 %v3822
      %v3962 = vunpack.c.l.b16 %v3823
      %v3963 = vunpack.c.h.b16 %v3823
      %v3964 = vunpack.c.l.b16 %v3824
      %v3965 = vunpack.c.h.b16 %v3824
      %v3966 = vunpack.c.l.b16 %v3825
      %v3967 = vunpack.c.h.b16 %v3825
      %v3968 = vunpack.c.l.b16 %v3826
      %v3969 = vunpack.c.h.b16 %v3826
      %v3970 = vunpack.c.l.b16 %v3827
      %v3971 = vunpack.c.h.b16 %v3827
      %v3972 = vunpack.c.l.b16 %v3828
      %v3973 = vunpack.c.h.b16 %v3828
      %v3974 = vunpack.c.l.b16 %v3829
      %v3975 = vunpack.c.h.b16 %v3829
      %v3976 = vunpack.c.l.b16 %v3830
      %v3977 = vunpack.c.h.b16 %v3830
      %v3978 = vunpack.c.l.b16 %v3831
      %v3979 = vunpack.c.h.b16 %v3831
      %v3980 = vunpack.c.l.b16 %v3832
      %v3981 = vunpack.c.h.b16 %v3832
      %v3982 = vunpack.c.l.b16 %v3833
      %v3983 = vunpack.c.h.b16 %v3833
      %v3984 = vunpack.c.l.b16 %v3834
      %v3985 = vunpack.c.h.b16 %v3834
      %v3986 = vunpack.c.l.b16 %v3835
      %v3987 = vunpack.c.h.b16 %v3835
      %v3988 = vunpack.c.l.b16 %v3836
      %v3989 = vunpack.c.h.b16 %v3836
      %v3990 = vunpack.c.l.b16 %v3837
      %v3991 = vunpack.c.h.b16 %v3837
      %v3992 = vunpack.c.l.b16 %v3838
      %v3993 = vunpack.c.h.b16 %v3838
      %v3994 = vunpack.c.l.b16 %v3839
      %v3995 = vunpack.c.h.b16 %v3839
      %v3996 = vunpack.c.l.b16 %v3840
      %v3997 = vunpack.c.h.b16 %v3840
      %v3998 = vunpack.c.l.b16 %v3841
      %v3999 = vunpack.c.h.b16 %v3841
      %v4000 = vunpack.c.l.b16 %v3842
      %v4001 = vunpack.c.h.b16 %v3842
      %v4002 = vunpack.c.l.b16 %v3843
      %v4003 = vunpack.c.h.b16 %v3843
      %v4004 = vunpack.c.l.b16 %v3844
      %v4005 = vunpack.c.h.b16 %v3844
      %v4006 = vunpack.c.l.b16 %v3845
      %v4007 = vunpack.c.h.b16 %v3845
      %v4008 = vunpack.c.l.b16 %v3846
      %v4009 = vunpack.c.h.b16 %v3846
      %v4010 = vunpack.c.l.b16 %v3847
      %v4011 = vunpack.c.h.b16 %v3847
      %v4012 = vunpack.c.l.b16 %v3848
      %v4013 = vunpack.c.h.b16 %v3848
      %v4014 = vunpack.c.l.b16 %v3849
      %v4015 = vunpack.c.h.b16 %v3849
      %v4016 = vpack.c.b16 %v3954, %v3952
      %v4017 = vpack.c.b16 %v3955, %v3953
      %v4018 = vpack.c.b16 %v3958, %v3956
      %v4019 = vpack.c.b16 %v3959, %v3957
      %v4020 = vpack.c.b16 %v3962, %v3960
      %v4021 = vpack.c.b16 %v3963, %v3961
      %v4022 = vpack.c.b16 %v3966, %v3964
      %v4023 = vpack.c.b16 %v3967, %v3965
      %v4024 = vpack.c.b16 %v3970, %v3968
      %v4025 = vpack.c.b16 %v3971, %v3969
      %v4026 = vpack.c.b16 %v3974, %v3972
      %v4027 = vpack.c.b16 %v3975, %v3973
      %v4028 = vpack.c.b16 %v3978, %v3976
      %v4029 = vpack.c.b16 %v3979, %v3977
      %v4030 = vpack.c.b16 %v3982, %v3980
      %v4031 = vpack.c.b16 %v3983, %v3981
      %v4032 = vpack.c.b16 %v3986, %v3984
      %v4033 = vpack.c.b16 %v3987, %v3985
      %v4034 = vpack.c.b16 %v3990, %v3988
      %v4035 = vpack.c.b16 %v3991, %v3989
      %v4036 = vpack.c.b16 %v3994, %v3992
      %v4037 = vpack.c.b16 %v3995, %v3993
      %v4038 = vpack.c.b16 %v3998, %v3996
      %v4039 = vpack.c.b16 %v3999, %v3997
      %v4040 = vpack.c.b16 %v4002, %v4000
      %v4041 = vpack.c.b16 %v4003, %v4001
      %v4042 = vpack.c.b16 %v4006, %v4004
      %v4043 = vpack.c.b16 %v4007, %v4005
      %v4044 = vpack.c.b16 %v4010, %v4008
      %v4045 = vpack.c.b16 %v4011, %v4009
      %v4046 = vpack.c.b16 %v4014, %v4012
      %v4047 = vpack.c.b16 %v4015, %v4013
      %4080 = vmatprep.subr.bf16.mxu0 %v4017
      %4081 = vmatpush1.bf16.msra.mxu0 %v4016
      %4082 = vmatprep.subr.bf16.mxu0 %v4019
      %4083 = vmatpush1.bf16.msra.mxu0 %v4018
      %4084 = vmatprep.subr.bf16.mxu0 %v4021
      %4085 = vmatpush1.bf16.msra.mxu0 %v4020
      %4086 = vmatprep.subr.bf16.mxu0 %v4023
      %4087 = vmatpush1.bf16.msra.mxu0 %v4022
      %4088 = vmatprep.subr.bf16.mxu0 %v4025
      %4089 = vmatpush1.bf16.msra.mxu0 %v4024
      %4090 = vmatprep.subr.bf16.mxu0 %v4027
      %4091 = vmatpush1.bf16.msra.mxu0 %v4026
      %4092 = vmatprep.subr.bf16.mxu0 %v4029
      %4093 = vmatpush1.bf16.msra.mxu0 %v4028
      %4094 = vmatprep.subr.bf16.mxu0 %v4031
      %4095 = vmatpush1.bf16.msra.mxu0 %v4030
      %4096 = vmatprep.subr.bf16.mxu0 %v4033
      %4097 = vmatpush1.bf16.msra.mxu0 %v4032
      %4098 = vmatprep.subr.bf16.mxu0 %v4035
      %4099 = vmatpush1.bf16.msra.mxu0 %v4034
      %4100 = vmatprep.subr.bf16.mxu0 %v4037
      %4101 = vmatpush1.bf16.msra.mxu0 %v4036
      %4102 = vmatprep.subr.bf16.mxu0 %v4039
      %4103 = vmatpush1.bf16.msra.mxu0 %v4038
      %4104 = vmatprep.subr.bf16.mxu0 %v4041
      %4105 = vmatpush1.bf16.msra.mxu0 %v4040
      %4106 = vmatprep.subr.bf16.mxu0 %v4043
      %4107 = vmatpush1.bf16.msra.mxu0 %v4042
      %4108 = vmatprep.subr.bf16.mxu0 %v4045
      %4109 = vmatpush1.bf16.msra.mxu0 %v4044
      %4110 = vmatprep.subr.bf16.mxu0 %v4047
      %4111 = vmatpush1.bf16.msra.mxu0 %v4046
      %4112 = vmatprep.mubr.bf16.mxu0 %v3873
      %4113 = vmatmul.mubr.bf16.gmra.mrb[0].mxu0 %v3870
      %v4114 = vpop.f32.mrb[0].mxu0
      %v4115 = vadd.f32 0.0, %v4114
      %v4116 = vpop.f32.mrb[0].mxu0
      %v4117 = vadd.f32 0.0, %v4116
      %v4118 = vpop.f32.mrb[0].mxu0
      %v4119 = vadd.f32 0.0, %v4118
      %v4120 = vpop.f32.mrb[0].mxu0
      %v4121 = vadd.f32 0.0, %v4120
      %4122 = vmatprep.mubr.bf16.mxu0 %v3877
      %4123 = vmatmul.mubr.bf16.gmra.mrb[0].mxu0 %v3875
      %v4124 = vpop.f32.mrb[0].mxu0
      %v4125 = vadd.f32 0.0, %v4124
      %v4126 = vpop.f32.mrb[0].mxu0
      %v4127 = vadd.f32 0.0, %v4126
      %v4128 = vpop.f32.mrb[0].mxu0
      %v4129 = vadd.f32 0.0, %v4128
      %v4130 = vpop.f32.mrb[0].mxu0
      %v4131 = vadd.f32 0.0, %v4130
      %4132 = vmatprep.mubr.bf16.mxu0 %v3881
      %4133 = vmatmul.mubr.bf16.gmra.mrb[0].mxu0 %v3879
      %v4134 = vpop.f32.mrb[0].mxu0
      %v4135 = vadd.f32 0.0, %v4134
      %v4136 = vpop.f32.mrb[0].mxu0
      %v4137 = vadd.f32 0.0, %v4136
      %v4138 = vpop.f32.mrb[0].mxu0
      %v4139 = vadd.f32 0.0, %v4138
      %v4140 = vpop.f32.mrb[0].mxu0
      %v4141 = vadd.f32 0.0, %v4140
      %4142 = vmatprep.mubr.bf16.mxu0 %v3885
      %4143 = vmatmul.mubr.bf16.gmra.mrb[0].mxu0 %v3883
      %v4144 = vpop.f32.mrb[0].mxu0
      %v4145 = vadd.f32 0.0, %v4144
      %v4146 = vpop.f32.mrb[0].mxu0
      %v4147 = vadd.f32 0.0, %v4146
      %v4148 = vpop.f32.mrb[0].mxu0
      %v4149 = vadd.f32 0.0, %v4148
      %v4150 = vpop.f32.mrb[0].mxu0
      %v4151 = vadd.f32 0.0, %v4150
      %4152 = vmatprep.mubr.bf16.mxu0 %v3889
      %4153 = vmatmul.mubr.bf16.gmra.mrb[0].mxu0 %v3887
      %v4154 = vpop.f32.mrb[0].mxu0
      %v4155 = vadd.f32 0.0, %v4154
      %v4156 = vpop.f32.mrb[0].mxu0
      %v4157 = vadd.f32 0.0, %v4156
      %v4158 = vpop.f32.mrb[0].mxu0
      %v4159 = vadd.f32 0.0, %v4158
      %v4160 = vpop.f32.mrb[0].mxu0
      %v4161 = vadd.f32 0.0, %v4160
      %4162 = vmatprep.mubr.bf16.mxu0 %v3893
      %4163 = vmatmul.mubr.bf16.gmra.mrb[0].mxu0 %v3891
      %v4164 = vpop.f32.mrb[0].mxu0
      %v4165 = vadd.f32 0.0, %v4164
      %v4166 = vpop.f32.mrb[0].mxu0
      %v4167 = vadd.f32 0.0, %v4166
      %v4168 = vpop.f32.mrb[0].mxu0
      %v4169 = vadd.f32 0.0, %v4168
      %v4170 = vpop.f32.mrb[0].mxu0
      %v4171 = vadd.f32 0.0, %v4170
      %4172 = vmatprep.mubr.bf16.mxu0 %v3897
      %4173 = vmatmul.mubr.bf16.gmra.mrb[0].mxu0 %v3895
      %v4174 = vpop.f32.mrb[0].mxu0
      %v4175 = vadd.f32 0.0, %v4174
      %v4176 = vpop.f32.mrb[0].mxu0
      %v4177 = vadd.f32 0.0, %v4176
      %v4178 = vpop.f32.mrb[0].mxu0
      %v4179 = vadd.f32 0.0, %v4178
      %v4180 = vpop.f32.mrb[0].mxu0
      %v4181 = vadd.f32 0.0, %v4180
      %4182 = vmatprep.mubr.bf16.mxu0 %v3901
      %4183 = vmatmul.mubr.bf16.gmra.mrb[0].mxu0 %v3899
      %v4184 = vpop.f32.mrb[0].mxu0
      %v4185 = vadd.f32 0.0, %v4184
      %v4186 = vpop.f32.mrb[0].mxu0
      %v4187 = vadd.f32 0.0, %v4186
      %v4188 = vpop.f32.mrb[0].mxu0
      %v4189 = vadd.f32 0.0, %v4188
      %v4190 = vpop.f32.mrb[0].mxu0
      %v4191 = vadd.f32 0.0, %v4190
      %4192 = vmatprep.mubr.bf16.mxu0 %v3900
      %4193 = vmatmul.mubr.bf16.gmra.mrb[0].mxu0 %v3898
      %v4194 = vpop.f32.mrb[0].mxu0
      %v4195 = vadd.f32 0.0, %v4194
      %v4196 = vpop.f32.mrb[0].mxu0
      %v4197 = vadd.f32 0.0, %v4196
      %v4198 = vpop.f32.mrb[0].mxu0
      %v4199 = vadd.f32 0.0, %v4198
      %v4200 = vpop.f32.mrb[0].mxu0
      %v4201 = vadd.f32 0.0, %v4200
      %4202 = vdwg.mxu0
      %v4203 = vadd.f32 %v3763, %v4115
      %v4204 = vadd.f32 %v3764, %v4117
      %v4205 = vadd.f32 %v3765, %v4119
      %v4206 = vadd.f32 %v3766, %v4121
      %v4207 = vadd.f32 %v3767, %v4125
      %v4208 = vadd.f32 %v3768, %v4127
      %v4209 = vadd.f32 %v3769, %v4129
      %v4210 = vadd.f32 %v3770, %v4131
      %v4211 = vadd.f32 %v3771, %v4135
      %v4212 = vadd.f32 %v3772, %v4137
      %v4213 = vadd.f32 %v3773, %v4139
      %v4214 = vadd.f32 %v3774, %v4141
      %v4215 = vadd.f32 %v3775, %v4145
      %v4216 = vadd.f32 %v3776, %v4147
      %v4217 = vadd.f32 %v3777, %v4149
      %v4218 = vadd.f32 %v3778, %v4151
      %v4219 = vadd.f32 %v3779, %v4155
      %v4220 = vadd.f32 %v3780, %v4157
      %v4221 = vadd.f32 %v3781, %v4159
      %v4222 = vadd.f32 %v3782, %v4161
      %v4223 = vadd.f32 %v3783, %v4165
      %v4224 = vadd.f32 %v3784, %v4167
      %v4225 = vadd.f32 %v3785, %v4169
      %v4226 = vadd.f32 %v3786, %v4171
      %v4227 = vadd.f32 %v3787, %v4175
      %v4228 = vadd.f32 %v3788, %v4177
      %v4229 = vadd.f32 %v3789, %v4179
      %v4230 = vadd.f32 %v3790, %v4181
      %v4231 = vadd.f32 %v3791, %v4185
      %v4232 = vadd.f32 %v3792, %v4187
      %v4233 = vadd.f32 %v3793, %v4189
      %v4234 = vadd.f32 %v3794, %v4191
      %v4235 = vadd.f32 %v3795, %v4195
      %v4236 = vadd.f32 %v3796, %v4197
      %v4237 = vadd.f32 %v3797, %v4199
      %v4238 = vadd.f32 %v3798, %v4201
      %4239 = vst [vmem:[#allocation5] sm:$0xff] %v4203
      %4240 = vst [vmem:[#allocation5 + $0x8] sm:$0xff] %v4204
      %4241 = vst [vmem:[#allocation5 + $0x10] sm:$0xff] %v4205
      %4242 = vst [vmem:[#allocation5 + $0x18] sm:$0xff] %v4206
      %4243 = vst [vmem:[#allocation5 + $0x20] sm:$0xff] %v4207
      %4244 = vst [vmem:[#allocation5 + $0x28] sm:$0xff] %v4208
      %4245 = vst [vmem:[#allocation5 + $0x30] sm:$0xff] %v4209
      %4246 = vst [vmem:[#allocation5 + $0x38] sm:$0xff] %v4210
      %4247 = vst [vmem:[#allocation5 + $0x40] sm:$0xff] %v4211
      %4248 = vst [vmem:[#allocation5 + $0x48] sm:$0xff] %v4212
      %4249 = vst [vmem:[#allocation5 + $0x50] sm:$0xff] %v4213
      %4250 = vst [vmem:[#allocation5 + $0x58] sm:$0xff] %v4214
      %4251 = vst [vmem:[#allocation5 + $0x60] sm:$0xff] %v4215
      %4252 = vst [vmem:[#allocation5 + $0x68] sm:$0xff] %v4216
      %4253 = vst [vmem:[#allocation5 + $0x70] sm:$0xff] %v4217
      %4254 = vst [vmem:[#allocation5 + $0x78] sm:$0xff] %v4218
      %4255 = vst [vmem:[#allocation5 + $0x80] sm:$0xff] %v4219
      %4256 = vst [vmem:[#allocation5 + $0x88] sm:$0xff] %v4220
      %4257 = vst [vmem:[#allocation5 + $0x90] sm:$0xff] %v4221
      %4258 = vst [vmem:[#allocation5 + $0x98] sm:$0xff] %v4222
      %4259 = vst [vmem:[#allocation5 + $0xa0] sm:$0xff] %v4223
      %4260 = vst [vmem:[#allocation5 + $0xa8] sm:$0xff] %v4224
      %4261 = vst [vmem:[#allocation5 + $0xb0] sm:$0xff] %v4225
      %4262 = vst [vmem:[#allocation5 + $0xb8] sm:$0xff] %v4226
      %4263 = vst [vmem:[#allocation5 + $0xc0] sm:$0xff] %v4227
      %4264 = vst [vmem:[#allocation5 + $0xc8] sm:$0xff] %v4228
      %4265 = vst [vmem:[#allocation5 + $0xd0] sm:$0xff] %v4229
      %4266 = vst [vmem:[#allocation5 + $0xd8] sm:$0xff] %v4230
      %4267 = vst [vmem:[#allocation5 + $0xe0] sm:$0xff] %v4231
      %4268 = vst [vmem:[#allocation5 + $0xe8] sm:$0xff] %v4232
      %4269 = vst [vmem:[#allocation5 + $0xf0] sm:$0xff] %v4233
      %4270 = vst [vmem:[#allocation5 + $0xf8] sm:$0xff] %v4234
      %4271 = vst [vmem:[#allocation5 + $0x100] sm:$0xff] %v4235
      %4272 = vst [vmem:[#allocation5 + $0x108] sm:$0xff] %v4236
      %4273 = vst [vmem:[#allocation5 + $0x110] sm:$0x3f] %v4237
      %4274 = vst [vmem:[#allocation5 + $0x118] sm:$0x3f] %v4238
      %v4275 = vld [vmem:[#allocation5] sm:$0xff]
      %v4276 = vld [vmem:[#allocation5 + $0x8] sm:$0xff]
      %v4277 = vld [vmem:[#allocation5 + $0x10] sm:$0xff]
      %v4278 = vld [vmem:[#allocation5 + $0x18] sm:$0xff]
      %v4280 = vlaneseq
      %v4281 = vshrl.u32 %v4280, 7
      %v4282 = vsub.s32 0, %v4281
      %v4283 = vrot.slane %v235, %v4282
      %v4284 = vlaneseq
      %v4285 = vshrl.u32 %v4284, 7
      %v4286 = vsub.s32 1, %v4285
      %v4287 = vrot.slane %v235, %v4286
      %v4290 = vadd.f32 %v4275, %v4283
      %v4291 = vadd.f32 %v4276, %v4287
      %v4292 = vadd.f32 %v4277, %v4283
      %v4293 = vadd.f32 %v4278, %v4287
      %4294 = vst [vmem:[%s231] sm:$0xff] %v4290
      %4295 = vst [vmem:[%s231 + $0x8] sm:$0xff] %v4291
      %4296 = vst [vmem:[%s231 + $0x10] sm:$0xff] %v4292
      %4297 = vst [vmem:[%s231 + $0x18] sm:$0xff] %v4293
      %v4298 = vld [vmem:[#allocation5 + $0x20] sm:$0xfc]
      %v4299 = vld [vmem:[#allocation5 + $0x28] sm:$0xfc]
      %v4300 = vld [vmem:[#allocation5 + $0x30] sm:$0xff]
      %v4301 = vld [vmem:[#allocation5 + $0x38] sm:$0xff]
      %v4302 = vld [vmem:[#allocation5 + $0x40] sm:$0x3]
      %v4303 = vld [vmem:[#allocation5 + $0x48] sm:$0x3]
      %v4304 = vadd.f32 %v4298, %v4283
      %v4305 = vadd.f32 %v4299, %v4287
      %v4306 = vadd.f32 %v4300, %v4283
      %v4307 = vadd.f32 %v4301, %v4287
      %v4308 = vadd.f32 %v4302, %v4283
      %v4309 = vadd.f32 %v4303, %v4287
      %vm4316 = vcmask 1045504
      %v4317 = vrot.slane %v4304, 2
      %v4318 = vrot.slane %v4306, 2
      %v4319 = vsel %vm4316, %v4317, %v4318
      %v4320 = vrot.slane %v4305, 2
      %v4321 = vrot.slane %v4307, 2
      %v4322 = vsel %vm4316, %v4320, %v4321
      %v4323 = vrot.slane %v4308, 2
      %v4324 = vsel %vm4316, %v4318, %v4323
      %v4325 = vrot.slane %v4309, 2
      %v4326 = vsel %vm4316, %v4321, %v4325
      %s4331 = scalar_lea.vmem %s231, 32
      %4332 = vst [vmem:[%s4331] sm:$0xff] %v4319
      %4333 = vst [vmem:[%s4331 + $0x8] sm:$0xff] %v4322
      %4334 = vst [vmem:[%s4331 + $0x10] sm:$0xff] %v4324
      %4335 = vst [vmem:[%s4331 + $0x18] sm:$0xff] %v4326
      %v4336 = vld [vmem:[#allocation5 + $0x40] sm:$0xf0]
      %v4337 = vld [vmem:[#allocation5 + $0x48] sm:$0xf0]
      %v4338 = vld [vmem:[#allocation5 + $0x50] sm:$0xff]
      %v4339 = vld [vmem:[#allocation5 + $0x58] sm:$0xff]
      %v4340 = vld [vmem:[#allocation5 + $0x60] sm:$0xf]
      %v4341 = vld [vmem:[#allocation5 + $0x68] sm:$0xf]
      %v4342 = vadd.f32 %v4336, %v4283
      %v4343 = vadd.f32 %v4337, %v4287
      %v4344 = vadd.f32 %v4338, %v4283
      %v4345 = vadd.f32 %v4339, %v4287
      %v4346 = vadd.f32 %v4340, %v4283
      %v4347 = vadd.f32 %v4341, %v4287
      %vm4354 = vcmask 1043456
      %v4355 = vrot.slane %v4342, 4
      %v4356 = vrot.slane %v4344, 4
      %v4357 = vsel %vm4354, %v4355, %v4356
      %v4358 = vrot.slane %v4343, 4
      %v4359 = vrot.slane %v4345, 4
      %v4360 = vsel %vm4354, %v4358, %v4359
      %v4361 = vrot.slane %v4346, 4
      %v4362 = vsel %vm4354, %v4356, %v4361
      %v4363 = vrot.slane %v4347, 4
      %v4364 = vsel %vm4354, %v4359, %v4363
      %s4369 = scalar_lea.vmem %s231, 64
      %4370 = vst [vmem:[%s4369] sm:$0xff] %v4357
      %4371 = vst [vmem:[%s4369 + $0x8] sm:$0xff] %v4360
      %4372 = vst [vmem:[%s4369 + $0x10] sm:$0xff] %v4362
      %4373 = vst [vmem:[%s4369 + $0x18] sm:$0xff] %v4364
      %v4374 = vld [vmem:[#allocation5 + $0x60] sm:$0xc0]
      %v4375 = vld [vmem:[#allocation5 + $0x68] sm:$0xc0]
      %v4376 = vld [vmem:[#allocation5 + $0x70] sm:$0xff]
      %v4377 = vld [vmem:[#allocation5 + $0x78] sm:$0xff]
      %v4378 = vld [vmem:[#allocation5 + $0x80] sm:$0x3f]
      %v4379 = vld [vmem:[#allocation5 + $0x88] sm:$0x3f]
      %v4380 = vadd.f32 %v4374, %v4283
      %v4381 = vadd.f32 %v4375, %v4287
      %v4382 = vadd.f32 %v4376, %v4283
      %v4383 = vadd.f32 %v4377, %v4287
      %v4384 = vadd.f32 %v4378, %v4283
      %v4385 = vadd.f32 %v4379, %v4287
      %vm4392 = vcmask 1041408
      %v4393 = vrot.slane %v4380, 6
      %v4394 = vrot.slane %v4382, 6
      %v4395 = vsel %vm4392, %v4393, %v4394
      %v4396 = vrot.slane %v4381, 6
      %v4397 = vrot.slane %v4383, 6
      %v4398 = vsel %vm4392, %v4396, %v4397
      %v4399 = vrot.slane %v4384, 6
      %v4400 = vsel %vm4392, %v4394, %v4399
      %v4401 = vrot.slane %v4385, 6
      %v4402 = vsel %vm4392, %v4397, %v4401
      %s4407 = scalar_lea.vmem %s231, 96
      %4408 = vst [vmem:[%s4407] sm:$0xff] %v4395
      %4409 = vst [vmem:[%s4407 + $0x8] sm:$0xff] %v4398
      %4410 = vst [vmem:[%s4407 + $0x10] sm:$0xff] %v4400
      %4411 = vst [vmem:[%s4407 + $0x18] sm:$0xff] %v4402
      %v4412 = vld [vmem:[#allocation5 + $0x90] sm:$0xff]
      %v4413 = vld [vmem:[#allocation5 + $0x98] sm:$0xff]
      %v4414 = vld [vmem:[#allocation5 + $0xa0] sm:$0xff]
      %v4415 = vld [vmem:[#allocation5 + $0xa8] sm:$0xff]
      %v4416 = vadd.f32 %v4412, %v4283
      %v4417 = vadd.f32 %v4413, %v4287
      %v4418 = vadd.f32 %v4414, %v4283
      %v4419 = vadd.f32 %v4415, %v4287
      %s4420 = scalar_lea.vmem %s231, 128
      %4421 = vst [vmem:[%s4420] sm:$0xff] %v4416
      %4422 = vst [vmem:[%s4420 + $0x8] sm:$0xff] %v4417
      %4423 = vst [vmem:[%s4420 + $0x10] sm:$0xff] %v4418
      %4424 = vst [vmem:[%s4420 + $0x18] sm:$0xff] %v4419
      %v4425 = vld [vmem:[#allocation5 + $0xb0] sm:$0xfc]
      %v4426 = vld [vmem:[#allocation5 + $0xb8] sm:$0xfc]
      %v4427 = vld [vmem:[#allocation5 + $0xc0] sm:$0xff]
      %v4428 = vld [vmem:[#allocation5 + $0xc8] sm:$0xff]
      %v4429 = vld [vmem:[#allocation5 + $0xd0] sm:$0x3]
      %v4430 = vld [vmem:[#allocation5 + $0xd8] sm:$0x3]
      %v4431 = vadd.f32 %v4425, %v4283
      %v4432 = vadd.f32 %v4426, %v4287
      %v4433 = vadd.f32 %v4427, %v4283
      %v4434 = vadd.f32 %v4428, %v4287
      %v4435 = vadd.f32 %v4429, %v4283
      %v4436 = vadd.f32 %v4430, %v4287
      %v4443 = vrot.slane %v4431, 2
      %v4444 = vrot.slane %v4433, 2
      %v4445 = vsel %vm4316, %v4443, %v4444
      %v4446 = vrot.slane %v4432, 2
      %v4447 = vrot.slane %v4434, 2
      %v4448 = vsel %vm4316, %v4446, %v4447
      %v4449 = vrot.slane %v4435, 2
      %v4450 = vsel %vm4316, %v4444, %v4449
      %v4451 = vrot.slane %v4436, 2
      %v4452 = vsel %vm4316, %v4447, %v4451
      %s4457 = scalar_lea.vmem %s231, 160
      %4458 = vst [vmem:[%s4457] sm:$0xff] %v4445
      %4459 = vst [vmem:[%s4457 + $0x8] sm:$0xff] %v4448
      %4460 = vst [vmem:[%s4457 + $0x10] sm:$0xff] %v4450
      %4461 = vst [vmem:[%s4457 + $0x18] sm:$0xff] %v4452
      %v4462 = vld [vmem:[#allocation5 + $0xd0] sm:$0xf0]
      %v4463 = vld [vmem:[#allocation5 + $0xd8] sm:$0xf0]
      %v4464 = vld [vmem:[#allocation5 + $0xe0] sm:$0xff]
      %v4465 = vld [vmem:[#allocation5 + $0xe8] sm:$0xff]
      %v4466 = vld [vmem:[#allocation5 + $0xf0] sm:$0xf]
      %v4467 = vld [vmem:[#allocation5 + $0xf8] sm:$0xf]
      %v4468 = vadd.f32 %v4462, %v4283
      %v4469 = vadd.f32 %v4463, %v4287
      %v4470 = vadd.f32 %v4464, %v4283
      %v4471 = vadd.f32 %v4465, %v4287
      %v4472 = vadd.f32 %v4466, %v4283
      %v4473 = vadd.f32 %v4467, %v4287
      %v4480 = vrot.slane %v4468, 4
      %v4481 = vrot.slane %v4470, 4
      %v4482 = vsel %vm4354, %v4480, %v4481
      %v4483 = vrot.slane %v4469, 4
      %v4484 = vrot.slane %v4471, 4
      %v4485 = vsel %vm4354, %v4483, %v4484
      %v4486 = vrot.slane %v4472, 4
      %v4487 = vsel %vm4354, %v4481, %v4486
      %v4488 = vrot.slane %v4473, 4
      %v4489 = vsel %vm4354, %v4484, %v4488
      %s4494 = scalar_lea.vmem %s231, 192
      %4495 = vst [vmem:[%s4494] sm:$0xff] %v4482
      %4496 = vst [vmem:[%s4494 + $0x8] sm:$0xff] %v4485
      %4497 = vst [vmem:[%s4494 + $0x10] sm:$0xff] %v4487
      %4498 = vst [vmem:[%s4494 + $0x18] sm:$0xff] %v4489
      %v4499 = vld [vmem:[#allocation5 + $0xf0] sm:$0xc0]
      %v4500 = vld [vmem:[#allocation5 + $0xf8] sm:$0xc0]
      %v4501 = vld [vmem:[#allocation5 + $0x100] sm:$0xff]
      %v4502 = vld [vmem:[#allocation5 + $0x108] sm:$0xff]
      %v4503 = vld [vmem:[#allocation5 + $0x110] sm:$0x3f]
      %v4504 = vld [vmem:[#allocation5 + $0x118] sm:$0x3f]
      %v4505 = vadd.f32 %v4499, %v4283
      %v4506 = vadd.f32 %v4500, %v4287
      %v4507 = vadd.f32 %v4501, %v4283
      %v4508 = vadd.f32 %v4502, %v4287
      %v4509 = vadd.f32 %v4503, %v4283
      %v4510 = vadd.f32 %v4504, %v4287
      %v4517 = vrot.slane %v4505, 6
      %v4518 = vrot.slane %v4507, 6
      %v4519 = vsel %vm4392, %v4517, %v4518
      %v4520 = vrot.slane %v4506, 6
      %v4521 = vrot.slane %v4508, 6
      %v4522 = vsel %vm4392, %v4520, %v4521
      %v4523 = vrot.slane %v4509, 6
      %v4524 = vsel %vm4392, %v4518, %v4523
      %v4525 = vrot.slane %v4510, 6
      %v4526 = vsel %vm4392, %v4521, %v4525
      %s4531 = scalar_lea.vmem %s231, 224
      %4532 = vst [vmem:[%s4531] sm:$0xff] %v4519
      %4533 = vst [vmem:[%s4531 + $0x8] sm:$0xff] %v4522
      %4534 = vst [vmem:[%s4531 + $0x10] sm:$0xff] %v4524
      %4535 = vst [vmem:[%s4531 + $0x18] sm:$0xff] %v4526
      %s4536 = smul.u32 8, %s16
      %p4537 = scmp.lt.s32.totalorder %s4536, 15
      %s4538 = scalar_select %p4537, %s4536, 15
      %s4539 = smul.addr %s4538, 4
      %s4540 = smul.addr %s4539, 8
      %s4541 = scalar_lea.vmem %s5, %s4540
      // Predicated region
      $region41: #{_lambda_.1} parent=39 // pred_check
        %p4542 = pneg %p144
      $region42: #{_lambda_.1} parent=39 // pred_check_branch
        %4544 = sbr.rel (%p4542) target = $region44
      $region43: #{_lambda_.1} parent=39 // pred_region
        %s4545 = smul.u32 8, %s16
      $region44: #{_lambda_.1} parent=39 // pred_fallthru
        _
    $region40: #{_lambda_.1} parent=5 // pred_fallthru
      _
    %p4546 = scmp.le.s32.totalorder 2, %s11
    // Predicated region
    $region45: #{_lambda_.1} parent=5 // pred_check
      %p4547 = pneg %p4546
    $region46: #{_lambda_.1} parent=5 // pred_check_branch
      %4549 = sbr.rel (%p4547) target = $region48
    $region47: #{_lambda_.1} parent=5 // pred_region
      %s4550 = ssub.s32 %s11, 2
      // Predicated region
      $region49: #{_lambda_.1} parent=47 // pred_check
        %p4551 = pneg %p150
      $region50: #{_lambda_.1} parent=47 // pred_check_branch
        %4553 = sbr.rel (%p4551) target = $region52
      $region51: #{_lambda_.1} parent=47 // pred_region
        %s4554 = smul.u32 8, %s17
        %p4555 = scmp.lt.s32.totalorder %s4554, 15
        %s4556 = scalar_select %p4555, %s4554, 15
        %s4557 = smul.addr %s4556, 4
        %s4558 = smul.addr %s4557, 8
        %s4559 = scalar_lea.vmem %s5, %s4558
      $region52: #{_lambda_.1} parent=47 // pred_fallthru
        _
    $region48: #{_lambda_.1} parent=5 // pred_fallthru
      _
  $region6: #{_lambda_.1} parent=0 // loop_footer
    %s15 = sadd.s32 1, %s11
  $region7: #{_lambda_.1} parent=0 // loop_footer_branch
    %10 = sbr.rel target = $region3
  $region8: #{_lambda_.1} parent=0 // loop_exit
    _

</llo_original>
